<compile_context>
chip_gen: v7x
topology: tpu7x:2x2x1
jax: 0.10.0
libtpu: 0.0.40
codegen_flags: <defaults>
</compile_context>

<pallas_src>
import functools

import jax
import jax.numpy as jnp
from jax.experimental import pallas as pl
from jax.experimental.pallas import tpu as pltpu


def _round_up(x, m):
    return (x + m - 1) // m * m


# ----------------------------- Pallas kernel ---------------------------------

def ms_tcn_fused_kernel(x_ref, *refs, cfgs, n_batch, c_pad, t_buf, seg_w,
                        margin, eps):
    """Fused MS_TCN stack: [dilated Conv1d + BatchNorm1d(train) + ReLU] x L.

    x_ref : (c_pad, N*seg_w)  pre-padded lane-dense input slab
            (data of batch n at lanes [n*seg_w + margin, + T0)).
    refs  : per layer l: w (K_l, c_pad, c_pad), bias/gamma/beta (c_pad, 1);
            then o_ref (N, c_pad, t_buf) and two ping-pong slabs
            (c_pad, N*seg_w) in VMEM scratch.
    Layout: channels -> sublanes, time -> lanes; every batch segment has a
    128-aligned `margin` of zeros on the left for the dilated-conv padding.
    """
    num_layers = len(cfgs)
    o_ref = refs[4 * num_layers]
    pp = (refs[4 * num_layers + 1], refs[4 * num_layers + 2])

    # One-time zero of the left-margin strips: these are the only lanes a layer
    # reads that are never covered by a later full-width data-region store.
    zmargin = jnp.zeros((c_pad, margin), jnp.float32)
    for buf in pp:
        for n in range(n_batch):
            buf[:, n * seg_w:n * seg_w + margin] = zmargin

    lane_t = jax.lax.broadcasted_iota(jnp.int32, (1, t_buf), 1)

    for l, (k, d, pad, t_out) in enumerate(cfgs):
        w_ref, b_ref, g_ref, be_ref = refs[4 * l:4 * l + 4]
        in_ref = x_ref if l == 0 else pp[(l - 1) % 2]
        last = (l == num_layers - 1)
        valid = lane_t < t_out

        # --- dilated Conv1d: K tap matmuls (f32 accumulate) + bias;
        #     BN statistics accumulated in the SAME pass from the live values.
        s1 = jnp.zeros((c_pad, 1), jnp.float32)
        s2 = jnp.zeros((c_pad, 1), jnp.float32)
        for n in range(n_batch):
            rbase = n * seg_w + margin - pad        # x_pad origin for this batch
            acc = jnp.dot(w_ref[0], in_ref[:, rbase:rbase + t_buf],
                          preferred_element_type=jnp.float32)
            for j in range(1, k):
                off = rbase + j * d
                acc = acc + jnp.dot(w_ref[j], in_ref[:, off:off + t_buf],
                                    preferred_element_type=jnp.float32)
            acc = jnp.where(valid, acc + b_ref[...], 0.0)
            s1 = s1 + jnp.sum(acc, axis=1, keepdims=True)
            s2 = s2 + jnp.sum(acc * acc, axis=1, keepdims=True)
            # Write the pre-BN result once, directly into the next layer's
            # padded layout (128-aligned, unmasked full-width store).
            if last:
                o_ref[n] = acc
            else:
                wbase = n * seg_w + margin
                pp[l % 2][:, wbase:wbase + t_buf] = acc

        # --- BatchNorm1d (training-mode batch stats, biased variance) ---
        cnt = jnp.float32(n_batch * t_out)
        mean = s1 / cnt
        var = jnp.maximum(s2 / cnt - mean * mean, 0.0)
        scale = g_ref[...] * jax.lax.rsqrt(var + eps)
        shift = be_ref[...] - mean * scale

        # --- normalize + ReLU in place (mask keeps padded lanes at zero) ---
        # TODO(synk): for large N*T, run this epilogue in 512-2048 lane chunks
        # via lax.fori_loop(..., unroll=True) over pl.ds slices to bound spills.
        for n in range(n_batch):
            if last:
                v = o_ref[n]
                o_ref[n] = jnp.where(
                    valid, jnp.maximum(v * scale + shift, 0.0), 0.0)
            else:
                wbase = n * seg_w + margin
                v = pp[l % 2][:, wbase:wbase + t_buf]
                pp[l % 2][:, wbase:wbase + t_buf] = jnp.where(
                    valid, jnp.maximum(v * scale + shift, 0.0), 0.0)


# ----------------------------- Wrapper ----------------------------------------

def ms_tcn_forward(x, params, eps=1e-5):
    """MS_TCN forward. x: (N, C_in, T) f32 -> (N, C_out, T + sum_l (k_l-1)*d_l)."""
    n, c_in0, t0 = x.shape
    c_out = params[0]["w"].shape[0]
    c_pad = max(_round_up(c_in0, 8), _round_up(c_out, 8))

    # static per-layer geometry (T grows by (k-1)*d per layer, as in PyTorch)
    cfgs, t, max_pad = [], t0, 0
    for p in params:
        k, d = p["k"], p["d"]
        pad = (k - 1) * d
        cfgs.append((k, d, pad, t + pad))
        t += pad
        max_pad = max(max_pad, pad)
    t_final = t
    t_buf = _round_up(t_final, 128)          # lane-dense activation width
    margin = _round_up(max_pad, 128)         # 128-aligned left-pad margin
    seg_w = margin + t_buf                   # per-batch segment width

    # Layer-0 input as a pre-padded, lane-dense slab (aligned full-width stores
    # in the kernel; no masked sub-tile copies).
    x_slab = jnp.zeros((c_pad, n * seg_w), jnp.float32)
    xf = x.astype(jnp.float32)
    for b in range(n):
        base = b * seg_w + margin
        x_slab = x_slab.at[:c_in0, base:base + t0].set(xf[b])

    # pack per-layer params: tap-major weight (K, c_pad, c_pad) + bias/gamma/beta
    inputs = [x_slab]
    for p, (k, d, pad, t_out) in zip(params, cfgs):
        w = p["w"].astype(jnp.float32)                       # (C_out, C_in_l, K)
        c_in_l = w.shape[1]
        w_pad = jnp.zeros((k, c_pad, c_pad), jnp.float32)
        w_pad = w_pad.at[:, :c_out, :c_in_l].set(jnp.transpose(w, (2, 0, 1)))
        inputs.append(w_pad)
        for v in (p["b"], p["gamma"], p["beta"]):
            inputs.append(jnp.zeros((c_pad, 1), jnp.float32)
                          .at[:c_out, 0].set(v.astype(jnp.float32)))

    # --- VMEM budget derived from actual buffer sizes ---
    act_bytes = c_pad * n * seg_w * 4            # one padded activation slab
    out_bytes = n * c_pad * t_buf * 4
    param_bytes = sum(int(a.size) for a in inputs[1:]) * 4
    work_bytes = 4 * c_pad * t_buf * 4           # live matmul/epilogue values
    vmem_need = 3 * act_bytes + out_bytes + param_bytes + work_bytes
    try:
        vmem_cap = int(pltpu.get_tpu_info().vmem_capacity_bytes)
    except Exception:
        vmem_cap = 64 * 1024 * 1024              # v7x per-TC VMEM (most restrictive)
    vmem_budget = (vmem_cap * 7) // 8
    if vmem_need > vmem_budget:
        # TODO(synk): T-tiled grid with two-phase BatchNorm reduction (also
        # enables v7x dual-TensorCore sharding) for problems beyond VMEM.
        raise NotImplementedError(
            f"MS_TCN single-shot kernel needs ~{vmem_need >> 20} MiB VMEM "
            f"(budget {vmem_budget >> 20} MiB); tiled fallback not implemented.")
    vmem_limit = int(min(vmem_budget, max(32 * 1024 * 1024, 2 * vmem_need)))

    kern = functools.partial(
        ms_tcn_fused_kernel, cfgs=tuple(cfgs), n_batch=n, c_pad=c_pad,
        t_buf=t_buf, seg_w=seg_w, margin=margin, eps=eps)

    out3d = pl.pallas_call(
        kern,
        out_shape=jax.ShapeDtypeStruct((n, c_pad, t_buf), jnp.float32),
        in_specs=[pl.BlockSpec(memory_space=pltpu.MemorySpace.VMEM)] * len(inputs),
        out_specs=pl.BlockSpec(memory_space=pltpu.MemorySpace.VMEM),
        scratch_shapes=[pltpu.VMEM((c_pad, n * seg_w), jnp.float32),
                        pltpu.VMEM((c_pad, n * seg_w), jnp.float32)],
        compiler_params=pltpu.CompilerParams(vmem_limit_bytes=vmem_limit),
    )(*inputs)

    # (N, c_pad, t_buf) -> (N, C_out, T_final): slice only, no transpose pass.
    return out3d[:, :c_out, :t_final]


def init_ms_tcn_params(key, num_layers, in_channels, out_channels,
                       kernel_sizes=(3, 5, 7)):
    """Deterministic synthetic init matching the PyTorch module's parameter shapes."""
    params = []
    for i in range(num_layers):
        k = kernel_sizes[i % len(kernel_sizes)]
        cin = in_channels if i == 0 else out_channels
        key, kw, kb, kg, kbe = jax.random.split(key, 5)
        bound = 1.0 / float(cin * k) ** 0.5
        w = jax.random.uniform(kw, (out_channels, cin, k), jnp.float32, -bound, bound)
        b = jax.random.uniform(kb, (out_channels,), jnp.float32, -bound, bound)
        gamma = 1.0 + 0.1 * jax.random.normal(kg, (out_channels,), jnp.float32)
        beta = 0.1 * jax.random.normal(kbe, (out_channels,), jnp.float32)
        params.append(dict(w=w, b=b, gamma=gamma, beta=beta, k=k, d=2 ** i))
    return params


# ----------------------------- Pure-JAX reference ------------------------------

def _tcn_block_ref(x, w, b, gamma, beta, k, d, eps=1e-5):
    pad = (k - 1) * d
    t_out = x.shape[2] + pad
    x_pad = jnp.pad(x, ((0, 0), (0, 0), (pad, pad)))
    acc = jnp.zeros((x.shape[0], w.shape[0], t_out), jnp.float32)
    for j in range(k):
        acc = acc + jnp.einsum("oc,nct->not", w[:, :, j],
                               x_pad[:, :, j * d: j * d + t_out],
                               preferred_element_type=jnp.float32)
    acc = acc + b[None, :, None]
    mean = acc.mean(axis=(0, 2), keepdims=True)
    var = ((acc - mean) ** 2).mean(axis=(0, 2), keepdims=True)
    y = (acc - mean) * jax.lax.rsqrt(var + eps) * gamma[None, :, None] + beta[None, :, None]
    return jnp.maximum(y, 0.0)


def ms_tcn_ref(x, params):
    for p in params:
        x = _tcn_block_ref(x, p["w"], p["b"], p["gamma"], p["beta"], p["k"], p["d"])
    return x


# ----------------------------- Main --------------------------------------------

if __name__ == "__main__":
    N, C_IN, C_OUT, T, NUM_LAYERS = 2, 4, 8, 16, 3

    key = jax.random.PRNGKey(0)
    k_x, k_p = jax.random.split(key)
    x = jax.random.normal(k_x, (N, C_IN, T), jnp.float32)
    params = init_ms_tcn_params(k_p, NUM_LAYERS, C_IN, C_OUT)

    out = ms_tcn_forward(x, params)
    out = jax.block_until_ready(out)

    ref = ms_tcn_ref(x, params)
    assert out.shape == ref.shape, (out.shape, ref.shape)
    err = float(jnp.max(jnp.abs(out - ref)))
    assert jnp.allclose(out, ref, atol=1e-2, rtol=1e-2), err

    # TODO(synk): BatchNorm1d running_mean/running_var bookkeeping (training-side
    # state, not part of the forward output) is not materialized.
    print("KERNEL_OK")
</pallas_src>

<mosaic_0001>
module attributes {stable_mosaic.version = 11 : i64} {
  func.func @ms_tcn_fused_kernel(%arg0: memref<8x512xf32, #tpu.memory_space<vmem>>, %arg1: memref<3x8x8xf32, #tpu.memory_space<vmem>>, %arg2: memref<8x1xf32, #tpu.memory_space<vmem>>, %arg3: memref<8x1xf32, #tpu.memory_space<vmem>>, %arg4: memref<8x1xf32, #tpu.memory_space<vmem>>, %arg5: memref<5x8x8xf32, #tpu.memory_space<vmem>>, %arg6: memref<8x1xf32, #tpu.memory_space<vmem>>, %arg7: memref<8x1xf32, #tpu.memory_space<vmem>>, %arg8: memref<8x1xf32, #tpu.memory_space<vmem>>, %arg9: memref<7x8x8xf32, #tpu.memory_space<vmem>>, %arg10: memref<8x1xf32, #tpu.memory_space<vmem>>, %arg11: memref<8x1xf32, #tpu.memory_space<vmem>>, %arg12: memref<8x1xf32, #tpu.memory_space<vmem>>, %arg13: memref<2x8x128xf32, #tpu.memory_space<vmem>>, %arg14: memref<8x512xf32, #tpu.memory_space<vmem>>, %arg15: memref<8x512xf32, #tpu.memory_space<vmem>>) attributes {dimension_semantics = [], scalar_prefetch = 0 : i64, scratch_operands = 2 : i64, tpu.core_type = #tpu.core_type<tc>} {
    %cst = arith.constant 0.000000e+00 : f32
    %0 = vector.broadcast %cst : f32 to vector<8x128xf32>
    %c0 = arith.constant 0 : index
    %c0_0 = arith.constant 0 : index
    %1 = vector.load %arg14[%c0, %c0_0] : memref<8x512xf32, #tpu.memory_space<vmem>>, vector<8x128xf32>
    tpu.vector_store %arg14[%c0, %c0_0], %0 {strides = array<i32>} : memref<8x512xf32, #tpu.memory_space<vmem>>, vector<8x128xf32>,
    %c0_1 = arith.constant 0 : index
    %c256 = arith.constant 256 : index
    %2 = vector.load %arg14[%c0_1, %c256] : memref<8x512xf32, #tpu.memory_space<vmem>>, vector<8x128xf32>
    tpu.vector_store %arg14[%c0_1, %c256], %0 {strides = array<i32>} : memref<8x512xf32, #tpu.memory_space<vmem>>, vector<8x128xf32>,
    %c0_2 = arith.constant 0 : index
    %c0_3 = arith.constant 0 : index
    %3 = vector.load %arg15[%c0_2, %c0_3] : memref<8x512xf32, #tpu.memory_space<vmem>>, vector<8x128xf32>
    tpu.vector_store %arg15[%c0_2, %c0_3], %0 {strides = array<i32>} : memref<8x512xf32, #tpu.memory_space<vmem>>, vector<8x128xf32>,
    %c0_4 = arith.constant 0 : index
    %c256_5 = arith.constant 256 : index
    %4 = vector.load %arg15[%c0_4, %c256_5] : memref<8x512xf32, #tpu.memory_space<vmem>>, vector<8x128xf32>
    tpu.vector_store %arg15[%c0_4, %c256_5], %0 {strides = array<i32>} : memref<8x512xf32, #tpu.memory_space<vmem>>, vector<8x128xf32>,
    %5 = tpu.iota {dimensions = array<i32: 1>} : vector<1x128xi32>
    %c18_i32 = arith.constant 18 : i32
    %6 = vector.broadcast %c18_i32 : i32 to vector<1x128xi32>
    %7 = arith.cmpi slt, %5, %6 : vector<1x128xi32>
    %cst_6 = arith.constant 0.000000e+00 : f32
    %8 = vector.broadcast %cst_6 : f32 to vector<8x1xf32>
    %cst_7 = arith.constant 0.000000e+00 : f32
    %9 = vector.broadcast %cst_7 : f32 to vector<8x1xf32>
    %c0_8 = arith.constant 0 : index
    %c0_9 = arith.constant 0 : index
    %c0_10 = arith.constant 0 : index
    %10 = vector.load %arg1[%c0_8, %c0_9, %c0_10] : memref<3x8x8xf32, #tpu.memory_space<vmem>>, vector<1x8x8xf32>
    %11 = vector.shape_cast %10 : vector<1x8x8xf32> to vector<8x8xf32>
    %c0_11 = arith.constant 0 : index
    %c126 = arith.constant 126 : index
    %12 = vector.load %arg0[%c0_11, %c126] : memref<8x512xf32, #tpu.memory_space<vmem>>, vector<8x128xf32>
    %cst_12 = arith.constant dense<0.000000e+00> : vector<8x128xf32>
    %13 = tpu.matmul %11, %12, %cst_12 {dimension_numbers = #tpu.dot_dimension_numbers<[1], [0], [0], [1], [0, 0, 1, 1], [], []>} : vector<8x8xf32>, vector<8x128xf32>, vector<8x128xf32> -> vector<8x128xf32>
    %c1 = arith.constant 1 : index
    %c0_13 = arith.constant 0 : index
    %c0_14 = arith.constant 0 : index
    %14 = vector.load %arg1[%c1, %c0_13, %c0_14] : memref<3x8x8xf32, #tpu.memory_space<vmem>>, vector<1x8x8xf32>
    %15 = vector.shape_cast %14 : vector<1x8x8xf32> to vector<8x8xf32>
    %c0_15 = arith.constant 0 : index
    %c127 = arith.constant 127 : index
    %16 = vector.load %arg0[%c0_15, %c127] : memref<8x512xf32, #tpu.memory_space<vmem>>, vector<8x128xf32>
    %cst_16 = arith.constant dense<0.000000e+00> : vector<8x128xf32>
    %17 = tpu.matmul %15, %16, %cst_16 {dimension_numbers = #tpu.dot_dimension_numbers<[1], [0], [0], [1], [0, 0, 1, 1], [], []>} : vector<8x8xf32>, vector<8x128xf32>, vector<8x128xf32> -> vector<8x128xf32>
    %18 = arith.addf %13, %17 : vector<8x128xf32>
    %c2 = arith.constant 2 : index
    %c0_17 = arith.constant 0 : index
    %c0_18 = arith.constant 0 : index
    %19 = vector.load %arg1[%c2, %c0_17, %c0_18] : memref<3x8x8xf32, #tpu.memory_space<vmem>>, vector<1x8x8xf32>
    %20 = vector.shape_cast %19 : vector<1x8x8xf32> to vector<8x8xf32>
    %c0_19 = arith.constant 0 : index
    %c128 = arith.constant 128 : index
    %21 = vector.load %arg0[%c0_19, %c128] : memref<8x512xf32, #tpu.memory_space<vmem>>, vector<8x128xf32>
    %cst_20 = arith.constant dense<0.000000e+00> : vector<8x128xf32>
    %22 = tpu.matmul %20, %21, %cst_20 {dimension_numbers = #tpu.dot_dimension_numbers<[1], [0], [0], [1], [0, 0, 1, 1], [], []>} : vector<8x8xf32>, vector<8x128xf32>, vector<8x128xf32> -> vector<8x128xf32>
    %23 = arith.addf %18, %22 : vector<8x128xf32>
    %c0_21 = arith.constant 0 : index
    %c0_22 = arith.constant 0 : index
    %24 = vector.load %arg2[%c0_21, %c0_22] : memref<8x1xf32, #tpu.memory_space<vmem>>, vector<8x1xf32>
    %25 = vector.broadcast %24 : vector<8x1xf32> to vector<8x128xf32>
    %26 = arith.addf %23, %25 : vector<8x128xf32>
    %cst_23 = arith.constant 0.000000e+00 : f32
    %27 = vector.shape_cast %7 : vector<1x128xi1> to vector<1x128xi1>
    %28 = vector.broadcast %27 : vector<1x128xi1> to vector<8x128xi1>
    %29 = vector.broadcast %cst_23 : f32 to vector<8x128xf32>
    %30 = arith.select %28, %26, %29 : vector<8x128xi1>, vector<8x128xf32>
    %cst_24 = arith.constant dense<0.000000e+00> : vector<8xf32>
    %31 = vector.multi_reduction <add>, %30, %cst_24 [1] : vector<8x128xf32> to vector<8xf32>
    %32 = vector.shape_cast %31 : vector<8xf32> to vector<8x1xf32>
    %33 = arith.addf %8, %32 : vector<8x1xf32>
    %34 = arith.mulf %30, %30 : vector<8x128xf32>
    %cst_25 = arith.constant dense<0.000000e+00> : vector<8xf32>
    %35 = vector.multi_reduction <add>, %34, %cst_25 [1] : vector<8x128xf32> to vector<8xf32>
    %36 = vector.shape_cast %35 : vector<8xf32> to vector<8x1xf32>
    %37 = arith.addf %9, %36 : vector<8x1xf32>
    %c0_26 = arith.constant 0 : index
    %c128_27 = arith.constant 128 : index
    %38 = vector.load %arg14[%c0_26, %c128_27] : memref<8x512xf32, #tpu.memory_space<vmem>>, vector<8x128xf32>
    tpu.vector_store %arg14[%c0_26, %c128_27], %30 {strides = array<i32>} : memref<8x512xf32, #tpu.memory_space<vmem>>, vector<8x128xf32>,
    %c0_28 = arith.constant 0 : index
    %c0_29 = arith.constant 0 : index
    %c0_30 = arith.constant 0 : index
    %39 = vector.load %arg1[%c0_28, %c0_29, %c0_30] : memref<3x8x8xf32, #tpu.memory_space<vmem>>, vector<1x8x8xf32>
    %40 = vector.shape_cast %39 : vector<1x8x8xf32> to vector<8x8xf32>
    %c0_31 = arith.constant 0 : index
    %c382 = arith.constant 382 : index
    %41 = vector.load %arg0[%c0_31, %c382] : memref<8x512xf32, #tpu.memory_space<vmem>>, vector<8x128xf32>
    %cst_32 = arith.constant dense<0.000000e+00> : vector<8x128xf32>
    %42 = tpu.matmul %40, %41, %cst_32 {dimension_numbers = #tpu.dot_dimension_numbers<[1], [0], [0], [1], [0, 0, 1, 1], [], []>} : vector<8x8xf32>, vector<8x128xf32>, vector<8x128xf32> -> vector<8x128xf32>
    %c1_33 = arith.constant 1 : index
    %c0_34 = arith.constant 0 : index
    %c0_35 = arith.constant 0 : index
    %43 = vector.load %arg1[%c1_33, %c0_34, %c0_35] : memref<3x8x8xf32, #tpu.memory_space<vmem>>, vector<1x8x8xf32>
    %44 = vector.shape_cast %43 : vector<1x8x8xf32> to vector<8x8xf32>
    %c0_36 = arith.constant 0 : index
    %c383 = arith.constant 383 : index
    %45 = vector.load %arg0[%c0_36, %c383] : memref<8x512xf32, #tpu.memory_space<vmem>>, vector<8x128xf32>
    %cst_37 = arith.constant dense<0.000000e+00> : vector<8x128xf32>
    %46 = tpu.matmul %44, %45, %cst_37 {dimension_numbers = #tpu.dot_dimension_numbers<[1], [0], [0], [1], [0, 0, 1, 1], [], []>} : vector<8x8xf32>, vector<8x128xf32>, vector<8x128xf32> -> vector<8x128xf32>
    %47 = arith.addf %42, %46 : vector<8x128xf32>
    %c2_38 = arith.constant 2 : index
    %c0_39 = arith.constant 0 : index
    %c0_40 = arith.constant 0 : index
    %48 = vector.load %arg1[%c2_38, %c0_39, %c0_40] : memref<3x8x8xf32, #tpu.memory_space<vmem>>, vector<1x8x8xf32>
    %49 = vector.shape_cast %48 : vector<1x8x8xf32> to vector<8x8xf32>
    %c0_41 = arith.constant 0 : index
    %c384 = arith.constant 384 : index
    %50 = vector.load %arg0[%c0_41, %c384] : memref<8x512xf32, #tpu.memory_space<vmem>>, vector<8x128xf32>
    %cst_42 = arith.constant dense<0.000000e+00> : vector<8x128xf32>
    %51 = tpu.matmul %49, %50, %cst_42 {dimension_numbers = #tpu.dot_dimension_numbers<[1], [0], [0], [1], [0, 0, 1, 1], [], []>} : vector<8x8xf32>, vector<8x128xf32>, vector<8x128xf32> -> vector<8x128xf32>
    %52 = arith.addf %47, %51 : vector<8x128xf32>
    %c0_43 = arith.constant 0 : index
    %c0_44 = arith.constant 0 : index
    %53 = vector.load %arg2[%c0_43, %c0_44] : memref<8x1xf32, #tpu.memory_space<vmem>>, vector<8x1xf32>
    %54 = vector.broadcast %53 : vector<8x1xf32> to vector<8x128xf32>
    %55 = arith.addf %52, %54 : vector<8x128xf32>
    %cst_45 = arith.constant 0.000000e+00 : f32
    %56 = vector.shape_cast %7 : vector<1x128xi1> to vector<1x128xi1>
    %57 = vector.broadcast %56 : vector<1x128xi1> to vector<8x128xi1>
    %58 = vector.broadcast %cst_45 : f32 to vector<8x128xf32>
    %59 = arith.select %57, %55, %58 : vector<8x128xi1>, vector<8x128xf32>
    %cst_46 = arith.constant dense<0.000000e+00> : vector<8xf32>
    %60 = vector.multi_reduction <add>, %59, %cst_46 [1] : vector<8x128xf32> to vector<8xf32>
    %61 = vector.shape_cast %60 : vector<8xf32> to vector<8x1xf32>
    %62 = arith.addf %33, %61 : vector<8x1xf32>
    %63 = arith.mulf %59, %59 : vector<8x128xf32>
    %cst_47 = arith.constant dense<0.000000e+00> : vector<8xf32>
    %64 = vector.multi_reduction <add>, %63, %cst_47 [1] : vector<8x128xf32> to vector<8xf32>
    %65 = vector.shape_cast %64 : vector<8xf32> to vector<8x1xf32>
    %66 = arith.addf %37, %65 : vector<8x1xf32>
    %c0_48 = arith.constant 0 : index
    %c384_49 = arith.constant 384 : index
    %67 = vector.load %arg14[%c0_48, %c384_49] : memref<8x512xf32, #tpu.memory_space<vmem>>, vector<8x128xf32>
    tpu.vector_store %arg14[%c0_48, %c384_49], %59 {strides = array<i32>} : memref<8x512xf32, #tpu.memory_space<vmem>>, vector<8x128xf32>,
    %cst_50 = arith.constant 3.600000e+01 : f32
    %68 = vector.broadcast %cst_50 : f32 to vector<8x1xf32>
    %69 = arith.divf %62, %68 : vector<8x1xf32>
    %cst_51 = arith.constant 3.600000e+01 : f32
    %70 = vector.broadcast %cst_51 : f32 to vector<8x1xf32>
    %71 = arith.divf %66, %70 : vector<8x1xf32>
    %72 = arith.mulf %69, %69 : vector<8x1xf32>
    %73 = arith.subf %71, %72 : vector<8x1xf32>
    %cst_52 = arith.constant 0.000000e+00 : f32
    %74 = vector.broadcast %cst_52 : f32 to vector<8x1xf32>
    %75 = arith.maximumf %73, %74 : vector<8x1xf32>
    %c0_53 = arith.constant 0 : index
    %c0_54 = arith.constant 0 : index
    %76 = vector.load %arg3[%c0_53, %c0_54] : memref<8x1xf32, #tpu.memory_space<vmem>>, vector<8x1xf32>
    %cst_55 = arith.constant 9.99999974E-6 : f32
    %77 = vector.broadcast %cst_55 : f32 to vector<8x1xf32>
    %78 = arith.addf %75, %77 : vector<8x1xf32>
    %79 = math.rsqrt %78 : vector<8x1xf32>
    %80 = arith.mulf %76, %79 : vector<8x1xf32>
    %c0_56 = arith.constant 0 : index
    %c0_57 = arith.constant 0 : index
    %81 = vector.load %arg4[%c0_56, %c0_57] : memref<8x1xf32, #tpu.memory_space<vmem>>, vector<8x1xf32>
    %82 = arith.mulf %69, %80 : vector<8x1xf32>
    %83 = arith.subf %81, %82 : vector<8x1xf32>
    %c0_58 = arith.constant 0 : index
    %c128_59 = arith.constant 128 : index
    %84 = vector.load %arg14[%c0_58, %c128_59] : memref<8x512xf32, #tpu.memory_space<vmem>>, vector<8x128xf32>
    %85 = vector.broadcast %80 : vector<8x1xf32> to vector<8x128xf32>
    %86 = arith.mulf %84, %85 : vector<8x128xf32>
    %87 = vector.broadcast %83 : vector<8x1xf32> to vector<8x128xf32>
    %88 = arith.addf %86, %87 : vector<8x128xf32>
    %cst_60 = arith.constant 0.000000e+00 : f32
    %89 = vector.broadcast %cst_60 : f32 to vector<8x128xf32>
    %90 = arith.maximumf %88, %89 : vector<8x128xf32>
    %cst_61 = arith.constant 0.000000e+00 : f32
    %91 = vector.shape_cast %7 : vector<1x128xi1> to vector<1x128xi1>
    %92 = vector.broadcast %91 : vector<1x128xi1> to vector<8x128xi1>
    %93 = vector.broadcast %cst_61 : f32 to vector<8x128xf32>
    %94 = arith.select %92, %90, %93 : vector<8x128xi1>, vector<8x128xf32>
    %c0_62 = arith.constant 0 : index
    %c128_63 = arith.constant 128 : index
    %95 = vector.load %arg14[%c0_62, %c128_63] : memref<8x512xf32, #tpu.memory_space<vmem>>, vector<8x128xf32>
    tpu.vector_store %arg14[%c0_62, %c128_63], %94 {strides = array<i32>} : memref<8x512xf32, #tpu.memory_space<vmem>>, vector<8x128xf32>,
    %c0_64 = arith.constant 0 : index
    %c384_65 = arith.constant 384 : index
    %96 = vector.load %arg14[%c0_64, %c384_65] : memref<8x512xf32, #tpu.memory_space<vmem>>, vector<8x128xf32>
    %97 = vector.broadcast %80 : vector<8x1xf32> to vector<8x128xf32>
    %98 = arith.mulf %96, %97 : vector<8x128xf32>
    %99 = vector.broadcast %83 : vector<8x1xf32> to vector<8x128xf32>
    %100 = arith.addf %98, %99 : vector<8x128xf32>
    %cst_66 = arith.constant 0.000000e+00 : f32
    %101 = vector.broadcast %cst_66 : f32 to vector<8x128xf32>
    %102 = arith.maximumf %100, %101 : vector<8x128xf32>
    %cst_67 = arith.constant 0.000000e+00 : f32
    %103 = vector.shape_cast %7 : vector<1x128xi1> to vector<1x128xi1>
    %104 = vector.broadcast %103 : vector<1x128xi1> to vector<8x128xi1>
    %105 = vector.broadcast %cst_67 : f32 to vector<8x128xf32>
    %106 = arith.select %104, %102, %105 : vector<8x128xi1>, vector<8x128xf32>
    %c0_68 = arith.constant 0 : index
    %c384_69 = arith.constant 384 : index
    %107 = vector.load %arg14[%c0_68, %c384_69] : memref<8x512xf32, #tpu.memory_space<vmem>>, vector<8x128xf32>
    tpu.vector_store %arg14[%c0_68, %c384_69], %106 {strides = array<i32>} : memref<8x512xf32, #tpu.memory_space<vmem>>, vector<8x128xf32>,
    %c26_i32 = arith.constant 26 : i32
    %108 = vector.broadcast %c26_i32 : i32 to vector<1x128xi32>
    %109 = arith.cmpi slt, %5, %108 : vector<1x128xi32>
    %cst_70 = arith.constant 0.000000e+00 : f32
    %110 = vector.broadcast %cst_70 : f32 to vector<8x1xf32>
    %cst_71 = arith.constant 0.000000e+00 : f32
    %111 = vector.broadcast %cst_71 : f32 to vector<8x1xf32>
    %c0_72 = arith.constant 0 : index
    %c0_73 = arith.constant 0 : index
    %c0_74 = arith.constant 0 : index
    %112 = vector.load %arg5[%c0_72, %c0_73, %c0_74] : memref<5x8x8xf32, #tpu.memory_space<vmem>>, vector<1x8x8xf32>
    %113 = vector.shape_cast %112 : vector<1x8x8xf32> to vector<8x8xf32>
    %c0_75 = arith.constant 0 : index
    %c120 = arith.constant 120 : index
    %114 = vector.load %arg14[%c0_75, %c120] : memref<8x512xf32, #tpu.memory_space<vmem>>, vector<8x128xf32>
    %cst_76 = arith.constant dense<0.000000e+00> : vector<8x128xf32>
    %115 = tpu.matmul %113, %114, %cst_76 {dimension_numbers = #tpu.dot_dimension_numbers<[1], [0], [0], [1], [0, 0, 1, 1], [], []>} : vector<8x8xf32>, vector<8x128xf32>, vector<8x128xf32> -> vector<8x128xf32>
    %c1_77 = arith.constant 1 : index
    %c0_78 = arith.constant 0 : index
    %c0_79 = arith.constant 0 : index
    %116 = vector.load %arg5[%c1_77, %c0_78, %c0_79] : memref<5x8x8xf32, #tpu.memory_space<vmem>>, vector<1x8x8xf32>
    %117 = vector.shape_cast %116 : vector<1x8x8xf32> to vector<8x8xf32>
    %c0_80 = arith.constant 0 : index
    %c122 = arith.constant 122 : index
    %118 = vector.load %arg14[%c0_80, %c122] : memref<8x512xf32, #tpu.memory_space<vmem>>, vector<8x128xf32>
    %cst_81 = arith.constant dense<0.000000e+00> : vector<8x128xf32>
    %119 = tpu.matmul %117, %118, %cst_81 {dimension_numbers = #tpu.dot_dimension_numbers<[1], [0], [0], [1], [0, 0, 1, 1], [], []>} : vector<8x8xf32>, vector<8x128xf32>, vector<8x128xf32> -> vector<8x128xf32>
    %120 = arith.addf %115, %119 : vector<8x128xf32>
    %c2_82 = arith.constant 2 : index
    %c0_83 = arith.constant 0 : index
    %c0_84 = arith.constant 0 : index
    %121 = vector.load %arg5[%c2_82, %c0_83, %c0_84] : memref<5x8x8xf32, #tpu.memory_space<vmem>>, vector<1x8x8xf32>
    %122 = vector.shape_cast %121 : vector<1x8x8xf32> to vector<8x8xf32>
    %c0_85 = arith.constant 0 : index
    %c124 = arith.constant 124 : index
    %123 = vector.load %arg14[%c0_85, %c124] : memref<8x512xf32, #tpu.memory_space<vmem>>, vector<8x128xf32>
    %cst_86 = arith.constant dense<0.000000e+00> : vector<8x128xf32>
    %124 = tpu.matmul %122, %123, %cst_86 {dimension_numbers = #tpu.dot_dimension_numbers<[1], [0], [0], [1], [0, 0, 1, 1], [], []>} : vector<8x8xf32>, vector<8x128xf32>, vector<8x128xf32> -> vector<8x128xf32>
    %125 = arith.addf %120, %124 : vector<8x128xf32>
    %c3 = arith.constant 3 : index
    %c0_87 = arith.constant 0 : index
    %c0_88 = arith.constant 0 : index
    %126 = vector.load %arg5[%c3, %c0_87, %c0_88] : memref<5x8x8xf32, #tpu.memory_space<vmem>>, vector<1x8x8xf32>
    %127 = vector.shape_cast %126 : vector<1x8x8xf32> to vector<8x8xf32>
    %c0_89 = arith.constant 0 : index
    %c126_90 = arith.constant 126 : index
    %128 = vector.load %arg14[%c0_89, %c126_90] : memref<8x512xf32, #tpu.memory_space<vmem>>, vector<8x128xf32>
    %cst_91 = arith.constant dense<0.000000e+00> : vector<8x128xf32>
    %129 = tpu.matmul %127, %128, %cst_91 {dimension_numbers = #tpu.dot_dimension_numbers<[1], [0], [0], [1], [0, 0, 1, 1], [], []>} : vector<8x8xf32>, vector<8x128xf32>, vector<8x128xf32> -> vector<8x128xf32>
    %130 = arith.addf %125, %129 : vector<8x128xf32>
    %c4 = arith.constant 4 : index
    %c0_92 = arith.constant 0 : index
    %c0_93 = arith.constant 0 : index
    %131 = vector.load %arg5[%c4, %c0_92, %c0_93] : memref<5x8x8xf32, #tpu.memory_space<vmem>>, vector<1x8x8xf32>
    %132 = vector.shape_cast %131 : vector<1x8x8xf32> to vector<8x8xf32>
    %c0_94 = arith.constant 0 : index
    %c128_95 = arith.constant 128 : index
    %133 = vector.load %arg14[%c0_94, %c128_95] : memref<8x512xf32, #tpu.memory_space<vmem>>, vector<8x128xf32>
    %cst_96 = arith.constant dense<0.000000e+00> : vector<8x128xf32>
    %134 = tpu.matmul %132, %133, %cst_96 {dimension_numbers = #tpu.dot_dimension_numbers<[1], [0], [0], [1], [0, 0, 1, 1], [], []>} : vector<8x8xf32>, vector<8x128xf32>, vector<8x128xf32> -> vector<8x128xf32>
    %135 = arith.addf %130, %134 : vector<8x128xf32>
    %c0_97 = arith.constant 0 : index
    %c0_98 = arith.constant 0 : index
    %136 = vector.load %arg6[%c0_97, %c0_98] : memref<8x1xf32, #tpu.memory_space<vmem>>, vector<8x1xf32>
    %137 = vector.broadcast %136 : vector<8x1xf32> to vector<8x128xf32>
    %138 = arith.addf %135, %137 : vector<8x128xf32>
    %cst_99 = arith.constant 0.000000e+00 : f32
    %139 = vector.shape_cast %109 : vector<1x128xi1> to vector<1x128xi1>
    %140 = vector.broadcast %139 : vector<1x128xi1> to vector<8x128xi1>
    %141 = vector.broadcast %cst_99 : f32 to vector<8x128xf32>
    %142 = arith.select %140, %138, %141 : vector<8x128xi1>, vector<8x128xf32>
    %cst_100 = arith.constant dense<0.000000e+00> : vector<8xf32>
    %143 = vector.multi_reduction <add>, %142, %cst_100 [1] : vector<8x128xf32> to vector<8xf32>
    %144 = vector.shape_cast %143 : vector<8xf32> to vector<8x1xf32>
    %145 = arith.addf %110, %144 : vector<8x1xf32>
    %146 = arith.mulf %142, %142 : vector<8x128xf32>
    %cst_101 = arith.constant dense<0.000000e+00> : vector<8xf32>
    %147 = vector.multi_reduction <add>, %146, %cst_101 [1] : vector<8x128xf32> to vector<8xf32>
    %148 = vector.shape_cast %147 : vector<8xf32> to vector<8x1xf32>
    %149 = arith.addf %111, %148 : vector<8x1xf32>
    %c0_102 = arith.constant 0 : index
    %c128_103 = arith.constant 128 : index
    %150 = vector.load %arg15[%c0_102, %c128_103] : memref<8x512xf32, #tpu.memory_space<vmem>>, vector<8x128xf32>
    tpu.vector_store %arg15[%c0_102, %c128_103], %142 {strides = array<i32>} : memref<8x512xf32, #tpu.memory_space<vmem>>, vector<8x128xf32>,
    %c0_104 = arith.constant 0 : index
    %c0_105 = arith.constant 0 : index
    %c0_106 = arith.constant 0 : index
    %151 = vector.load %arg5[%c0_104, %c0_105, %c0_106] : memref<5x8x8xf32, #tpu.memory_space<vmem>>, vector<1x8x8xf32>
    %152 = vector.shape_cast %151 : vector<1x8x8xf32> to vector<8x8xf32>
    %c0_107 = arith.constant 0 : index
    %c376 = arith.constant 376 : index
    %153 = vector.load %arg14[%c0_107, %c376] : memref<8x512xf32, #tpu.memory_space<vmem>>, vector<8x128xf32>
    %cst_108 = arith.constant dense<0.000000e+00> : vector<8x128xf32>
    %154 = tpu.matmul %152, %153, %cst_108 {dimension_numbers = #tpu.dot_dimension_numbers<[1], [0], [0], [1], [0, 0, 1, 1], [], []>} : vector<8x8xf32>, vector<8x128xf32>, vector<8x128xf32> -> vector<8x128xf32>
    %c1_109 = arith.constant 1 : index
    %c0_110 = arith.constant 0 : index
    %c0_111 = arith.constant 0 : index
    %155 = vector.load %arg5[%c1_109, %c0_110, %c0_111] : memref<5x8x8xf32, #tpu.memory_space<vmem>>, vector<1x8x8xf32>
    %156 = vector.shape_cast %155 : vector<1x8x8xf32> to vector<8x8xf32>
    %c0_112 = arith.constant 0 : index
    %c378 = arith.constant 378 : index
    %157 = vector.load %arg14[%c0_112, %c378] : memref<8x512xf32, #tpu.memory_space<vmem>>, vector<8x128xf32>
    %cst_113 = arith.constant dense<0.000000e+00> : vector<8x128xf32>
    %158 = tpu.matmul %156, %157, %cst_113 {dimension_numbers = #tpu.dot_dimension_numbers<[1], [0], [0], [1], [0, 0, 1, 1], [], []>} : vector<8x8xf32>, vector<8x128xf32>, vector<8x128xf32> -> vector<8x128xf32>
    %159 = arith.addf %154, %158 : vector<8x128xf32>
    %c2_114 = arith.constant 2 : index
    %c0_115 = arith.constant 0 : index
    %c0_116 = arith.constant 0 : index
    %160 = vector.load %arg5[%c2_114, %c0_115, %c0_116] : memref<5x8x8xf32, #tpu.memory_space<vmem>>, vector<1x8x8xf32>
    %161 = vector.shape_cast %160 : vector<1x8x8xf32> to vector<8x8xf32>
    %c0_117 = arith.constant 0 : index
    %c380 = arith.constant 380 : index
    %162 = vector.load %arg14[%c0_117, %c380] : memref<8x512xf32, #tpu.memory_space<vmem>>, vector<8x128xf32>
    %cst_118 = arith.constant dense<0.000000e+00> : vector<8x128xf32>
    %163 = tpu.matmul %161, %162, %cst_118 {dimension_numbers = #tpu.dot_dimension_numbers<[1], [0], [0], [1], [0, 0, 1, 1], [], []>} : vector<8x8xf32>, vector<8x128xf32>, vector<8x128xf32> -> vector<8x128xf32>
    %164 = arith.addf %159, %163 : vector<8x128xf32>
    %c3_119 = arith.constant 3 : index
    %c0_120 = arith.constant 0 : index
    %c0_121 = arith.constant 0 : index
    %165 = vector.load %arg5[%c3_119, %c0_120, %c0_121] : memref<5x8x8xf32, #tpu.memory_space<vmem>>, vector<1x8x8xf32>
    %166 = vector.shape_cast %165 : vector<1x8x8xf32> to vector<8x8xf32>
    %c0_122 = arith.constant 0 : index
    %c382_123 = arith.constant 382 : index
    %167 = vector.load %arg14[%c0_122, %c382_123] : memref<8x512xf32, #tpu.memory_space<vmem>>, vector<8x128xf32>
    %cst_124 = arith.constant dense<0.000000e+00> : vector<8x128xf32>
    %168 = tpu.matmul %166, %167, %cst_124 {dimension_numbers = #tpu.dot_dimension_numbers<[1], [0], [0], [1], [0, 0, 1, 1], [], []>} : vector<8x8xf32>, vector<8x128xf32>, vector<8x128xf32> -> vector<8x128xf32>
    %169 = arith.addf %164, %168 : vector<8x128xf32>
    %c4_125 = arith.constant 4 : index
    %c0_126 = arith.constant 0 : index
    %c0_127 = arith.constant 0 : index
    %170 = vector.load %arg5[%c4_125, %c0_126, %c0_127] : memref<5x8x8xf32, #tpu.memory_space<vmem>>, vector<1x8x8xf32>
    %171 = vector.shape_cast %170 : vector<1x8x8xf32> to vector<8x8xf32>
    %c0_128 = arith.constant 0 : index
    %c384_129 = arith.constant 384 : index
    %172 = vector.load %arg14[%c0_128, %c384_129] : memref<8x512xf32, #tpu.memory_space<vmem>>, vector<8x128xf32>
    %cst_130 = arith.constant dense<0.000000e+00> : vector<8x128xf32>
    %173 = tpu.matmul %171, %172, %cst_130 {dimension_numbers = #tpu.dot_dimension_numbers<[1], [0], [0], [1], [0, 0, 1, 1], [], []>} : vector<8x8xf32>, vector<8x128xf32>, vector<8x128xf32> -> vector<8x128xf32>
    %174 = arith.addf %169, %173 : vector<8x128xf32>
    %c0_131 = arith.constant 0 : index
    %c0_132 = arith.constant 0 : index
    %175 = vector.load %arg6[%c0_131, %c0_132] : memref<8x1xf32, #tpu.memory_space<vmem>>, vector<8x1xf32>
    %176 = vector.broadcast %175 : vector<8x1xf32> to vector<8x128xf32>
    %177 = arith.addf %174, %176 : vector<8x128xf32>
    %cst_133 = arith.constant 0.000000e+00 : f32
    %178 = vector.shape_cast %109 : vector<1x128xi1> to vector<1x128xi1>
    %179 = vector.broadcast %178 : vector<1x128xi1> to vector<8x128xi1>
    %180 = vector.broadcast %cst_133 : f32 to vector<8x128xf32>
    %181 = arith.select %179, %177, %180 : vector<8x128xi1>, vector<8x128xf32>
    %cst_134 = arith.constant dense<0.000000e+00> : vector<8xf32>
    %182 = vector.multi_reduction <add>, %181, %cst_134 [1] : vector<8x128xf32> to vector<8xf32>
    %183 = vector.shape_cast %182 : vector<8xf32> to vector<8x1xf32>
    %184 = arith.addf %145, %183 : vector<8x1xf32>
    %185 = arith.mulf %181, %181 : vector<8x128xf32>
    %cst_135 = arith.constant dense<0.000000e+00> : vector<8xf32>
    %186 = vector.multi_reduction <add>, %185, %cst_135 [1] : vector<8x128xf32> to vector<8xf32>
    %187 = vector.shape_cast %186 : vector<8xf32> to vector<8x1xf32>
    %188 = arith.addf %149, %187 : vector<8x1xf32>
    %c0_136 = arith.constant 0 : index
    %c384_137 = arith.constant 384 : index
    %189 = vector.load %arg15[%c0_136, %c384_137] : memref<8x512xf32, #tpu.memory_space<vmem>>, vector<8x128xf32>
    tpu.vector_store %arg15[%c0_136, %c384_137], %181 {strides = array<i32>} : memref<8x512xf32, #tpu.memory_space<vmem>>, vector<8x128xf32>,
    %cst_138 = arith.constant 5.200000e+01 : f32
    %190 = vector.broadcast %cst_138 : f32 to vector<8x1xf32>
    %191 = arith.divf %184, %190 : vector<8x1xf32>
    %cst_139 = arith.constant 5.200000e+01 : f32
    %192 = vector.broadcast %cst_139 : f32 to vector<8x1xf32>
    %193 = arith.divf %188, %192 : vector<8x1xf32>
    %194 = arith.mulf %191, %191 : vector<8x1xf32>
    %195 = arith.subf %193, %194 : vector<8x1xf32>
    %cst_140 = arith.constant 0.000000e+00 : f32
    %196 = vector.broadcast %cst_140 : f32 to vector<8x1xf32>
    %197 = arith.maximumf %195, %196 : vector<8x1xf32>
    %c0_141 = arith.constant 0 : index
    %c0_142 = arith.constant 0 : index
    %198 = vector.load %arg7[%c0_141, %c0_142] : memref<8x1xf32, #tpu.memory_space<vmem>>, vector<8x1xf32>
    %cst_143 = arith.constant 9.99999974E-6 : f32
    %199 = vector.broadcast %cst_143 : f32 to vector<8x1xf32>
    %200 = arith.addf %197, %199 : vector<8x1xf32>
    %201 = math.rsqrt %200 : vector<8x1xf32>
    %202 = arith.mulf %198, %201 : vector<8x1xf32>
    %c0_144 = arith.constant 0 : index
    %c0_145 = arith.constant 0 : index
    %203 = vector.load %arg8[%c0_144, %c0_145] : memref<8x1xf32, #tpu.memory_space<vmem>>, vector<8x1xf32>
    %204 = arith.mulf %191, %202 : vector<8x1xf32>
    %205 = arith.subf %203, %204 : vector<8x1xf32>
    %c0_146 = arith.constant 0 : index
    %c128_147 = arith.constant 128 : index
    %206 = vector.load %arg15[%c0_146, %c128_147] : memref<8x512xf32, #tpu.memory_space<vmem>>, vector<8x128xf32>
    %207 = vector.broadcast %202 : vector<8x1xf32> to vector<8x128xf32>
    %208 = arith.mulf %206, %207 : vector<8x128xf32>
    %209 = vector.broadcast %205 : vector<8x1xf32> to vector<8x128xf32>
    %210 = arith.addf %208, %209 : vector<8x128xf32>
    %cst_148 = arith.constant 0.000000e+00 : f32
    %211 = vector.broadcast %cst_148 : f32 to vector<8x128xf32>
    %212 = arith.maximumf %210, %211 : vector<8x128xf32>
    %cst_149 = arith.constant 0.000000e+00 : f32
    %213 = vector.shape_cast %109 : vector<1x128xi1> to vector<1x128xi1>
    %214 = vector.broadcast %213 : vector<1x128xi1> to vector<8x128xi1>
    %215 = vector.broadcast %cst_149 : f32 to vector<8x128xf32>
    %216 = arith.select %214, %212, %215 : vector<8x128xi1>, vector<8x128xf32>
    %c0_150 = arith.constant 0 : index
    %c128_151 = arith.constant 128 : index
    %217 = vector.load %arg15[%c0_150, %c128_151] : memref<8x512xf32, #tpu.memory_space<vmem>>, vector<8x128xf32>
    tpu.vector_store %arg15[%c0_150, %c128_151], %216 {strides = array<i32>} : memref<8x512xf32, #tpu.memory_space<vmem>>, vector<8x128xf32>,
    %c0_152 = arith.constant 0 : index
    %c384_153 = arith.constant 384 : index
    %218 = vector.load %arg15[%c0_152, %c384_153] : memref<8x512xf32, #tpu.memory_space<vmem>>, vector<8x128xf32>
    %219 = vector.broadcast %202 : vector<8x1xf32> to vector<8x128xf32>
    %220 = arith.mulf %218, %219 : vector<8x128xf32>
    %221 = vector.broadcast %205 : vector<8x1xf32> to vector<8x128xf32>
    %222 = arith.addf %220, %221 : vector<8x128xf32>
    %cst_154 = arith.constant 0.000000e+00 : f32
    %223 = vector.broadcast %cst_154 : f32 to vector<8x128xf32>
    %224 = arith.maximumf %222, %223 : vector<8x128xf32>
    %cst_155 = arith.constant 0.000000e+00 : f32
    %225 = vector.shape_cast %109 : vector<1x128xi1> to vector<1x128xi1>
    %226 = vector.broadcast %225 : vector<1x128xi1> to vector<8x128xi1>
    %227 = vector.broadcast %cst_155 : f32 to vector<8x128xf32>
    %228 = arith.select %226, %224, %227 : vector<8x128xi1>, vector<8x128xf32>
    %c0_156 = arith.constant 0 : index
    %c384_157 = arith.constant 384 : index
    %229 = vector.load %arg15[%c0_156, %c384_157] : memref<8x512xf32, #tpu.memory_space<vmem>>, vector<8x128xf32>
    tpu.vector_store %arg15[%c0_156, %c384_157], %228 {strides = array<i32>} : memref<8x512xf32, #tpu.memory_space<vmem>>, vector<8x128xf32>,
    %c50_i32 = arith.constant 50 : i32
    %230 = vector.broadcast %c50_i32 : i32 to vector<1x128xi32>
    %231 = arith.cmpi slt, %5, %230 : vector<1x128xi32>
    %cst_158 = arith.constant 0.000000e+00 : f32
    %232 = vector.broadcast %cst_158 : f32 to vector<8x1xf32>
    %cst_159 = arith.constant 0.000000e+00 : f32
    %233 = vector.broadcast %cst_159 : f32 to vector<8x1xf32>
    %c0_160 = arith.constant 0 : index
    %c0_161 = arith.constant 0 : index
    %c0_162 = arith.constant 0 : index
    %234 = vector.load %arg9[%c0_160, %c0_161, %c0_162] : memref<7x8x8xf32, #tpu.memory_space<vmem>>, vector<1x8x8xf32>
    %235 = vector.shape_cast %234 : vector<1x8x8xf32> to vector<8x8xf32>
    %c0_163 = arith.constant 0 : index
    %c104 = arith.constant 104 : index
    %236 = vector.load %arg15[%c0_163, %c104] : memref<8x512xf32, #tpu.memory_space<vmem>>, vector<8x128xf32>
    %cst_164 = arith.constant dense<0.000000e+00> : vector<8x128xf32>
    %237 = tpu.matmul %235, %236, %cst_164 {dimension_numbers = #tpu.dot_dimension_numbers<[1], [0], [0], [1], [0, 0, 1, 1], [], []>} : vector<8x8xf32>, vector<8x128xf32>, vector<8x128xf32> -> vector<8x128xf32>
    %c1_165 = arith.constant 1 : index
    %c0_166 = arith.constant 0 : index
    %c0_167 = arith.constant 0 : index
    %238 = vector.load %arg9[%c1_165, %c0_166, %c0_167] : memref<7x8x8xf32, #tpu.memory_space<vmem>>, vector<1x8x8xf32>
    %239 = vector.shape_cast %238 : vector<1x8x8xf32> to vector<8x8xf32>
    %c0_168 = arith.constant 0 : index
    %c108 = arith.constant 108 : index
    %240 = vector.load %arg15[%c0_168, %c108] : memref<8x512xf32, #tpu.memory_space<vmem>>, vector<8x128xf32>
    %cst_169 = arith.constant dense<0.000000e+00> : vector<8x128xf32>
    %241 = tpu.matmul %239, %240, %cst_169 {dimension_numbers = #tpu.dot_dimension_numbers<[1], [0], [0], [1], [0, 0, 1, 1], [], []>} : vector<8x8xf32>, vector<8x128xf32>, vector<8x128xf32> -> vector<8x128xf32>
    %242 = arith.addf %237, %241 : vector<8x128xf32>
    %c2_170 = arith.constant 2 : index
    %c0_171 = arith.constant 0 : index
    %c0_172 = arith.constant 0 : index
    %243 = vector.load %arg9[%c2_170, %c0_171, %c0_172] : memref<7x8x8xf32, #tpu.memory_space<vmem>>, vector<1x8x8xf32>
    %244 = vector.shape_cast %243 : vector<1x8x8xf32> to vector<8x8xf32>
    %c0_173 = arith.constant 0 : index
    %c112 = arith.constant 112 : index
    %245 = vector.load %arg15[%c0_173, %c112] : memref<8x512xf32, #tpu.memory_space<vmem>>, vector<8x128xf32>
    %cst_174 = arith.constant dense<0.000000e+00> : vector<8x128xf32>
    %246 = tpu.matmul %244, %245, %cst_174 {dimension_numbers = #tpu.dot_dimension_numbers<[1], [0], [0], [1], [0, 0, 1, 1], [], []>} : vector<8x8xf32>, vector<8x128xf32>, vector<8x128xf32> -> vector<8x128xf32>
    %247 = arith.addf %242, %246 : vector<8x128xf32>
    %c3_175 = arith.constant 3 : index
    %c0_176 = arith.constant 0 : index
    %c0_177 = arith.constant 0 : index
    %248 = vector.load %arg9[%c3_175, %c0_176, %c0_177] : memref<7x8x8xf32, #tpu.memory_space<vmem>>, vector<1x8x8xf32>
    %249 = vector.shape_cast %248 : vector<1x8x8xf32> to vector<8x8xf32>
    %c0_178 = arith.constant 0 : index
    %c116 = arith.constant 116 : index
    %250 = vector.load %arg15[%c0_178, %c116] : memref<8x512xf32, #tpu.memory_space<vmem>>, vector<8x128xf32>
    %cst_179 = arith.constant dense<0.000000e+00> : vector<8x128xf32>
    %251 = tpu.matmul %249, %250, %cst_179 {dimension_numbers = #tpu.dot_dimension_numbers<[1], [0], [0], [1], [0, 0, 1, 1], [], []>} : vector<8x8xf32>, vector<8x128xf32>, vector<8x128xf32> -> vector<8x128xf32>
    %252 = arith.addf %247, %251 : vector<8x128xf32>
    %c4_180 = arith.constant 4 : index
    %c0_181 = arith.constant 0 : index
    %c0_182 = arith.constant 0 : index
    %253 = vector.load %arg9[%c4_180, %c0_181, %c0_182] : memref<7x8x8xf32, #tpu.memory_space<vmem>>, vector<1x8x8xf32>
    %254 = vector.shape_cast %253 : vector<1x8x8xf32> to vector<8x8xf32>
    %c0_183 = arith.constant 0 : index
    %c120_184 = arith.constant 120 : index
    %255 = vector.load %arg15[%c0_183, %c120_184] : memref<8x512xf32, #tpu.memory_space<vmem>>, vector<8x128xf32>
    %cst_185 = arith.constant dense<0.000000e+00> : vector<8x128xf32>
    %256 = tpu.matmul %254, %255, %cst_185 {dimension_numbers = #tpu.dot_dimension_numbers<[1], [0], [0], [1], [0, 0, 1, 1], [], []>} : vector<8x8xf32>, vector<8x128xf32>, vector<8x128xf32> -> vector<8x128xf32>
    %257 = arith.addf %252, %256 : vector<8x128xf32>
    %c5 = arith.constant 5 : index
    %c0_186 = arith.constant 0 : index
    %c0_187 = arith.constant 0 : index
    %258 = vector.load %arg9[%c5, %c0_186, %c0_187] : memref<7x8x8xf32, #tpu.memory_space<vmem>>, vector<1x8x8xf32>
    %259 = vector.shape_cast %258 : vector<1x8x8xf32> to vector<8x8xf32>
    %c0_188 = arith.constant 0 : index
    %c124_189 = arith.constant 124 : index
    %260 = vector.load %arg15[%c0_188, %c124_189] : memref<8x512xf32, #tpu.memory_space<vmem>>, vector<8x128xf32>
    %cst_190 = arith.constant dense<0.000000e+00> : vector<8x128xf32>
    %261 = tpu.matmul %259, %260, %cst_190 {dimension_numbers = #tpu.dot_dimension_numbers<[1], [0], [0], [1], [0, 0, 1, 1], [], []>} : vector<8x8xf32>, vector<8x128xf32>, vector<8x128xf32> -> vector<8x128xf32>
    %262 = arith.addf %257, %261 : vector<8x128xf32>
    %c6 = arith.constant 6 : index
    %c0_191 = arith.constant 0 : index
    %c0_192 = arith.constant 0 : index
    %263 = vector.load %arg9[%c6, %c0_191, %c0_192] : memref<7x8x8xf32, #tpu.memory_space<vmem>>, vector<1x8x8xf32>
    %264 = vector.shape_cast %263 : vector<1x8x8xf32> to vector<8x8xf32>
    %c0_193 = arith.constant 0 : index
    %c128_194 = arith.constant 128 : index
    %265 = vector.load %arg15[%c0_193, %c128_194] : memref<8x512xf32, #tpu.memory_space<vmem>>, vector<8x128xf32>
    %cst_195 = arith.constant dense<0.000000e+00> : vector<8x128xf32>
    %266 = tpu.matmul %264, %265, %cst_195 {dimension_numbers = #tpu.dot_dimension_numbers<[1], [0], [0], [1], [0, 0, 1, 1], [], []>} : vector<8x8xf32>, vector<8x128xf32>, vector<8x128xf32> -> vector<8x128xf32>
    %267 = arith.addf %262, %266 : vector<8x128xf32>
    %c0_196 = arith.constant 0 : index
    %c0_197 = arith.constant 0 : index
    %268 = vector.load %arg10[%c0_196, %c0_197] : memref<8x1xf32, #tpu.memory_space<vmem>>, vector<8x1xf32>
    %269 = vector.broadcast %268 : vector<8x1xf32> to vector<8x128xf32>
    %270 = arith.addf %267, %269 : vector<8x128xf32>
    %cst_198 = arith.constant 0.000000e+00 : f32
    %271 = vector.shape_cast %231 : vector<1x128xi1> to vector<1x128xi1>
    %272 = vector.broadcast %271 : vector<1x128xi1> to vector<8x128xi1>
    %273 = vector.broadcast %cst_198 : f32 to vector<8x128xf32>
    %274 = arith.select %272, %270, %273 : vector<8x128xi1>, vector<8x128xf32>
    %cst_199 = arith.constant dense<0.000000e+00> : vector<8xf32>
    %275 = vector.multi_reduction <add>, %274, %cst_199 [1] : vector<8x128xf32> to vector<8xf32>
    %276 = vector.shape_cast %275 : vector<8xf32> to vector<8x1xf32>
    %277 = arith.addf %232, %276 : vector<8x1xf32>
    %278 = arith.mulf %274, %274 : vector<8x128xf32>
    %cst_200 = arith.constant dense<0.000000e+00> : vector<8xf32>
    %279 = vector.multi_reduction <add>, %278, %cst_200 [1] : vector<8x128xf32> to vector<8xf32>
    %280 = vector.shape_cast %279 : vector<8xf32> to vector<8x1xf32>
    %281 = arith.addf %233, %280 : vector<8x1xf32>
    %c0_201 = arith.constant 0 : index
    %c0_202 = arith.constant 0 : index
    %c0_203 = arith.constant 0 : index
    %282 = vector.load %arg13[%c0_201, %c0_202, %c0_203] : memref<2x8x128xf32, #tpu.memory_space<vmem>>, vector<1x8x128xf32>
    %283 = vector.shape_cast %282 : vector<1x8x128xf32> to vector<8x128xf32>
    %284 = vector.shape_cast %274 : vector<8x128xf32> to vector<1x8x128xf32>
    tpu.vector_store %arg13[%c0_201, %c0_202, %c0_203], %284 {strides = array<i32>} : memref<2x8x128xf32, #tpu.memory_space<vmem>>, vector<1x8x128xf32>,
    %c0_204 = arith.constant 0 : index
    %c0_205 = arith.constant 0 : index
    %c0_206 = arith.constant 0 : index
    %285 = vector.load %arg9[%c0_204, %c0_205, %c0_206] : memref<7x8x8xf32, #tpu.memory_space<vmem>>, vector<1x8x8xf32>
    %286 = vector.shape_cast %285 : vector<1x8x8xf32> to vector<8x8xf32>
    %c0_207 = arith.constant 0 : index
    %c360 = arith.constant 360 : index
    %287 = vector.load %arg15[%c0_207, %c360] : memref<8x512xf32, #tpu.memory_space<vmem>>, vector<8x128xf32>
    %cst_208 = arith.constant dense<0.000000e+00> : vector<8x128xf32>
    %288 = tpu.matmul %286, %287, %cst_208 {dimension_numbers = #tpu.dot_dimension_numbers<[1], [0], [0], [1], [0, 0, 1, 1], [], []>} : vector<8x8xf32>, vector<8x128xf32>, vector<8x128xf32> -> vector<8x128xf32>
    %c1_209 = arith.constant 1 : index
    %c0_210 = arith.constant 0 : index
    %c0_211 = arith.constant 0 : index
    %289 = vector.load %arg9[%c1_209, %c0_210, %c0_211] : memref<7x8x8xf32, #tpu.memory_space<vmem>>, vector<1x8x8xf32>
    %290 = vector.shape_cast %289 : vector<1x8x8xf32> to vector<8x8xf32>
    %c0_212 = arith.constant 0 : index
    %c364 = arith.constant 364 : index
    %291 = vector.load %arg15[%c0_212, %c364] : memref<8x512xf32, #tpu.memory_space<vmem>>, vector<8x128xf32>
    %cst_213 = arith.constant dense<0.000000e+00> : vector<8x128xf32>
    %292 = tpu.matmul %290, %291, %cst_213 {dimension_numbers = #tpu.dot_dimension_numbers<[1], [0], [0], [1], [0, 0, 1, 1], [], []>} : vector<8x8xf32>, vector<8x128xf32>, vector<8x128xf32> -> vector<8x128xf32>
    %293 = arith.addf %288, %292 : vector<8x128xf32>
    %c2_214 = arith.constant 2 : index
    %c0_215 = arith.constant 0 : index
    %c0_216 = arith.constant 0 : index
    %294 = vector.load %arg9[%c2_214, %c0_215, %c0_216] : memref<7x8x8xf32, #tpu.memory_space<vmem>>, vector<1x8x8xf32>
    %295 = vector.shape_cast %294 : vector<1x8x8xf32> to vector<8x8xf32>
    %c0_217 = arith.constant 0 : index
    %c368 = arith.constant 368 : index
    %296 = vector.load %arg15[%c0_217, %c368] : memref<8x512xf32, #tpu.memory_space<vmem>>, vector<8x128xf32>
    %cst_218 = arith.constant dense<0.000000e+00> : vector<8x128xf32>
    %297 = tpu.matmul %295, %296, %cst_218 {dimension_numbers = #tpu.dot_dimension_numbers<[1], [0], [0], [1], [0, 0, 1, 1], [], []>} : vector<8x8xf32>, vector<8x128xf32>, vector<8x128xf32> -> vector<8x128xf32>
    %298 = arith.addf %293, %297 : vector<8x128xf32>
    %c3_219 = arith.constant 3 : index
    %c0_220 = arith.constant 0 : index
    %c0_221 = arith.constant 0 : index
    %299 = vector.load %arg9[%c3_219, %c0_220, %c0_221] : memref<7x8x8xf32, #tpu.memory_space<vmem>>, vector<1x8x8xf32>
    %300 = vector.shape_cast %299 : vector<1x8x8xf32> to vector<8x8xf32>
    %c0_222 = arith.constant 0 : index
    %c372 = arith.constant 372 : index
    %301 = vector.load %arg15[%c0_222, %c372] : memref<8x512xf32, #tpu.memory_space<vmem>>, vector<8x128xf32>
    %cst_223 = arith.constant dense<0.000000e+00> : vector<8x128xf32>
    %302 = tpu.matmul %300, %301, %cst_223 {dimension_numbers = #tpu.dot_dimension_numbers<[1], [0], [0], [1], [0, 0, 1, 1], [], []>} : vector<8x8xf32>, vector<8x128xf32>, vector<8x128xf32> -> vector<8x128xf32>
    %303 = arith.addf %298, %302 : vector<8x128xf32>
    %c4_224 = arith.constant 4 : index
    %c0_225 = arith.constant 0 : index
    %c0_226 = arith.constant 0 : index
    %304 = vector.load %arg9[%c4_224, %c0_225, %c0_226] : memref<7x8x8xf32, #tpu.memory_space<vmem>>, vector<1x8x8xf32>
    %305 = vector.shape_cast %304 : vector<1x8x8xf32> to vector<8x8xf32>
    %c0_227 = arith.constant 0 : index
    %c376_228 = arith.constant 376 : index
    %306 = vector.load %arg15[%c0_227, %c376_228] : memref<8x512xf32, #tpu.memory_space<vmem>>, vector<8x128xf32>
    %cst_229 = arith.constant dense<0.000000e+00> : vector<8x128xf32>
    %307 = tpu.matmul %305, %306, %cst_229 {dimension_numbers = #tpu.dot_dimension_numbers<[1], [0], [0], [1], [0, 0, 1, 1], [], []>} : vector<8x8xf32>, vector<8x128xf32>, vector<8x128xf32> -> vector<8x128xf32>
    %308 = arith.addf %303, %307 : vector<8x128xf32>
    %c5_230 = arith.constant 5 : index
    %c0_231 = arith.constant 0 : index
    %c0_232 = arith.constant 0 : index
    %309 = vector.load %arg9[%c5_230, %c0_231, %c0_232] : memref<7x8x8xf32, #tpu.memory_space<vmem>>, vector<1x8x8xf32>
    %310 = vector.shape_cast %309 : vector<1x8x8xf32> to vector<8x8xf32>
    %c0_233 = arith.constant 0 : index
    %c380_234 = arith.constant 380 : index
    %311 = vector.load %arg15[%c0_233, %c380_234] : memref<8x512xf32, #tpu.memory_space<vmem>>, vector<8x128xf32>
    %cst_235 = arith.constant dense<0.000000e+00> : vector<8x128xf32>
    %312 = tpu.matmul %310, %311, %cst_235 {dimension_numbers = #tpu.dot_dimension_numbers<[1], [0], [0], [1], [0, 0, 1, 1], [], []>} : vector<8x8xf32>, vector<8x128xf32>, vector<8x128xf32> -> vector<8x128xf32>
    %313 = arith.addf %308, %312 : vector<8x128xf32>
    %c6_236 = arith.constant 6 : index
    %c0_237 = arith.constant 0 : index
    %c0_238 = arith.constant 0 : index
    %314 = vector.load %arg9[%c6_236, %c0_237, %c0_238] : memref<7x8x8xf32, #tpu.memory_space<vmem>>, vector<1x8x8xf32>
    %315 = vector.shape_cast %314 : vector<1x8x8xf32> to vector<8x8xf32>
    %c0_239 = arith.constant 0 : index
    %c384_240 = arith.constant 384 : index
    %316 = vector.load %arg15[%c0_239, %c384_240] : memref<8x512xf32, #tpu.memory_space<vmem>>, vector<8x128xf32>
    %cst_241 = arith.constant dense<0.000000e+00> : vector<8x128xf32>
    %317 = tpu.matmul %315, %316, %cst_241 {dimension_numbers = #tpu.dot_dimension_numbers<[1], [0], [0], [1], [0, 0, 1, 1], [], []>} : vector<8x8xf32>, vector<8x128xf32>, vector<8x128xf32> -> vector<8x128xf32>
    %318 = arith.addf %313, %317 : vector<8x128xf32>
    %c0_242 = arith.constant 0 : index
    %c0_243 = arith.constant 0 : index
    %319 = vector.load %arg10[%c0_242, %c0_243] : memref<8x1xf32, #tpu.memory_space<vmem>>, vector<8x1xf32>
    %320 = vector.broadcast %319 : vector<8x1xf32> to vector<8x128xf32>
    %321 = arith.addf %318, %320 : vector<8x128xf32>
    %cst_244 = arith.constant 0.000000e+00 : f32
    %322 = vector.shape_cast %231 : vector<1x128xi1> to vector<1x128xi1>
    %323 = vector.broadcast %322 : vector<1x128xi1> to vector<8x128xi1>
    %324 = vector.broadcast %cst_244 : f32 to vector<8x128xf32>
    %325 = arith.select %323, %321, %324 : vector<8x128xi1>, vector<8x128xf32>
    %cst_245 = arith.constant dense<0.000000e+00> : vector<8xf32>
    %326 = vector.multi_reduction <add>, %325, %cst_245 [1] : vector<8x128xf32> to vector<8xf32>
    %327 = vector.shape_cast %326 : vector<8xf32> to vector<8x1xf32>
    %328 = arith.addf %277, %327 : vector<8x1xf32>
    %329 = arith.mulf %325, %325 : vector<8x128xf32>
    %cst_246 = arith.constant dense<0.000000e+00> : vector<8xf32>
    %330 = vector.multi_reduction <add>, %329, %cst_246 [1] : vector<8x128xf32> to vector<8xf32>
    %331 = vector.shape_cast %330 : vector<8xf32> to vector<8x1xf32>
    %332 = arith.addf %281, %331 : vector<8x1xf32>
    %c1_247 = arith.constant 1 : index
    %c0_248 = arith.constant 0 : index
    %c0_249 = arith.constant 0 : index
    %333 = vector.load %arg13[%c1_247, %c0_248, %c0_249] : memref<2x8x128xf32, #tpu.memory_space<vmem>>, vector<1x8x128xf32>
    %334 = vector.shape_cast %333 : vector<1x8x128xf32> to vector<8x128xf32>
    %335 = vector.shape_cast %325 : vector<8x128xf32> to vector<1x8x128xf32>
    tpu.vector_store %arg13[%c1_247, %c0_248, %c0_249], %335 {strides = array<i32>} : memref<2x8x128xf32, #tpu.memory_space<vmem>>, vector<1x8x128xf32>,
    %cst_250 = arith.constant 1.000000e+02 : f32
    %336 = vector.broadcast %cst_250 : f32 to vector<8x1xf32>
    %337 = arith.divf %328, %336 : vector<8x1xf32>
    %cst_251 = arith.constant 1.000000e+02 : f32
    %338 = vector.broadcast %cst_251 : f32 to vector<8x1xf32>
    %339 = arith.divf %332, %338 : vector<8x1xf32>
    %340 = arith.mulf %337, %337 : vector<8x1xf32>
    %341 = arith.subf %339, %340 : vector<8x1xf32>
    %cst_252 = arith.constant 0.000000e+00 : f32
    %342 = vector.broadcast %cst_252 : f32 to vector<8x1xf32>
    %343 = arith.maximumf %341, %342 : vector<8x1xf32>
    %c0_253 = arith.constant 0 : index
    %c0_254 = arith.constant 0 : index
    %344 = vector.load %arg11[%c0_253, %c0_254] : memref<8x1xf32, #tpu.memory_space<vmem>>, vector<8x1xf32>
    %cst_255 = arith.constant 9.99999974E-6 : f32
    %345 = vector.broadcast %cst_255 : f32 to vector<8x1xf32>
    %346 = arith.addf %343, %345 : vector<8x1xf32>
    %347 = math.rsqrt %346 : vector<8x1xf32>
    %348 = arith.mulf %344, %347 : vector<8x1xf32>
    %c0_256 = arith.constant 0 : index
    %c0_257 = arith.constant 0 : index
    %349 = vector.load %arg12[%c0_256, %c0_257] : memref<8x1xf32, #tpu.memory_space<vmem>>, vector<8x1xf32>
    %350 = arith.mulf %337, %348 : vector<8x1xf32>
    %351 = arith.subf %349, %350 : vector<8x1xf32>
    %c0_258 = arith.constant 0 : index
    %c0_259 = arith.constant 0 : index
    %c0_260 = arith.constant 0 : index
    %352 = vector.load %arg13[%c0_258, %c0_259, %c0_260] : memref<2x8x128xf32, #tpu.memory_space<vmem>>, vector<1x8x128xf32>
    %353 = vector.shape_cast %352 : vector<1x8x128xf32> to vector<8x128xf32>
    %354 = vector.broadcast %348 : vector<8x1xf32> to vector<8x128xf32>
    %355 = arith.mulf %353, %354 : vector<8x128xf32>
    %356 = vector.broadcast %351 : vector<8x1xf32> to vector<8x128xf32>
    %357 = arith.addf %355, %356 : vector<8x128xf32>
    %cst_261 = arith.constant 0.000000e+00 : f32
    %358 = vector.broadcast %cst_261 : f32 to vector<8x128xf32>
    %359 = arith.maximumf %357, %358 : vector<8x128xf32>
    %cst_262 = arith.constant 0.000000e+00 : f32
    %360 = vector.shape_cast %231 : vector<1x128xi1> to vector<1x128xi1>
    %361 = vector.broadcast %360 : vector<1x128xi1> to vector<8x128xi1>
    %362 = vector.broadcast %cst_262 : f32 to vector<8x128xf32>
    %363 = arith.select %361, %359, %362 : vector<8x128xi1>, vector<8x128xf32>
    %c0_263 = arith.constant 0 : index
    %c0_264 = arith.constant 0 : index
    %c0_265 = arith.constant 0 : index
    %364 = vector.load %arg13[%c0_263, %c0_264, %c0_265] : memref<2x8x128xf32, #tpu.memory_space<vmem>>, vector<1x8x128xf32>
    %365 = vector.shape_cast %364 : vector<1x8x128xf32> to vector<8x128xf32>
    %366 = vector.shape_cast %363 : vector<8x128xf32> to vector<1x8x128xf32>
    tpu.vector_store %arg13[%c0_263, %c0_264, %c0_265], %366 {strides = array<i32>} : memref<2x8x128xf32, #tpu.memory_space<vmem>>, vector<1x8x128xf32>,
    %c1_266 = arith.constant 1 : index
    %c0_267 = arith.constant 0 : index
    %c0_268 = arith.constant 0 : index
    %367 = vector.load %arg13[%c1_266, %c0_267, %c0_268] : memref<2x8x128xf32, #tpu.memory_space<vmem>>, vector<1x8x128xf32>
    %368 = vector.shape_cast %367 : vector<1x8x128xf32> to vector<8x128xf32>
    %369 = vector.broadcast %348 : vector<8x1xf32> to vector<8x128xf32>
    %370 = arith.mulf %368, %369 : vector<8x128xf32>
    %371 = vector.broadcast %351 : vector<8x1xf32> to vector<8x128xf32>
    %372 = arith.addf %370, %371 : vector<8x128xf32>
    %cst_269 = arith.constant 0.000000e+00 : f32
    %373 = vector.broadcast %cst_269 : f32 to vector<8x128xf32>
    %374 = arith.maximumf %372, %373 : vector<8x128xf32>
    %cst_270 = arith.constant 0.000000e+00 : f32
    %375 = vector.shape_cast %231 : vector<1x128xi1> to vector<1x128xi1>
    %376 = vector.broadcast %375 : vector<1x128xi1> to vector<8x128xi1>
    %377 = vector.broadcast %cst_270 : f32 to vector<8x128xf32>
    %378 = arith.select %376, %374, %377 : vector<8x128xi1>, vector<8x128xf32>
    %c1_271 = arith.constant 1 : index
    %c0_272 = arith.constant 0 : index
    %c0_273 = arith.constant 0 : index
    %379 = vector.load %arg13[%c1_271, %c0_272, %c0_273] : memref<2x8x128xf32, #tpu.memory_space<vmem>>, vector<1x8x128xf32>
    %380 = vector.shape_cast %379 : vector<1x8x128xf32> to vector<8x128xf32>
    %381 = vector.shape_cast %378 : vector<8x128xf32> to vector<1x8x128xf32>
    tpu.vector_store %arg13[%c1_271, %c0_272, %c0_273], %381 {strides = array<i32>} : memref<2x8x128xf32, #tpu.memory_space<vmem>>, vector<1x8x128xf32>,
    return
  }
}

</mosaic_0001>

<llo_original>
// kernel: tpu_custom_call.1
$region0: #{tpu_custom_call.1}
  #allocation0 [shape = 'u32[]', space=smem, size = 0x4, offset = 0x4, fixed_abs, tag = 'smem constant byte address 0x4 - core index']
  #allocation1 [shape = 'u32[144,128]{1,0:T(1,128)}', space=vmem, size = 0x12000, scoped, tag = 'internal scratch']
  #allocation2 [shape = 'f32[8,512]{1,0:T(8,128)}', space=vmem, size = 0x4000, scoped, tag = 'scratch operand']
  #allocation3 [shape = 'f32[8,512]{1,0:T(8,128)}', space=vmem, size = 0x4000, scoped, tag = 'scratch operand']
  %s0 = inlined_call_operand.hbm [shape: f32[8,512], index: 0, kind: input, shape index: {}]
  %s1 = inlined_call_operand.hbm [shape: f32[3,8,8], index: 1, kind: input, shape index: {}]
  %s2 = inlined_call_operand.vmem [shape: f32[8,1], index: 2, kind: input, shape index: {}]
  %s3 = inlined_call_operand.vmem [shape: f32[8,1], index: 3, kind: input, shape index: {}]
  %s4 = inlined_call_operand.vmem [shape: f32[8,1], index: 4, kind: input, shape index: {}]
  %s5 = inlined_call_operand.vmem [shape: f32[5,8,8], index: 5, kind: input, shape index: {}]
  %s6 = inlined_call_operand.vmem [shape: f32[8,1], index: 6, kind: input, shape index: {}]
  %s7 = inlined_call_operand.vmem [shape: f32[8,1], index: 7, kind: input, shape index: {}]
  %s8 = inlined_call_operand.vmem [shape: f32[8,1], index: 8, kind: input, shape index: {}]
  %s9 = inlined_call_operand.vmem [shape: f32[7,8,8], index: 9, kind: input, shape index: {}]
  %s10 = inlined_call_operand.vmem [shape: f32[8,1], index: 10, kind: input, shape index: {}]
  %s11 = inlined_call_operand.vmem [shape: f32[8,1], index: 11, kind: input, shape index: {}]
  %s12 = inlined_call_operand.vmem [shape: f32[8,1], index: 12, kind: input, shape index: {}]
  %s13 = inlined_call_operand.hbm [shape: f32[2,8,128], index: 13, kind: output, shape index: {}]
  %s14 = sld [smem:[#allocation0]]
  $region70: #{tpu_custom_call.1} parent=0
    _
  %s16 = ssub.s32 1, %s14
  %s17 = scalar_select 0, %s16, %s14
  $region1: #{tpu_custom_call.1} parent=0
    #allocation4 [shape = 'u8[16384]{0}', space=vmem, size = 0x4000, scoped, tag = 'input window, operand 0, single buffered']
    #allocation5 [shape = 's32[1]{0}', space=sflag, size = 0x4, scoped, tag = 'scoped memory for tpu_custom_call.1']
    #allocation6 [shape = 's32[1]{0}', space=sflag, size = 0x4, scoped, tag = 'scoped memory for tpu_custom_call.1']
    #allocation7 [shape = 'u8[12288]{0}', space=vmem, size = 0x3000, scoped, tag = 'input window, operand 1, single buffered']
    #allocation8 [shape = 's32[1]{0}', space=sflag, size = 0x4, scoped, tag = 'scoped memory for tpu_custom_call.1']
    #allocation9 [shape = 'u8[8192]{0}', space=vmem, size = 0x2000, scoped, tag = 'output window, operand 0, single buffered']
    %18 = vsyncpa [#allocation5], 0
    %19 = vsyncpa [#allocation8], 0
    %20 = vsyncpa [#allocation6], 0
    // Predicated region
    $region2: #{tpu_custom_call.1} parent=1 // pred_check
      _
    $region3: #{tpu_custom_call.1} parent=1 // pred_check_branch
      %22 = sbr.rel (0) target = $region5
    $region4: #{tpu_custom_call.1} parent=1 // pred_region
      %s24 = ssub.s32 512, 512
      %25 = vsyncadd [#allocation5], %s24
      %s27 = sshll.u32 [#allocation4], 4
      %s28 = int_to_ptr.vmem [resolvable:$true] %s27
      %30 = dma.hbm_to_vmem [thread:$0]  %s0, 512, %s28, [#allocation5]
    $region5: #{tpu_custom_call.1} parent=1 // pred_fallthru
      _
    // Predicated region
    $region6: #{tpu_custom_call.1} parent=1 // pred_check
      _
    $region7: #{tpu_custom_call.1} parent=1 // pred_check_branch
      %32 = sbr.rel (0) target = $region9
    $region8: #{tpu_custom_call.1} parent=1 // pred_region
      %s34 = ssub.s32 384, 384
      %35 = vsyncadd [#allocation8], %s34
      %s36 = sshll.u32 [#allocation7], 4
      %s37 = int_to_ptr.vmem [resolvable:$true] %s36
      %42 = dma.hbm_to_vmem [thread:$0]  %s1, 384, %s37, [#allocation8], 128, 128, 8
    $region9: #{tpu_custom_call.1} parent=1 // pred_fallthru
      _
    // Predicated region
    $region10: #{tpu_custom_call.1} parent=1 // pred_check
      _
    $region11: #{tpu_custom_call.1} parent=1 // pred_check_branch
      %44 = sbr.rel (0) target = $region13
    $region12: #{tpu_custom_call.1} parent=1 // pred_region
      _
    $region13: #{tpu_custom_call.1} parent=1 // pred_fallthru
      _
    // Predicated region
    $region14: #{tpu_custom_call.1} parent=1 // pred_check
      _
    $region15: #{tpu_custom_call.1} parent=1 // pred_check_branch
      %46 = sbr.rel (0) target = $region17
    $region16: #{tpu_custom_call.1} parent=1 // pred_region
      _
    $region17: #{tpu_custom_call.1} parent=1 // pred_fallthru
      _
    // Predicated region
    $region18: #{tpu_custom_call.1} parent=1 // pred_check
      _
    $region19: #{tpu_custom_call.1} parent=1 // pred_check_branch
      %48 = sbr.rel (0) target = $region21
    $region20: #{tpu_custom_call.1} parent=1 // pred_region
      _
    $region21: #{tpu_custom_call.1} parent=1 // pred_fallthru
      _
    // Predicated region
    $region22: #{tpu_custom_call.1} parent=1 // pred_check
      _
    $region23: #{tpu_custom_call.1} parent=1 // pred_check_branch
      %50 = sbr.rel (0) target = $region25
    $region24: #{tpu_custom_call.1} parent=1 // pred_region
      _
    $region25: #{tpu_custom_call.1} parent=1 // pred_fallthru
      _
    // Predicated region
    $region26: #{tpu_custom_call.1} parent=1 // pred_check
      _
    $region27: #{tpu_custom_call.1} parent=1 // pred_check_branch
      %52 = sbr.rel (0) target = $region29
    $region28: #{tpu_custom_call.1} parent=1 // pred_region
      _
    $region29: #{tpu_custom_call.1} parent=1 // pred_fallthru
      _
    // Predicated region
    $region30: #{tpu_custom_call.1} parent=1 // pred_check
      _
    $region31: #{tpu_custom_call.1} parent=1 // pred_check_branch
      %54 = sbr.rel (0) target = $region33
    $region32: #{tpu_custom_call.1} parent=1 // pred_region
      _
    $region33: #{tpu_custom_call.1} parent=1 // pred_fallthru
      _
    // Predicated region
    $region34: #{tpu_custom_call.1} parent=1 // pred_check
      _
    $region35: #{tpu_custom_call.1} parent=1 // pred_check_branch
      %56 = sbr.rel (0) target = $region37
    $region36: #{tpu_custom_call.1} parent=1 // pred_region
      _
    $region37: #{tpu_custom_call.1} parent=1 // pred_fallthru
      _
    // Predicated region
    $region38: #{tpu_custom_call.1} parent=1 // pred_check
      _
    $region39: #{tpu_custom_call.1} parent=1 // pred_check_branch
      %58 = sbr.rel (0) target = $region41
    $region40: #{tpu_custom_call.1} parent=1 // pred_region
      _
    $region41: #{tpu_custom_call.1} parent=1 // pred_fallthru
      _
    // Predicated region
    $region42: #{tpu_custom_call.1} parent=1 // pred_check
      _
    $region43: #{tpu_custom_call.1} parent=1 // pred_check_branch
      %60 = sbr.rel (0) target = $region45
    $region44: #{tpu_custom_call.1} parent=1 // pred_region
      _
    $region45: #{tpu_custom_call.1} parent=1 // pred_fallthru
      _
    // Predicated region
    $region46: #{tpu_custom_call.1} parent=1 // pred_check
      _
    $region47: #{tpu_custom_call.1} parent=1 // pred_check_branch
      %62 = sbr.rel (0) target = $region49
    $region48: #{tpu_custom_call.1} parent=1 // pred_region
      _
    $region49: #{tpu_custom_call.1} parent=1 // pred_fallthru
      _
    // Predicated region
    $region50: #{tpu_custom_call.1} parent=1 // pred_check
      _
    $region51: #{tpu_custom_call.1} parent=1 // pred_check_branch
      %64 = sbr.rel (0) target = $region53
    $region52: #{tpu_custom_call.1} parent=1 // pred_region
      _
    $region53: #{tpu_custom_call.1} parent=1 // pred_fallthru
      _
    // Predicated region
    $region54: #{tpu_custom_call.1} parent=1 // pred_check
      _
    $region55: #{tpu_custom_call.1} parent=1 // pred_check_branch
      %66 = sbr.rel (0) target = $region57
    $region56: #{tpu_custom_call.1} parent=1 // pred_region
      %67 = dma.done [#allocation5], 512
    $region57: #{tpu_custom_call.1} parent=1 // pred_fallthru
      _
    // Predicated region
    $region58: #{tpu_custom_call.1} parent=1 // pred_check
      _
    $region59: #{tpu_custom_call.1} parent=1 // pred_check_branch
      %69 = sbr.rel (0) target = $region61
    $region60: #{tpu_custom_call.1} parent=1 // pred_region
      %70 = dma.done [#allocation8], 384
    $region61: #{tpu_custom_call.1} parent=1 // pred_fallthru
      _
    %71 = vst [vmem:[#allocation2] sm:$0xff] 0.0
    %72 = vst [vmem:[#allocation2 + $0x10] sm:$0xff] 0.0
    %73 = vst [vmem:[#allocation3] sm:$0xff] 0.0
    %74 = vst [vmem:[#allocation3 + $0x10] sm:$0xff] 0.0
    %v75 = vlaneseq
    %v76 = vand.u32 %v75, 127
    %vm77 = vcmp.lt.s32.totalorder %v76, 18
    %v78 = vld [vmem:[#allocation7] sm:$0xff]
    %v79 = vld [vmem:[#allocation4] sm:$0xff]
    %v80 = vld [vmem:[#allocation4 + $0x8] sm:$0xff]
    %s81 = scalar_lea.vmem [#allocation7], 8
    %v82 = vld [vmem:[%s81] sm:$0xff]
    %85 = vrot.lane.b32.xlu0 %v79, 1
    %v86 = vpop.permute.xlu0 %85
    %87 = vrot.lane.b32.xlu0 %v80, 1
    %v88 = vpop.permute.xlu0 %87
    %vm89 = vcmask 7168
    %v90 = vsel %vm89, %v86, %v88
    %vm92 = vcmask 64512
    %v94 = vsel %vm92, %v82, 0
    %96 = vmatprep.subr.mxu0 0.0
    %97 = vmatpush1.msra.mxu0 %v90
    %98 = vmatprep.subr.mxu0 0.0
    %99 = vmatpush1.msra.mxu0 0.0
    %100 = vmatprep.subr.mxu0 0.0
    %101 = vmatpush1.msra.mxu0 0.0
    %102 = vmatprep.subr.mxu0 0.0
    %103 = vmatpush1.msra.mxu0 0.0
    %104 = vmatprep.subr.mxu0 0.0
    %105 = vmatpush1.msra.mxu0 0.0
    %106 = vmatprep.subr.mxu0 0.0
    %107 = vmatpush1.msra.mxu0 0.0
    %108 = vmatprep.subr.mxu0 0.0
    %109 = vmatpush1.msra.mxu0 0.0
    %110 = vmatprep.subr.mxu0 0.0
    %111 = vmatpush1.msra.mxu0 0.0
    %112 = vmatprep.subr.mxu0 0.0
    %113 = vmatpush1.msra.mxu0 0.0
    %114 = vmatprep.subr.mxu0 0.0
    %115 = vmatpush1.msra.mxu0 0.0
    %116 = vmatprep.subr.mxu0 0.0
    %117 = vmatpush1.msra.mxu0 0.0
    %118 = vmatprep.subr.mxu0 0.0
    %119 = vmatpush1.msra.mxu0 0.0
    %120 = vmatprep.subr.mxu0 0.0
    %121 = vmatpush1.msra.mxu0 0.0
    %122 = vmatprep.subr.mxu0 0.0
    %123 = vmatpush1.msra.mxu0 0.0
    %124 = vmatprep.subr.mxu0 0.0
    %125 = vmatpush1.msra.mxu0 0.0
    %126 = vmatprep.subr.mxu0 0.0
    %127 = vmatpush1.msra.mxu0 0.0
    %128 = vmatprep.subr.mxu0 0.0
    %129 = vmatpush1.msra.mxu0 0.0
    %130 = vmatprep.subr.mxu0 0.0
    %131 = vmatpush1.msra.mxu0 0.0
    %132 = vmatprep.subr.mxu0 0.0
    %133 = vmatpush1.msra.mxu0 0.0
    %134 = vmatprep.subr.mxu0 0.0
    %135 = vmatpush1.msra.mxu0 0.0
    %136 = vmatprep.subr.mxu0 0.0
    %137 = vmatpush1.msra.mxu0 0.0
    %138 = vmatprep.subr.mxu0 0.0
    %139 = vmatpush1.msra.mxu0 0.0
    %140 = vmatprep.subr.mxu0 0.0
    %141 = vmatpush1.msra.mxu0 0.0
    %142 = vmatprep.subr.mxu0 0.0
    %143 = vmatpush1.msra.mxu0 0.0
    %144 = vmatprep.subr.mxu0 0.0
    %145 = vmatpush1.msra.mxu0 0.0
    %146 = vmatprep.subr.mxu0 0.0
    %147 = vmatpush1.msra.mxu0 0.0
    %148 = vmatprep.subr.mxu0 0.0
    %149 = vmatpush1.msra.mxu0 0.0
    %150 = vmatprep.subr.mxu0 0.0
    %151 = vmatpush1.msra.mxu0 0.0
    %152 = vmatprep.subr.mxu0 0.0
    %153 = vmatpush1.msra.mxu0 0.0
    %154 = vmatprep.subr.mxu0 0.0
    %155 = vmatpush1.msra.mxu0 0.0
    %156 = vmatprep.subr.mxu0 0.0
    %157 = vmatpush1.msra.mxu0 0.0
    %158 = vmatprep.subr.mxu0 0.0
    %159 = vmatpush1.msra.mxu0 0.0
    %160 = vmatprep.mubr.f32.mxu0 0.0
    %161 = vmatmul.mubr.f32.gmra.mrb[0].mxu0 %v94
    %v162 = vpop.f32.mrb[0].mxu0
    %v163 = vadd.f32 0.0, %v162
    %v164 = vpop.f32.mrb[0].mxu0
    %165 = vdwg.mxu0
    %166 = vrot.lane.b32.xlu0 %v79, 2
    %v167 = vpop.permute.xlu0 %166
    %168 = vrot.lane.b32.xlu0 %v80, 2
    %v169 = vpop.permute.xlu0 %168
    %vm170 = vcmask 15360
    %v171 = vsel %vm170, %v167, %v169
    %v174 = vsel %vm92, %v78, 0
    %176 = vmatprep.subr.mxu0 0.0
    %177 = vmatpush1.msra.mxu0 %v171
    %178 = vmatprep.subr.mxu0 0.0
    %179 = vmatpush1.msra.mxu0 0.0
    %180 = vmatprep.subr.mxu0 0.0
    %181 = vmatpush1.msra.mxu0 0.0
    %182 = vmatprep.subr.mxu0 0.0
    %183 = vmatpush1.msra.mxu0 0.0
    %184 = vmatprep.subr.mxu0 0.0
    %185 = vmatpush1.msra.mxu0 0.0
    %186 = vmatprep.subr.mxu0 0.0
    %187 = vmatpush1.msra.mxu0 0.0
    %188 = vmatprep.subr.mxu0 0.0
    %189 = vmatpush1.msra.mxu0 0.0
    %190 = vmatprep.subr.mxu0 0.0
    %191 = vmatpush1.msra.mxu0 0.0
    %192 = vmatprep.subr.mxu0 0.0
    %193 = vmatpush1.msra.mxu0 0.0
    %194 = vmatprep.subr.mxu0 0.0
    %195 = vmatpush1.msra.mxu0 0.0
    %196 = vmatprep.subr.mxu0 0.0
    %197 = vmatpush1.msra.mxu0 0.0
    %198 = vmatprep.subr.mxu0 0.0
    %199 = vmatpush1.msra.mxu0 0.0
    %200 = vmatprep.subr.mxu0 0.0
    %201 = vmatpush1.msra.mxu0 0.0
    %202 = vmatprep.subr.mxu0 0.0
    %203 = vmatpush1.msra.mxu0 0.0
    %204 = vmatprep.subr.mxu0 0.0
    %205 = vmatpush1.msra.mxu0 0.0
    %206 = vmatprep.subr.mxu0 0.0
    %207 = vmatpush1.msra.mxu0 0.0
    %208 = vmatprep.subr.mxu0 0.0
    %209 = vmatpush1.msra.mxu0 0.0
    %210 = vmatprep.subr.mxu0 0.0
    %211 = vmatpush1.msra.mxu0 0.0
    %212 = vmatprep.subr.mxu0 0.0
    %213 = vmatpush1.msra.mxu0 0.0
    %214 = vmatprep.subr.mxu0 0.0
    %215 = vmatpush1.msra.mxu0 0.0
    %216 = vmatprep.subr.mxu0 0.0
    %217 = vmatpush1.msra.mxu0 0.0
    %218 = vmatprep.subr.mxu0 0.0
    %219 = vmatpush1.msra.mxu0 0.0
    %220 = vmatprep.subr.mxu0 0.0
    %221 = vmatpush1.msra.mxu0 0.0
    %222 = vmatprep.subr.mxu0 0.0
    %223 = vmatpush1.msra.mxu0 0.0
    %224 = vmatprep.subr.mxu0 0.0
    %225 = vmatpush1.msra.mxu0 0.0
    %226 = vmatprep.subr.mxu0 0.0
    %227 = vmatpush1.msra.mxu0 0.0
    %228 = vmatprep.subr.mxu0 0.0
    %229 = vmatpush1.msra.mxu0 0.0
    %230 = vmatprep.subr.mxu0 0.0
    %231 = vmatpush1.msra.mxu0 0.0
    %232 = vmatprep.subr.mxu0 0.0
    %233 = vmatpush1.msra.mxu0 0.0
    %234 = vmatprep.subr.mxu0 0.0
    %235 = vmatpush1.msra.mxu0 0.0
    %236 = vmatprep.subr.mxu0 0.0
    %237 = vmatpush1.msra.mxu0 0.0
    %238 = vmatprep.subr.mxu0 0.0
    %239 = vmatpush1.msra.mxu0 0.0
    %240 = vmatprep.mubr.f32.mxu0 0.0
    %241 = vmatmul.mubr.f32.gmra.mrb[0].mxu0 %v174
    %v242 = vpop.f32.mrb[0].mxu0
    %v243 = vadd.f32 %v163, %v242
    %v244 = vpop.f32.mrb[0].mxu0
    %245 = vdwg.mxu0
    %s246 = scalar_lea.vmem [#allocation7], 16
    %v247 = vld [vmem:[%s246] sm:$0xff]
    %v249 = vsel %vm92, %v247, 0
    %251 = vmatprep.subr.mxu0 0.0
    %252 = vmatpush1.msra.mxu0 %v80
    %253 = vmatprep.subr.mxu0 0.0
    %254 = vmatpush1.msra.mxu0 0.0
    %255 = vmatprep.subr.mxu0 0.0
    %256 = vmatpush1.msra.mxu0 0.0
    %257 = vmatprep.subr.mxu0 0.0
    %258 = vmatpush1.msra.mxu0 0.0
    %259 = vmatprep.subr.mxu0 0.0
    %260 = vmatpush1.msra.mxu0 0.0
    %261 = vmatprep.subr.mxu0 0.0
    %262 = vmatpush1.msra.mxu0 0.0
    %263 = vmatprep.subr.mxu0 0.0
    %264 = vmatpush1.msra.mxu0 0.0
    %265 = vmatprep.subr.mxu0 0.0
    %266 = vmatpush1.msra.mxu0 0.0
    %267 = vmatprep.subr.mxu0 0.0
    %268 = vmatpush1.msra.mxu0 0.0
    %269 = vmatprep.subr.mxu0 0.0
    %270 = vmatpush1.msra.mxu0 0.0
    %271 = vmatprep.subr.mxu0 0.0
    %272 = vmatpush1.msra.mxu0 0.0
    %273 = vmatprep.subr.mxu0 0.0
    %274 = vmatpush1.msra.mxu0 0.0
    %275 = vmatprep.subr.mxu0 0.0
    %276 = vmatpush1.msra.mxu0 0.0
    %277 = vmatprep.subr.mxu0 0.0
    %278 = vmatpush1.msra.mxu0 0.0
    %279 = vmatprep.subr.mxu0 0.0
    %280 = vmatpush1.msra.mxu0 0.0
    %281 = vmatprep.subr.mxu0 0.0
    %282 = vmatpush1.msra.mxu0 0.0
    %283 = vmatprep.subr.mxu0 0.0
    %284 = vmatpush1.msra.mxu0 0.0
    %285 = vmatprep.subr.mxu0 0.0
    %286 = vmatpush1.msra.mxu0 0.0
    %287 = vmatprep.subr.mxu0 0.0
    %288 = vmatpush1.msra.mxu0 0.0
    %289 = vmatprep.subr.mxu0 0.0
    %290 = vmatpush1.msra.mxu0 0.0
    %291 = vmatprep.subr.mxu0 0.0
    %292 = vmatpush1.msra.mxu0 0.0
    %293 = vmatprep.subr.mxu0 0.0
    %294 = vmatpush1.msra.mxu0 0.0
    %295 = vmatprep.subr.mxu0 0.0
    %296 = vmatpush1.msra.mxu0 0.0
    %297 = vmatprep.subr.mxu0 0.0
    %298 = vmatpush1.msra.mxu0 0.0
    %299 = vmatprep.subr.mxu0 0.0
    %300 = vmatpush1.msra.mxu0 0.0
    %301 = vmatprep.subr.mxu0 0.0
    %302 = vmatpush1.msra.mxu0 0.0
    %303 = vmatprep.subr.mxu0 0.0
    %304 = vmatpush1.msra.mxu0 0.0
    %305 = vmatprep.subr.mxu0 0.0
    %306 = vmatpush1.msra.mxu0 0.0
    %307 = vmatprep.subr.mxu0 0.0
    %308 = vmatpush1.msra.mxu0 0.0
    %309 = vmatprep.subr.mxu0 0.0
    %310 = vmatpush1.msra.mxu0 0.0
    %311 = vmatprep.subr.mxu0 0.0
    %312 = vmatpush1.msra.mxu0 0.0
    %313 = vmatprep.subr.mxu0 0.0
    %314 = vmatpush1.msra.mxu0 0.0
    %315 = vmatprep.mubr.f32.mxu0 0.0
    %316 = vmatmul.mubr.f32.gmra.mrb[0].mxu0 %v249
    %v317 = vpop.f32.mrb[0].mxu0
    %v318 = vadd.f32 0.0, %v317
    %v319 = vpop.f32.mrb[0].mxu0
    %320 = vdwg.mxu0
    %v321 = vadd.f32 %v243, %v318
    %v322 = vld [vmem:[%s2] sm:$0xff]
    %324 = vset.pattern.permute.xlu0 0
    %325 = vperm.xlu0 %324, %v322
    %v326 = vpop.permute.xlu0 %325
    %v328 = vadd.f32 %v321, %v326
    %v329 = vsel %vm77, 1, 0
    %vm330 = vcmp.eq.s32.totalorder %v329, 1
    %v331 = vsel %vm330, %v328, 0.0
    %332 = vadd.xlane.f32.xlu0 %v331
    %v333 = vpop.xlane.xlu0 %332
    %v334 = vadd.f32 %v333, 0.0
    %v335 = vmul.f32 %v331, %v331
    %336 = vadd.xlane.f32.xlu0 %v335
    %v337 = vpop.xlane.xlu0 %336
    %v338 = vadd.f32 %v337, 0.0
    %339 = vst [vmem:[#allocation2 + $0x8] sm:$0xff] %v331
    %v340 = vld [vmem:[#allocation7] sm:$0xff]
    %v341 = vld [vmem:[#allocation4 + $0x10] sm:$0xff]
    %v342 = vld [vmem:[#allocation4 + $0x18] sm:$0xff]
    %v343 = vld [vmem:[%s81] sm:$0xff]
    %346 = vrot.lane.b32.xlu0 %v341, 1
    %v347 = vpop.permute.xlu0 %346
    %348 = vrot.lane.b32.xlu0 %v342, 1
    %v349 = vpop.permute.xlu0 %348
    %v350 = vsel %vm89, %v347, %v349
    %v353 = vsel %vm92, %v343, 0
    %355 = vmatprep.subr.mxu0 0.0
    %356 = vmatpush1.msra.mxu0 %v350
    %357 = vmatprep.subr.mxu0 0.0
    %358 = vmatpush1.msra.mxu0 0.0
    %359 = vmatprep.subr.mxu0 0.0
    %360 = vmatpush1.msra.mxu0 0.0
    %361 = vmatprep.subr.mxu0 0.0
    %362 = vmatpush1.msra.mxu0 0.0
    %363 = vmatprep.subr.mxu0 0.0
    %364 = vmatpush1.msra.mxu0 0.0
    %365 = vmatprep.subr.mxu0 0.0
    %366 = vmatpush1.msra.mxu0 0.0
    %367 = vmatprep.subr.mxu0 0.0
    %368 = vmatpush1.msra.mxu0 0.0
    %369 = vmatprep.subr.mxu0 0.0
    %370 = vmatpush1.msra.mxu0 0.0
    %371 = vmatprep.subr.mxu0 0.0
    %372 = vmatpush1.msra.mxu0 0.0
    %373 = vmatprep.subr.mxu0 0.0
    %374 = vmatpush1.msra.mxu0 0.0
    %375 = vmatprep.subr.mxu0 0.0
    %376 = vmatpush1.msra.mxu0 0.0
    %377 = vmatprep.subr.mxu0 0.0
    %378 = vmatpush1.msra.mxu0 0.0
    %379 = vmatprep.subr.mxu0 0.0
    %380 = vmatpush1.msra.mxu0 0.0
    %381 = vmatprep.subr.mxu0 0.0
    %382 = vmatpush1.msra.mxu0 0.0
    %383 = vmatprep.subr.mxu0 0.0
    %384 = vmatpush1.msra.mxu0 0.0
    %385 = vmatprep.subr.mxu0 0.0
    %386 = vmatpush1.msra.mxu0 0.0
    %387 = vmatprep.subr.mxu0 0.0
    %388 = vmatpush1.msra.mxu0 0.0
    %389 = vmatprep.subr.mxu0 0.0
    %390 = vmatpush1.msra.mxu0 0.0
    %391 = vmatprep.subr.mxu0 0.0
    %392 = vmatpush1.msra.mxu0 0.0
    %393 = vmatprep.subr.mxu0 0.0
    %394 = vmatpush1.msra.mxu0 0.0
    %395 = vmatprep.subr.mxu0 0.0
    %396 = vmatpush1.msra.mxu0 0.0
    %397 = vmatprep.subr.mxu0 0.0
    %398 = vmatpush1.msra.mxu0 0.0
    %399 = vmatprep.subr.mxu0 0.0
    %400 = vmatpush1.msra.mxu0 0.0
    %401 = vmatprep.subr.mxu0 0.0
    %402 = vmatpush1.msra.mxu0 0.0
    %403 = vmatprep.subr.mxu0 0.0
    %404 = vmatpush1.msra.mxu0 0.0
    %405 = vmatprep.subr.mxu0 0.0
    %406 = vmatpush1.msra.mxu0 0.0
    %407 = vmatprep.subr.mxu0 0.0
    %408 = vmatpush1.msra.mxu0 0.0
    %409 = vmatprep.subr.mxu0 0.0
    %410 = vmatpush1.msra.mxu0 0.0
    %411 = vmatprep.subr.mxu0 0.0
    %412 = vmatpush1.msra.mxu0 0.0
    %413 = vmatprep.subr.mxu0 0.0
    %414 = vmatpush1.msra.mxu0 0.0
    %415 = vmatprep.subr.mxu0 0.0
    %416 = vmatpush1.msra.mxu0 0.0
    %417 = vmatprep.subr.mxu0 0.0
    %418 = vmatpush1.msra.mxu0 0.0
    %419 = vmatprep.mubr.f32.mxu0 0.0
    %420 = vmatmul.mubr.f32.gmra.mrb[0].mxu0 %v353
    %v421 = vpop.f32.mrb[0].mxu0
    %v422 = vadd.f32 0.0, %v421
    %v423 = vpop.f32.mrb[0].mxu0
    %424 = vdwg.mxu0
    %425 = vrot.lane.b32.xlu0 %v341, 2
    %v426 = vpop.permute.xlu0 %425
    %427 = vrot.lane.b32.xlu0 %v342, 2
    %v428 = vpop.permute.xlu0 %427
    %v429 = vsel %vm170, %v426, %v428
    %v432 = vsel %vm92, %v340, 0
    %434 = vmatprep.subr.mxu0 0.0
    %435 = vmatpush1.msra.mxu0 %v429
    %436 = vmatprep.subr.mxu0 0.0
    %437 = vmatpush1.msra.mxu0 0.0
    %438 = vmatprep.subr.mxu0 0.0
    %439 = vmatpush1.msra.mxu0 0.0
    %440 = vmatprep.subr.mxu0 0.0
    %441 = vmatpush1.msra.mxu0 0.0
    %442 = vmatprep.subr.mxu0 0.0
    %443 = vmatpush1.msra.mxu0 0.0
    %444 = vmatprep.subr.mxu0 0.0
    %445 = vmatpush1.msra.mxu0 0.0
    %446 = vmatprep.subr.mxu0 0.0
    %447 = vmatpush1.msra.mxu0 0.0
    %448 = vmatprep.subr.mxu0 0.0
    %449 = vmatpush1.msra.mxu0 0.0
    %450 = vmatprep.subr.mxu0 0.0
    %451 = vmatpush1.msra.mxu0 0.0
    %452 = vmatprep.subr.mxu0 0.0
    %453 = vmatpush1.msra.mxu0 0.0
    %454 = vmatprep.subr.mxu0 0.0
    %455 = vmatpush1.msra.mxu0 0.0
    %456 = vmatprep.subr.mxu0 0.0
    %457 = vmatpush1.msra.mxu0 0.0
    %458 = vmatprep.subr.mxu0 0.0
    %459 = vmatpush1.msra.mxu0 0.0
    %460 = vmatprep.subr.mxu0 0.0
    %461 = vmatpush1.msra.mxu0 0.0
    %462 = vmatprep.subr.mxu0 0.0
    %463 = vmatpush1.msra.mxu0 0.0
    %464 = vmatprep.subr.mxu0 0.0
    %465 = vmatpush1.msra.mxu0 0.0
    %466 = vmatprep.subr.mxu0 0.0
    %467 = vmatpush1.msra.mxu0 0.0
    %468 = vmatprep.subr.mxu0 0.0
    %469 = vmatpush1.msra.mxu0 0.0
    %470 = vmatprep.subr.mxu0 0.0
    %471 = vmatpush1.msra.mxu0 0.0
    %472 = vmatprep.subr.mxu0 0.0
    %473 = vmatpush1.msra.mxu0 0.0
    %474 = vmatprep.subr.mxu0 0.0
    %475 = vmatpush1.msra.mxu0 0.0
    %476 = vmatprep.subr.mxu0 0.0
    %477 = vmatpush1.msra.mxu0 0.0
    %478 = vmatprep.subr.mxu0 0.0
    %479 = vmatpush1.msra.mxu0 0.0
    %480 = vmatprep.subr.mxu0 0.0
    %481 = vmatpush1.msra.mxu0 0.0
    %482 = vmatprep.subr.mxu0 0.0
    %483 = vmatpush1.msra.mxu0 0.0
    %484 = vmatprep.subr.mxu0 0.0
    %485 = vmatpush1.msra.mxu0 0.0
    %486 = vmatprep.subr.mxu0 0.0
    %487 = vmatpush1.msra.mxu0 0.0
    %488 = vmatprep.subr.mxu0 0.0
    %489 = vmatpush1.msra.mxu0 0.0
    %490 = vmatprep.subr.mxu0 0.0
    %491 = vmatpush1.msra.mxu0 0.0
    %492 = vmatprep.subr.mxu0 0.0
    %493 = vmatpush1.msra.mxu0 0.0
    %494 = vmatprep.subr.mxu0 0.0
    %495 = vmatpush1.msra.mxu0 0.0
    %496 = vmatprep.subr.mxu0 0.0
    %497 = vmatpush1.msra.mxu0 0.0
    %498 = vmatprep.mubr.f32.mxu0 0.0
    %499 = vmatmul.mubr.f32.gmra.mrb[0].mxu0 %v432
    %v500 = vpop.f32.mrb[0].mxu0
    %v501 = vadd.f32 %v422, %v500
    %v502 = vpop.f32.mrb[0].mxu0
    %503 = vdwg.mxu0
    %v504 = vld [vmem:[%s246] sm:$0xff]
    %v506 = vsel %vm92, %v504, 0
    %508 = vmatprep.subr.mxu0 0.0
    %509 = vmatpush1.msra.mxu0 %v342
    %510 = vmatprep.subr.mxu0 0.0
    %511 = vmatpush1.msra.mxu0 0.0
    %512 = vmatprep.subr.mxu0 0.0
    %513 = vmatpush1.msra.mxu0 0.0
    %514 = vmatprep.subr.mxu0 0.0
    %515 = vmatpush1.msra.mxu0 0.0
    %516 = vmatprep.subr.mxu0 0.0
    %517 = vmatpush1.msra.mxu0 0.0
    %518 = vmatprep.subr.mxu0 0.0
    %519 = vmatpush1.msra.mxu0 0.0
    %520 = vmatprep.subr.mxu0 0.0
    %521 = vmatpush1.msra.mxu0 0.0
    %522 = vmatprep.subr.mxu0 0.0
    %523 = vmatpush1.msra.mxu0 0.0
    %524 = vmatprep.subr.mxu0 0.0
    %525 = vmatpush1.msra.mxu0 0.0
    %526 = vmatprep.subr.mxu0 0.0
    %527 = vmatpush1.msra.mxu0 0.0
    %528 = vmatprep.subr.mxu0 0.0
    %529 = vmatpush1.msra.mxu0 0.0
    %530 = vmatprep.subr.mxu0 0.0
    %531 = vmatpush1.msra.mxu0 0.0
    %532 = vmatprep.subr.mxu0 0.0
    %533 = vmatpush1.msra.mxu0 0.0
    %534 = vmatprep.subr.mxu0 0.0
    %535 = vmatpush1.msra.mxu0 0.0
    %536 = vmatprep.subr.mxu0 0.0
    %537 = vmatpush1.msra.mxu0 0.0
    %538 = vmatprep.subr.mxu0 0.0
    %539 = vmatpush1.msra.mxu0 0.0
    %540 = vmatprep.subr.mxu0 0.0
    %541 = vmatpush1.msra.mxu0 0.0
    %542 = vmatprep.subr.mxu0 0.0
    %543 = vmatpush1.msra.mxu0 0.0
    %544 = vmatprep.subr.mxu0 0.0
    %545 = vmatpush1.msra.mxu0 0.0
    %546 = vmatprep.subr.mxu0 0.0
    %547 = vmatpush1.msra.mxu0 0.0
    %548 = vmatprep.subr.mxu0 0.0
    %549 = vmatpush1.msra.mxu0 0.0
    %550 = vmatprep.subr.mxu0 0.0
    %551 = vmatpush1.msra.mxu0 0.0
    %552 = vmatprep.subr.mxu0 0.0
    %553 = vmatpush1.msra.mxu0 0.0
    %554 = vmatprep.subr.mxu0 0.0
    %555 = vmatpush1.msra.mxu0 0.0
    %556 = vmatprep.subr.mxu0 0.0
    %557 = vmatpush1.msra.mxu0 0.0
    %558 = vmatprep.subr.mxu0 0.0
    %559 = vmatpush1.msra.mxu0 0.0
    %560 = vmatprep.subr.mxu0 0.0
    %561 = vmatpush1.msra.mxu0 0.0
    %562 = vmatprep.subr.mxu0 0.0
    %563 = vmatpush1.msra.mxu0 0.0
    %564 = vmatprep.subr.mxu0 0.0
    %565 = vmatpush1.msra.mxu0 0.0
    %566 = vmatprep.subr.mxu0 0.0
    %567 = vmatpush1.msra.mxu0 0.0
    %568 = vmatprep.subr.mxu0 0.0
    %569 = vmatpush1.msra.mxu0 0.0
    %570 = vmatprep.subr.mxu0 0.0
    %571 = vmatpush1.msra.mxu0 0.0
    %572 = vmatprep.mubr.f32.mxu0 0.0
    %573 = vmatmul.mubr.f32.gmra.mrb[0].mxu0 %v506
    %v574 = vpop.f32.mrb[0].mxu0
    %v575 = vadd.f32 0.0, %v574
    %v576 = vpop.f32.mrb[0].mxu0
    %577 = vdwg.mxu0
    %v578 = vadd.f32 %v501, %v575
    %v579 = vld [vmem:[%s2] sm:$0xff]
    %581 = vset.pattern.permute.xlu0 0
    %582 = vperm.xlu0 %581, %v579
    %v583 = vpop.permute.xlu0 %582
    %v585 = vadd.f32 %v578, %v583
    %v586 = vsel %vm330, %v585, 0.0
    %587 = vadd.xlane.f32.xlu0 %v586
    %v588 = vpop.xlane.xlu0 %587
    %v589 = vadd.f32 %v334, %v588
    %v590 = vmul.f32 %v586, %v586
    %591 = vadd.xlane.f32.xlu0 %v590
    %v592 = vpop.xlane.xlu0 %591
    %v593 = vadd.f32 %v338, %v592
    %594 = vst [vmem:[#allocation2 + $0x18] sm:$0xff] %v586
    %v595 = vrcp.pop 36.0
    %v596 = vmul.f32 %v589, %v595
    %v597 = vmul.f32 %v593, %v595
    %v598 = vmul.f32 %v596, %v596
    %v599 = vsub.f32 %v597, %v598
    %v600 = vmax.f32 %v599, 0.0
    %v601 = vld [vmem:[%s3] sm:$0xff]
    %v602 = vadd.f32 %v600, 1e-05
    %v603 = vrsqrt.pop %v602
    %v604 = vmul.f32 %v601, %v603
    %v605 = vld [vmem:[%s4] sm:$0xff]
    %v606 = vmul.f32 %v596, %v604
    %v607 = vsub.f32 %v605, %v606
    %v608 = vld [vmem:[#allocation2 + $0x8] sm:$0xff]
    %610 = vset.pattern.permute.xlu0 0
    %611 = vperm.xlu0 %610, %v604
    %v612 = vpop.permute.xlu0 %611
    %v614 = vmul.f32 %v608, %v612
    %616 = vset.pattern.permute.xlu0 0
    %617 = vperm.xlu0 %616, %v607
    %v618 = vpop.permute.xlu0 %617
    %v620 = vadd.f32 %v614, %v618
    %v621 = vmax.f32 %v620, 0.0
    %v622 = vsel %vm330, %v621, 0.0
    %623 = vst [vmem:[#allocation2 + $0x8] sm:$0xff] %v622
    %v624 = vld [vmem:[#allocation2 + $0x18] sm:$0xff]
    %v625 = vmul.f32 %v624, %v612
    %v626 = vadd.f32 %v625, %v618
    %v627 = vmax.f32 %v626, 0.0
    %v628 = vsel %vm330, %v627, 0.0
    %629 = vst [vmem:[#allocation2 + $0x18] sm:$0xff] %v628
    %vm630 = vcmp.lt.s32.totalorder %v76, 26
    %v631 = vld [vmem:[%s5] sm:$0xff]
    %v632 = vld [vmem:[#allocation2] sm:$0xff]
    %v633 = vld [vmem:[#allocation2 + $0x8] sm:$0xff]
    %s634 = scalar_lea.vmem %s5, 8
    %v635 = vld [vmem:[%s634] sm:$0xff]
    %638 = vrot.lane.b32.xlu0 %v632, 6
    %v639 = vpop.permute.xlu0 %638
    %640 = vrot.lane.b32.xlu0 %v633, 6
    %v641 = vpop.permute.xlu0 %640
    %vm642 = vcmask 48128
    %v643 = vsel %vm642, %v639, %v641
    %v646 = vsel %vm92, %v635, 0
    %648 = vmatprep.subr.mxu0 0.0
    %649 = vmatpush1.msra.mxu0 %v643
    %650 = vmatprep.subr.mxu0 0.0
    %651 = vmatpush1.msra.mxu0 0.0
    %652 = vmatprep.subr.mxu0 0.0
    %653 = vmatpush1.msra.mxu0 0.0
    %654 = vmatprep.subr.mxu0 0.0
    %655 = vmatpush1.msra.mxu0 0.0
    %656 = vmatprep.subr.mxu0 0.0
    %657 = vmatpush1.msra.mxu0 0.0
    %658 = vmatprep.subr.mxu0 0.0
    %659 = vmatpush1.msra.mxu0 0.0
    %660 = vmatprep.subr.mxu0 0.0
    %661 = vmatpush1.msra.mxu0 0.0
    %662 = vmatprep.subr.mxu0 0.0
    %663 = vmatpush1.msra.mxu0 0.0
    %664 = vmatprep.subr.mxu0 0.0
    %665 = vmatpush1.msra.mxu0 0.0
    %666 = vmatprep.subr.mxu0 0.0
    %667 = vmatpush1.msra.mxu0 0.0
    %668 = vmatprep.subr.mxu0 0.0
    %669 = vmatpush1.msra.mxu0 0.0
    %670 = vmatprep.subr.mxu0 0.0
    %671 = vmatpush1.msra.mxu0 0.0
    %672 = vmatprep.subr.mxu0 0.0
    %673 = vmatpush1.msra.mxu0 0.0
    %674 = vmatprep.subr.mxu0 0.0
    %675 = vmatpush1.msra.mxu0 0.0
    %676 = vmatprep.subr.mxu0 0.0
    %677 = vmatpush1.msra.mxu0 0.0
    %678 = vmatprep.subr.mxu0 0.0
    %679 = vmatpush1.msra.mxu0 0.0
    %680 = vmatprep.subr.mxu0 0.0
    %681 = vmatpush1.msra.mxu0 0.0
    %682 = vmatprep.subr.mxu0 0.0
    %683 = vmatpush1.msra.mxu0 0.0
    %684 = vmatprep.subr.mxu0 0.0
    %685 = vmatpush1.msra.mxu0 0.0
    %686 = vmatprep.subr.mxu0 0.0
    %687 = vmatpush1.msra.mxu0 0.0
    %688 = vmatprep.subr.mxu0 0.0
    %689 = vmatpush1.msra.mxu0 0.0
    %690 = vmatprep.subr.mxu0 0.0
    %691 = vmatpush1.msra.mxu0 0.0
    %692 = vmatprep.subr.mxu0 0.0
    %693 = vmatpush1.msra.mxu0 0.0
    %694 = vmatprep.subr.mxu0 0.0
    %695 = vmatpush1.msra.mxu0 0.0
    %696 = vmatprep.subr.mxu0 0.0
    %697 = vmatpush1.msra.mxu0 0.0
    %698 = vmatprep.subr.mxu0 0.0
    %699 = vmatpush1.msra.mxu0 0.0
    %700 = vmatprep.subr.mxu0 0.0
    %701 = vmatpush1.msra.mxu0 0.0
    %702 = vmatprep.subr.mxu0 0.0
    %703 = vmatpush1.msra.mxu0 0.0
    %704 = vmatprep.subr.mxu0 0.0
    %705 = vmatpush1.msra.mxu0 0.0
    %706 = vmatprep.subr.mxu0 0.0
    %707 = vmatpush1.msra.mxu0 0.0
    %708 = vmatprep.subr.mxu0 0.0
    %709 = vmatpush1.msra.mxu0 0.0
    %710 = vmatprep.subr.mxu0 0.0
    %711 = vmatpush1.msra.mxu0 0.0
    %712 = vmatprep.mubr.f32.mxu0 0.0
    %713 = vmatmul.mubr.f32.gmra.mrb[0].mxu0 %v646
    %v714 = vpop.f32.mrb[0].mxu0
    %v715 = vadd.f32 0.0, %v714
    %v716 = vpop.f32.mrb[0].mxu0
    %717 = vdwg.mxu0
    %718 = vrot.lane.b32.xlu0 %v632, 8
    %v719 = vpop.permute.xlu0 %718
    %720 = vrot.lane.b32.xlu0 %v633, 8
    %v721 = vpop.permute.xlu0 %720
    %v722 = vsel %vm92, %v719, %v721
    %v725 = vsel %vm92, %v631, 0
    %727 = vmatprep.subr.mxu0 0.0
    %728 = vmatpush1.msra.mxu0 %v722
    %729 = vmatprep.subr.mxu0 0.0
    %730 = vmatpush1.msra.mxu0 0.0
    %731 = vmatprep.subr.mxu0 0.0
    %732 = vmatpush1.msra.mxu0 0.0
    %733 = vmatprep.subr.mxu0 0.0
    %734 = vmatpush1.msra.mxu0 0.0
    %735 = vmatprep.subr.mxu0 0.0
    %736 = vmatpush1.msra.mxu0 0.0
    %737 = vmatprep.subr.mxu0 0.0
    %738 = vmatpush1.msra.mxu0 0.0
    %739 = vmatprep.subr.mxu0 0.0
    %740 = vmatpush1.msra.mxu0 0.0
    %741 = vmatprep.subr.mxu0 0.0
    %742 = vmatpush1.msra.mxu0 0.0
    %743 = vmatprep.subr.mxu0 0.0
    %744 = vmatpush1.msra.mxu0 0.0
    %745 = vmatprep.subr.mxu0 0.0
    %746 = vmatpush1.msra.mxu0 0.0
    %747 = vmatprep.subr.mxu0 0.0
    %748 = vmatpush1.msra.mxu0 0.0
    %749 = vmatprep.subr.mxu0 0.0
    %750 = vmatpush1.msra.mxu0 0.0
    %751 = vmatprep.subr.mxu0 0.0
    %752 = vmatpush1.msra.mxu0 0.0
    %753 = vmatprep.subr.mxu0 0.0
    %754 = vmatpush1.msra.mxu0 0.0
    %755 = vmatprep.subr.mxu0 0.0
    %756 = vmatpush1.msra.mxu0 0.0
    %757 = vmatprep.subr.mxu0 0.0
    %758 = vmatpush1.msra.mxu0 0.0
    %759 = vmatprep.subr.mxu0 0.0
    %760 = vmatpush1.msra.mxu0 0.0
    %761 = vmatprep.subr.mxu0 0.0
    %762 = vmatpush1.msra.mxu0 0.0
    %763 = vmatprep.subr.mxu0 0.0
    %764 = vmatpush1.msra.mxu0 0.0
    %765 = vmatprep.subr.mxu0 0.0
    %766 = vmatpush1.msra.mxu0 0.0
    %767 = vmatprep.subr.mxu0 0.0
    %768 = vmatpush1.msra.mxu0 0.0
    %769 = vmatprep.subr.mxu0 0.0
    %770 = vmatpush1.msra.mxu0 0.0
    %771 = vmatprep.subr.mxu0 0.0
    %772 = vmatpush1.msra.mxu0 0.0
    %773 = vmatprep.subr.mxu0 0.0
    %774 = vmatpush1.msra.mxu0 0.0
    %775 = vmatprep.subr.mxu0 0.0
    %776 = vmatpush1.msra.mxu0 0.0
    %777 = vmatprep.subr.mxu0 0.0
    %778 = vmatpush1.msra.mxu0 0.0
    %779 = vmatprep.subr.mxu0 0.0
    %780 = vmatpush1.msra.mxu0 0.0
    %781 = vmatprep.subr.mxu0 0.0
    %782 = vmatpush1.msra.mxu0 0.0
    %783 = vmatprep.subr.mxu0 0.0
    %784 = vmatpush1.msra.mxu0 0.0
    %785 = vmatprep.subr.mxu0 0.0
    %786 = vmatpush1.msra.mxu0 0.0
    %787 = vmatprep.subr.mxu0 0.0
    %788 = vmatpush1.msra.mxu0 0.0
    %789 = vmatprep.subr.mxu0 0.0
    %790 = vmatpush1.msra.mxu0 0.0
    %791 = vmatprep.mubr.f32.mxu0 0.0
    %792 = vmatmul.mubr.f32.gmra.mrb[0].mxu0 %v725
    %v793 = vpop.f32.mrb[0].mxu0
    %v794 = vadd.f32 %v715, %v793
    %v795 = vpop.f32.mrb[0].mxu0
    %796 = vdwg.mxu0
    %s797 = scalar_lea.vmem %s5, 16
    %v798 = vld [vmem:[%s797] sm:$0xff]
    %799 = vrot.lane.b32.xlu0 %v632, 4
    %v800 = vpop.permute.xlu0 %799
    %801 = vrot.lane.b32.xlu0 %v633, 4
    %v802 = vpop.permute.xlu0 %801
    %vm803 = vcmask 31744
    %v804 = vsel %vm803, %v800, %v802
    %v807 = vsel %vm92, %v798, 0
    %809 = vmatprep.subr.mxu0 0.0
    %810 = vmatpush1.msra.mxu0 %v804
    %811 = vmatprep.subr.mxu0 0.0
    %812 = vmatpush1.msra.mxu0 0.0
    %813 = vmatprep.subr.mxu0 0.0
    %814 = vmatpush1.msra.mxu0 0.0
    %815 = vmatprep.subr.mxu0 0.0
    %816 = vmatpush1.msra.mxu0 0.0
    %817 = vmatprep.subr.mxu0 0.0
    %818 = vmatpush1.msra.mxu0 0.0
    %819 = vmatprep.subr.mxu0 0.0
    %820 = vmatpush1.msra.mxu0 0.0
    %821 = vmatprep.subr.mxu0 0.0
    %822 = vmatpush1.msra.mxu0 0.0
    %823 = vmatprep.subr.mxu0 0.0
    %824 = vmatpush1.msra.mxu0 0.0
    %825 = vmatprep.subr.mxu0 0.0
    %826 = vmatpush1.msra.mxu0 0.0
    %827 = vmatprep.subr.mxu0 0.0
    %828 = vmatpush1.msra.mxu0 0.0
    %829 = vmatprep.subr.mxu0 0.0
    %830 = vmatpush1.msra.mxu0 0.0
    %831 = vmatprep.subr.mxu0 0.0
    %832 = vmatpush1.msra.mxu0 0.0
    %833 = vmatprep.subr.mxu0 0.0
    %834 = vmatpush1.msra.mxu0 0.0
    %835 = vmatprep.subr.mxu0 0.0
    %836 = vmatpush1.msra.mxu0 0.0
    %837 = vmatprep.subr.mxu0 0.0
    %838 = vmatpush1.msra.mxu0 0.0
    %839 = vmatprep.subr.mxu0 0.0
    %840 = vmatpush1.msra.mxu0 0.0
    %841 = vmatprep.subr.mxu0 0.0
    %842 = vmatpush1.msra.mxu0 0.0
    %843 = vmatprep.subr.mxu0 0.0
    %844 = vmatpush1.msra.mxu0 0.0
    %845 = vmatprep.subr.mxu0 0.0
    %846 = vmatpush1.msra.mxu0 0.0
    %847 = vmatprep.subr.mxu0 0.0
    %848 = vmatpush1.msra.mxu0 0.0
    %849 = vmatprep.subr.mxu0 0.0
    %850 = vmatpush1.msra.mxu0 0.0
    %851 = vmatprep.subr.mxu0 0.0
    %852 = vmatpush1.msra.mxu0 0.0
    %853 = vmatprep.subr.mxu0 0.0
    %854 = vmatpush1.msra.mxu0 0.0
    %855 = vmatprep.subr.mxu0 0.0
    %856 = vmatpush1.msra.mxu0 0.0
    %857 = vmatprep.subr.mxu0 0.0
    %858 = vmatpush1.msra.mxu0 0.0
    %859 = vmatprep.subr.mxu0 0.0
    %860 = vmatpush1.msra.mxu0 0.0
    %861 = vmatprep.subr.mxu0 0.0
    %862 = vmatpush1.msra.mxu0 0.0
    %863 = vmatprep.subr.mxu0 0.0
    %864 = vmatpush1.msra.mxu0 0.0
    %865 = vmatprep.subr.mxu0 0.0
    %866 = vmatpush1.msra.mxu0 0.0
    %867 = vmatprep.subr.mxu0 0.0
    %868 = vmatpush1.msra.mxu0 0.0
    %869 = vmatprep.subr.mxu0 0.0
    %870 = vmatpush1.msra.mxu0 0.0
    %871 = vmatprep.subr.mxu0 0.0
    %872 = vmatpush1.msra.mxu0 0.0
    %873 = vmatprep.mubr.f32.mxu0 0.0
    %874 = vmatmul.mubr.f32.gmra.mrb[0].mxu0 %v807
    %v875 = vpop.f32.mrb[0].mxu0
    %v876 = vadd.f32 0.0, %v875
    %v877 = vpop.f32.mrb[0].mxu0
    %878 = vdwg.mxu0
    %v879 = vadd.f32 %v794, %v876
    %s880 = scalar_lea.vmem %s5, 24
    %v881 = vld [vmem:[%s880] sm:$0xff]
    %882 = vrot.lane.b32.xlu0 %v632, 2
    %v883 = vpop.permute.xlu0 %882
    %884 = vrot.lane.b32.xlu0 %v633, 2
    %v885 = vpop.permute.xlu0 %884
    %v886 = vsel %vm170, %v883, %v885
    %v889 = vsel %vm92, %v881, 0
    %891 = vmatprep.subr.mxu0 0.0
    %892 = vmatpush1.msra.mxu0 %v886
    %893 = vmatprep.subr.mxu0 0.0
    %894 = vmatpush1.msra.mxu0 0.0
    %895 = vmatprep.subr.mxu0 0.0
    %896 = vmatpush1.msra.mxu0 0.0
    %897 = vmatprep.subr.mxu0 0.0
    %898 = vmatpush1.msra.mxu0 0.0
    %899 = vmatprep.subr.mxu0 0.0
    %900 = vmatpush1.msra.mxu0 0.0
    %901 = vmatprep.subr.mxu0 0.0
    %902 = vmatpush1.msra.mxu0 0.0
    %903 = vmatprep.subr.mxu0 0.0
    %904 = vmatpush1.msra.mxu0 0.0
    %905 = vmatprep.subr.mxu0 0.0
    %906 = vmatpush1.msra.mxu0 0.0
    %907 = vmatprep.subr.mxu0 0.0
    %908 = vmatpush1.msra.mxu0 0.0
    %909 = vmatprep.subr.mxu0 0.0
    %910 = vmatpush1.msra.mxu0 0.0
    %911 = vmatprep.subr.mxu0 0.0
    %912 = vmatpush1.msra.mxu0 0.0
    %913 = vmatprep.subr.mxu0 0.0
    %914 = vmatpush1.msra.mxu0 0.0
    %915 = vmatprep.subr.mxu0 0.0
    %916 = vmatpush1.msra.mxu0 0.0
    %917 = vmatprep.subr.mxu0 0.0
    %918 = vmatpush1.msra.mxu0 0.0
    %919 = vmatprep.subr.mxu0 0.0
    %920 = vmatpush1.msra.mxu0 0.0
    %921 = vmatprep.subr.mxu0 0.0
    %922 = vmatpush1.msra.mxu0 0.0
    %923 = vmatprep.subr.mxu0 0.0
    %924 = vmatpush1.msra.mxu0 0.0
    %925 = vmatprep.subr.mxu0 0.0
    %926 = vmatpush1.msra.mxu0 0.0
    %927 = vmatprep.subr.mxu0 0.0
    %928 = vmatpush1.msra.mxu0 0.0
    %929 = vmatprep.subr.mxu0 0.0
    %930 = vmatpush1.msra.mxu0 0.0
    %931 = vmatprep.subr.mxu0 0.0
    %932 = vmatpush1.msra.mxu0 0.0
    %933 = vmatprep.subr.mxu0 0.0
    %934 = vmatpush1.msra.mxu0 0.0
    %935 = vmatprep.subr.mxu0 0.0
    %936 = vmatpush1.msra.mxu0 0.0
    %937 = vmatprep.subr.mxu0 0.0
    %938 = vmatpush1.msra.mxu0 0.0
    %939 = vmatprep.subr.mxu0 0.0
    %940 = vmatpush1.msra.mxu0 0.0
    %941 = vmatprep.subr.mxu0 0.0
    %942 = vmatpush1.msra.mxu0 0.0
    %943 = vmatprep.subr.mxu0 0.0
    %944 = vmatpush1.msra.mxu0 0.0
    %945 = vmatprep.subr.mxu0 0.0
    %946 = vmatpush1.msra.mxu0 0.0
    %947 = vmatprep.subr.mxu0 0.0
    %948 = vmatpush1.msra.mxu0 0.0
    %949 = vmatprep.subr.mxu0 0.0
    %950 = vmatpush1.msra.mxu0 0.0
    %951 = vmatprep.subr.mxu0 0.0
    %952 = vmatpush1.msra.mxu0 0.0
    %953 = vmatprep.subr.mxu0 0.0
    %954 = vmatpush1.msra.mxu0 0.0
    %955 = vmatprep.mubr.f32.mxu0 0.0
    %956 = vmatmul.mubr.f32.gmra.mrb[0].mxu0 %v889
    %v957 = vpop.f32.mrb[0].mxu0
    %v958 = vadd.f32 0.0, %v957
    %v959 = vpop.f32.mrb[0].mxu0
    %960 = vdwg.mxu0
    %v961 = vadd.f32 %v879, %v958
    %s962 = scalar_lea.vmem %s5, 32
    %v963 = vld [vmem:[%s962] sm:$0xff]
    %v965 = vsel %vm92, %v963, 0
    %967 = vmatprep.subr.mxu0 0.0
    %968 = vmatpush1.msra.mxu0 %v633
    %969 = vmatprep.subr.mxu0 0.0
    %970 = vmatpush1.msra.mxu0 0.0
    %971 = vmatprep.subr.mxu0 0.0
    %972 = vmatpush1.msra.mxu0 0.0
    %973 = vmatprep.subr.mxu0 0.0
    %974 = vmatpush1.msra.mxu0 0.0
    %975 = vmatprep.subr.mxu0 0.0
    %976 = vmatpush1.msra.mxu0 0.0
    %977 = vmatprep.subr.mxu0 0.0
    %978 = vmatpush1.msra.mxu0 0.0
    %979 = vmatprep.subr.mxu0 0.0
    %980 = vmatpush1.msra.mxu0 0.0
    %981 = vmatprep.subr.mxu0 0.0
    %982 = vmatpush1.msra.mxu0 0.0
    %983 = vmatprep.subr.mxu0 0.0
    %984 = vmatpush1.msra.mxu0 0.0
    %985 = vmatprep.subr.mxu0 0.0
    %986 = vmatpush1.msra.mxu0 0.0
    %987 = vmatprep.subr.mxu0 0.0
    %988 = vmatpush1.msra.mxu0 0.0
    %989 = vmatprep.subr.mxu0 0.0
    %990 = vmatpush1.msra.mxu0 0.0
    %991 = vmatprep.subr.mxu0 0.0
    %992 = vmatpush1.msra.mxu0 0.0
    %993 = vmatprep.subr.mxu0 0.0
    %994 = vmatpush1.msra.mxu0 0.0
    %995 = vmatprep.subr.mxu0 0.0
    %996 = vmatpush1.msra.mxu0 0.0
    %997 = vmatprep.subr.mxu0 0.0
    %998 = vmatpush1.msra.mxu0 0.0
    %999 = vmatprep.subr.mxu0 0.0
    %1000 = vmatpush1.msra.mxu0 0.0
    %1001 = vmatprep.subr.mxu0 0.0
    %1002 = vmatpush1.msra.mxu0 0.0
    %1003 = vmatprep.subr.mxu0 0.0
    %1004 = vmatpush1.msra.mxu0 0.0
    %1005 = vmatprep.subr.mxu0 0.0
    %1006 = vmatpush1.msra.mxu0 0.0
    %1007 = vmatprep.subr.mxu0 0.0
    %1008 = vmatpush1.msra.mxu0 0.0
    %1009 = vmatprep.subr.mxu0 0.0
    %1010 = vmatpush1.msra.mxu0 0.0
    %1011 = vmatprep.subr.mxu0 0.0
    %1012 = vmatpush1.msra.mxu0 0.0
    %1013 = vmatprep.subr.mxu0 0.0
    %1014 = vmatpush1.msra.mxu0 0.0
    %1015 = vmatprep.subr.mxu0 0.0
    %1016 = vmatpush1.msra.mxu0 0.0
    %1017 = vmatprep.subr.mxu0 0.0
    %1018 = vmatpush1.msra.mxu0 0.0
    %1019 = vmatprep.subr.mxu0 0.0
    %1020 = vmatpush1.msra.mxu0 0.0
    %1021 = vmatprep.subr.mxu0 0.0
    %1022 = vmatpush1.msra.mxu0 0.0
    %1023 = vmatprep.subr.mxu0 0.0
    %1024 = vmatpush1.msra.mxu0 0.0
    %1025 = vmatprep.subr.mxu0 0.0
    %1026 = vmatpush1.msra.mxu0 0.0
    %1027 = vmatprep.subr.mxu0 0.0
    %1028 = vmatpush1.msra.mxu0 0.0
    %1029 = vmatprep.subr.mxu0 0.0
    %1030 = vmatpush1.msra.mxu0 0.0
    %1031 = vmatprep.mubr.f32.mxu0 0.0
    %1032 = vmatmul.mubr.f32.gmra.mrb[0].mxu0 %v965
    %v1033 = vpop.f32.mrb[0].mxu0
    %v1034 = vadd.f32 0.0, %v1033
    %v1035 = vpop.f32.mrb[0].mxu0
    %1036 = vdwg.mxu0
    %v1037 = vadd.f32 %v961, %v1034
    %v1038 = vld [vmem:[%s6] sm:$0xff]
    %1040 = vset.pattern.permute.xlu0 0
    %1041 = vperm.xlu0 %1040, %v1038
    %v1042 = vpop.permute.xlu0 %1041
    %v1044 = vadd.f32 %v1037, %v1042
    %v1045 = vsel %vm630, 1, 0
    %vm1046 = vcmp.eq.s32.totalorder %v1045, 1
    %v1047 = vsel %vm1046, %v1044, 0.0
    %1048 = vadd.xlane.f32.xlu0 %v1047
    %v1049 = vpop.xlane.xlu0 %1048
    %v1050 = vadd.f32 %v1049, 0.0
    %v1051 = vmul.f32 %v1047, %v1047
    %1052 = vadd.xlane.f32.xlu0 %v1051
    %v1053 = vpop.xlane.xlu0 %1052
    %v1054 = vadd.f32 %v1053, 0.0
    %1055 = vst [vmem:[#allocation3 + $0x8] sm:$0xff] %v1047
    %v1056 = vld [vmem:[%s5] sm:$0xff]
    %v1057 = vld [vmem:[#allocation2 + $0x10] sm:$0xff]
    %v1058 = vld [vmem:[#allocation2 + $0x18] sm:$0xff]
    %v1059 = vld [vmem:[%s634] sm:$0xff]
    %1062 = vrot.lane.b32.xlu0 %v1057, 6
    %v1063 = vpop.permute.xlu0 %1062
    %1064 = vrot.lane.b32.xlu0 %v1058, 6
    %v1065 = vpop.permute.xlu0 %1064
    %v1066 = vsel %vm642, %v1063, %v1065
    %v1069 = vsel %vm92, %v1059, 0
    %1071 = vmatprep.subr.mxu0 0.0
    %1072 = vmatpush1.msra.mxu0 %v1066
    %1073 = vmatprep.subr.mxu0 0.0
    %1074 = vmatpush1.msra.mxu0 0.0
    %1075 = vmatprep.subr.mxu0 0.0
    %1076 = vmatpush1.msra.mxu0 0.0
    %1077 = vmatprep.subr.mxu0 0.0
    %1078 = vmatpush1.msra.mxu0 0.0
    %1079 = vmatprep.subr.mxu0 0.0
    %1080 = vmatpush1.msra.mxu0 0.0
    %1081 = vmatprep.subr.mxu0 0.0
    %1082 = vmatpush1.msra.mxu0 0.0
    %1083 = vmatprep.subr.mxu0 0.0
    %1084 = vmatpush1.msra.mxu0 0.0
    %1085 = vmatprep.subr.mxu0 0.0
    %1086 = vmatpush1.msra.mxu0 0.0
    %1087 = vmatprep.subr.mxu0 0.0
    %1088 = vmatpush1.msra.mxu0 0.0
    %1089 = vmatprep.subr.mxu0 0.0
    %1090 = vmatpush1.msra.mxu0 0.0
    %1091 = vmatprep.subr.mxu0 0.0
    %1092 = vmatpush1.msra.mxu0 0.0
    %1093 = vmatprep.subr.mxu0 0.0
    %1094 = vmatpush1.msra.mxu0 0.0
    %1095 = vmatprep.subr.mxu0 0.0
    %1096 = vmatpush1.msra.mxu0 0.0
    %1097 = vmatprep.subr.mxu0 0.0
    %1098 = vmatpush1.msra.mxu0 0.0
    %1099 = vmatprep.subr.mxu0 0.0
    %1100 = vmatpush1.msra.mxu0 0.0
    %1101 = vmatprep.subr.mxu0 0.0
    %1102 = vmatpush1.msra.mxu0 0.0
    %1103 = vmatprep.subr.mxu0 0.0
    %1104 = vmatpush1.msra.mxu0 0.0
    %1105 = vmatprep.subr.mxu0 0.0
    %1106 = vmatpush1.msra.mxu0 0.0
    %1107 = vmatprep.subr.mxu0 0.0
    %1108 = vmatpush1.msra.mxu0 0.0
    %1109 = vmatprep.subr.mxu0 0.0
    %1110 = vmatpush1.msra.mxu0 0.0
    %1111 = vmatprep.subr.mxu0 0.0
    %1112 = vmatpush1.msra.mxu0 0.0
    %1113 = vmatprep.subr.mxu0 0.0
    %1114 = vmatpush1.msra.mxu0 0.0
    %1115 = vmatprep.subr.mxu0 0.0
    %1116 = vmatpush1.msra.mxu0 0.0
    %1117 = vmatprep.subr.mxu0 0.0
    %1118 = vmatpush1.msra.mxu0 0.0
    %1119 = vmatprep.subr.mxu0 0.0
    %1120 = vmatpush1.msra.mxu0 0.0
    %1121 = vmatprep.subr.mxu0 0.0
    %1122 = vmatpush1.msra.mxu0 0.0
    %1123 = vmatprep.subr.mxu0 0.0
    %1124 = vmatpush1.msra.mxu0 0.0
    %1125 = vmatprep.subr.mxu0 0.0
    %1126 = vmatpush1.msra.mxu0 0.0
    %1127 = vmatprep.subr.mxu0 0.0
    %1128 = vmatpush1.msra.mxu0 0.0
    %1129 = vmatprep.subr.mxu0 0.0
    %1130 = vmatpush1.msra.mxu0 0.0
    %1131 = vmatprep.subr.mxu0 0.0
    %1132 = vmatpush1.msra.mxu0 0.0
    %1133 = vmatprep.subr.mxu0 0.0
    %1134 = vmatpush1.msra.mxu0 0.0
    %1135 = vmatprep.mubr.f32.mxu0 0.0
    %1136 = vmatmul.mubr.f32.gmra.mrb[0].mxu0 %v1069
    %v1137 = vpop.f32.mrb[0].mxu0
    %v1138 = vadd.f32 0.0, %v1137
    %v1139 = vpop.f32.mrb[0].mxu0
    %1140 = vdwg.mxu0
    %1141 = vrot.lane.b32.xlu0 %v1057, 8
    %v1142 = vpop.permute.xlu0 %1141
    %1143 = vrot.lane.b32.xlu0 %v1058, 8
    %v1144 = vpop.permute.xlu0 %1143
    %v1145 = vsel %vm92, %v1142, %v1144
    %v1148 = vsel %vm92, %v1056, 0
    %1150 = vmatprep.subr.mxu0 0.0
    %1151 = vmatpush1.msra.mxu0 %v1145
    %1152 = vmatprep.subr.mxu0 0.0
    %1153 = vmatpush1.msra.mxu0 0.0
    %1154 = vmatprep.subr.mxu0 0.0
    %1155 = vmatpush1.msra.mxu0 0.0
    %1156 = vmatprep.subr.mxu0 0.0
    %1157 = vmatpush1.msra.mxu0 0.0
    %1158 = vmatprep.subr.mxu0 0.0
    %1159 = vmatpush1.msra.mxu0 0.0
    %1160 = vmatprep.subr.mxu0 0.0
    %1161 = vmatpush1.msra.mxu0 0.0
    %1162 = vmatprep.subr.mxu0 0.0
    %1163 = vmatpush1.msra.mxu0 0.0
    %1164 = vmatprep.subr.mxu0 0.0
    %1165 = vmatpush1.msra.mxu0 0.0
    %1166 = vmatprep.subr.mxu0 0.0
    %1167 = vmatpush1.msra.mxu0 0.0
    %1168 = vmatprep.subr.mxu0 0.0
    %1169 = vmatpush1.msra.mxu0 0.0
    %1170 = vmatprep.subr.mxu0 0.0
    %1171 = vmatpush1.msra.mxu0 0.0
    %1172 = vmatprep.subr.mxu0 0.0
    %1173 = vmatpush1.msra.mxu0 0.0
    %1174 = vmatprep.subr.mxu0 0.0
    %1175 = vmatpush1.msra.mxu0 0.0
    %1176 = vmatprep.subr.mxu0 0.0
    %1177 = vmatpush1.msra.mxu0 0.0
    %1178 = vmatprep.subr.mxu0 0.0
    %1179 = vmatpush1.msra.mxu0 0.0
    %1180 = vmatprep.subr.mxu0 0.0
    %1181 = vmatpush1.msra.mxu0 0.0
    %1182 = vmatprep.subr.mxu0 0.0
    %1183 = vmatpush1.msra.mxu0 0.0
    %1184 = vmatprep.subr.mxu0 0.0
    %1185 = vmatpush1.msra.mxu0 0.0
    %1186 = vmatprep.subr.mxu0 0.0
    %1187 = vmatpush1.msra.mxu0 0.0
    %1188 = vmatprep.subr.mxu0 0.0
    %1189 = vmatpush1.msra.mxu0 0.0
    %1190 = vmatprep.subr.mxu0 0.0
    %1191 = vmatpush1.msra.mxu0 0.0
    %1192 = vmatprep.subr.mxu0 0.0
    %1193 = vmatpush1.msra.mxu0 0.0
    %1194 = vmatprep.subr.mxu0 0.0
    %1195 = vmatpush1.msra.mxu0 0.0
    %1196 = vmatprep.subr.mxu0 0.0
    %1197 = vmatpush1.msra.mxu0 0.0
    %1198 = vmatprep.subr.mxu0 0.0
    %1199 = vmatpush1.msra.mxu0 0.0
    %1200 = vmatprep.subr.mxu0 0.0
    %1201 = vmatpush1.msra.mxu0 0.0
    %1202 = vmatprep.subr.mxu0 0.0
    %1203 = vmatpush1.msra.mxu0 0.0
    %1204 = vmatprep.subr.mxu0 0.0
    %1205 = vmatpush1.msra.mxu0 0.0
    %1206 = vmatprep.subr.mxu0 0.0
    %1207 = vmatpush1.msra.mxu0 0.0
    %1208 = vmatprep.subr.mxu0 0.0
    %1209 = vmatpush1.msra.mxu0 0.0
    %1210 = vmatprep.subr.mxu0 0.0
    %1211 = vmatpush1.msra.mxu0 0.0
    %1212 = vmatprep.subr.mxu0 0.0
    %1213 = vmatpush1.msra.mxu0 0.0
    %1214 = vmatprep.mubr.f32.mxu0 0.0
    %1215 = vmatmul.mubr.f32.gmra.mrb[0].mxu0 %v1148
    %v1216 = vpop.f32.mrb[0].mxu0
    %v1217 = vadd.f32 %v1138, %v1216
    %v1218 = vpop.f32.mrb[0].mxu0
    %1219 = vdwg.mxu0
    %v1220 = vld [vmem:[%s797] sm:$0xff]
    %1221 = vrot.lane.b32.xlu0 %v1057, 4
    %v1222 = vpop.permute.xlu0 %1221
    %1223 = vrot.lane.b32.xlu0 %v1058, 4
    %v1224 = vpop.permute.xlu0 %1223
    %v1225 = vsel %vm803, %v1222, %v1224
    %v1228 = vsel %vm92, %v1220, 0
    %1230 = vmatprep.subr.mxu0 0.0
    %1231 = vmatpush1.msra.mxu0 %v1225
    %1232 = vmatprep.subr.mxu0 0.0
    %1233 = vmatpush1.msra.mxu0 0.0
    %1234 = vmatprep.subr.mxu0 0.0
    %1235 = vmatpush1.msra.mxu0 0.0
    %1236 = vmatprep.subr.mxu0 0.0
    %1237 = vmatpush1.msra.mxu0 0.0
    %1238 = vmatprep.subr.mxu0 0.0
    %1239 = vmatpush1.msra.mxu0 0.0
    %1240 = vmatprep.subr.mxu0 0.0
    %1241 = vmatpush1.msra.mxu0 0.0
    %1242 = vmatprep.subr.mxu0 0.0
    %1243 = vmatpush1.msra.mxu0 0.0
    %1244 = vmatprep.subr.mxu0 0.0
    %1245 = vmatpush1.msra.mxu0 0.0
    %1246 = vmatprep.subr.mxu0 0.0
    %1247 = vmatpush1.msra.mxu0 0.0
    %1248 = vmatprep.subr.mxu0 0.0
    %1249 = vmatpush1.msra.mxu0 0.0
    %1250 = vmatprep.subr.mxu0 0.0
    %1251 = vmatpush1.msra.mxu0 0.0
    %1252 = vmatprep.subr.mxu0 0.0
    %1253 = vmatpush1.msra.mxu0 0.0
    %1254 = vmatprep.subr.mxu0 0.0
    %1255 = vmatpush1.msra.mxu0 0.0
    %1256 = vmatprep.subr.mxu0 0.0
    %1257 = vmatpush1.msra.mxu0 0.0
    %1258 = vmatprep.subr.mxu0 0.0
    %1259 = vmatpush1.msra.mxu0 0.0
    %1260 = vmatprep.subr.mxu0 0.0
    %1261 = vmatpush1.msra.mxu0 0.0
    %1262 = vmatprep.subr.mxu0 0.0
    %1263 = vmatpush1.msra.mxu0 0.0
    %1264 = vmatprep.subr.mxu0 0.0
    %1265 = vmatpush1.msra.mxu0 0.0
    %1266 = vmatprep.subr.mxu0 0.0
    %1267 = vmatpush1.msra.mxu0 0.0
    %1268 = vmatprep.subr.mxu0 0.0
    %1269 = vmatpush1.msra.mxu0 0.0
    %1270 = vmatprep.subr.mxu0 0.0
    %1271 = vmatpush1.msra.mxu0 0.0
    %1272 = vmatprep.subr.mxu0 0.0
    %1273 = vmatpush1.msra.mxu0 0.0
    %1274 = vmatprep.subr.mxu0 0.0
    %1275 = vmatpush1.msra.mxu0 0.0
    %1276 = vmatprep.subr.mxu0 0.0
    %1277 = vmatpush1.msra.mxu0 0.0
    %1278 = vmatprep.subr.mxu0 0.0
    %1279 = vmatpush1.msra.mxu0 0.0
    %1280 = vmatprep.subr.mxu0 0.0
    %1281 = vmatpush1.msra.mxu0 0.0
    %1282 = vmatprep.subr.mxu0 0.0
    %1283 = vmatpush1.msra.mxu0 0.0
    %1284 = vmatprep.subr.mxu0 0.0
    %1285 = vmatpush1.msra.mxu0 0.0
    %1286 = vmatprep.subr.mxu0 0.0
    %1287 = vmatpush1.msra.mxu0 0.0
    %1288 = vmatprep.subr.mxu0 0.0
    %1289 = vmatpush1.msra.mxu0 0.0
    %1290 = vmatprep.subr.mxu0 0.0
    %1291 = vmatpush1.msra.mxu0 0.0
    %1292 = vmatprep.subr.mxu0 0.0
    %1293 = vmatpush1.msra.mxu0 0.0
    %1294 = vmatprep.mubr.f32.mxu0 0.0
    %1295 = vmatmul.mubr.f32.gmra.mrb[0].mxu0 %v1228
    %v1296 = vpop.f32.mrb[0].mxu0
    %v1297 = vadd.f32 0.0, %v1296
    %v1298 = vpop.f32.mrb[0].mxu0
    %1299 = vdwg.mxu0
    %v1300 = vadd.f32 %v1217, %v1297
    %v1301 = vld [vmem:[%s880] sm:$0xff]
    %1302 = vrot.lane.b32.xlu0 %v1057, 2
    %v1303 = vpop.permute.xlu0 %1302
    %1304 = vrot.lane.b32.xlu0 %v1058, 2
    %v1305 = vpop.permute.xlu0 %1304
    %v1306 = vsel %vm170, %v1303, %v1305
    %v1309 = vsel %vm92, %v1301, 0
    %1311 = vmatprep.subr.mxu0 0.0
    %1312 = vmatpush1.msra.mxu0 %v1306
    %1313 = vmatprep.subr.mxu0 0.0
    %1314 = vmatpush1.msra.mxu0 0.0
    %1315 = vmatprep.subr.mxu0 0.0
    %1316 = vmatpush1.msra.mxu0 0.0
    %1317 = vmatprep.subr.mxu0 0.0
    %1318 = vmatpush1.msra.mxu0 0.0
    %1319 = vmatprep.subr.mxu0 0.0
    %1320 = vmatpush1.msra.mxu0 0.0
    %1321 = vmatprep.subr.mxu0 0.0
    %1322 = vmatpush1.msra.mxu0 0.0
    %1323 = vmatprep.subr.mxu0 0.0
    %1324 = vmatpush1.msra.mxu0 0.0
    %1325 = vmatprep.subr.mxu0 0.0
    %1326 = vmatpush1.msra.mxu0 0.0
    %1327 = vmatprep.subr.mxu0 0.0
    %1328 = vmatpush1.msra.mxu0 0.0
    %1329 = vmatprep.subr.mxu0 0.0
    %1330 = vmatpush1.msra.mxu0 0.0
    %1331 = vmatprep.subr.mxu0 0.0
    %1332 = vmatpush1.msra.mxu0 0.0
    %1333 = vmatprep.subr.mxu0 0.0
    %1334 = vmatpush1.msra.mxu0 0.0
    %1335 = vmatprep.subr.mxu0 0.0
    %1336 = vmatpush1.msra.mxu0 0.0
    %1337 = vmatprep.subr.mxu0 0.0
    %1338 = vmatpush1.msra.mxu0 0.0
    %1339 = vmatprep.subr.mxu0 0.0
    %1340 = vmatpush1.msra.mxu0 0.0
    %1341 = vmatprep.subr.mxu0 0.0
    %1342 = vmatpush1.msra.mxu0 0.0
    %1343 = vmatprep.subr.mxu0 0.0
    %1344 = vmatpush1.msra.mxu0 0.0
    %1345 = vmatprep.subr.mxu0 0.0
    %1346 = vmatpush1.msra.mxu0 0.0
    %1347 = vmatprep.subr.mxu0 0.0
    %1348 = vmatpush1.msra.mxu0 0.0
    %1349 = vmatprep.subr.mxu0 0.0
    %1350 = vmatpush1.msra.mxu0 0.0
    %1351 = vmatprep.subr.mxu0 0.0
    %1352 = vmatpush1.msra.mxu0 0.0
    %1353 = vmatprep.subr.mxu0 0.0
    %1354 = vmatpush1.msra.mxu0 0.0
    %1355 = vmatprep.subr.mxu0 0.0
    %1356 = vmatpush1.msra.mxu0 0.0
    %1357 = vmatprep.subr.mxu0 0.0
    %1358 = vmatpush1.msra.mxu0 0.0
    %1359 = vmatprep.subr.mxu0 0.0
    %1360 = vmatpush1.msra.mxu0 0.0
    %1361 = vmatprep.subr.mxu0 0.0
    %1362 = vmatpush1.msra.mxu0 0.0
    %1363 = vmatprep.subr.mxu0 0.0
    %1364 = vmatpush1.msra.mxu0 0.0
    %1365 = vmatprep.subr.mxu0 0.0
    %1366 = vmatpush1.msra.mxu0 0.0
    %1367 = vmatprep.subr.mxu0 0.0
    %1368 = vmatpush1.msra.mxu0 0.0
    %1369 = vmatprep.subr.mxu0 0.0
    %1370 = vmatpush1.msra.mxu0 0.0
    %1371 = vmatprep.subr.mxu0 0.0
    %1372 = vmatpush1.msra.mxu0 0.0
    %1373 = vmatprep.subr.mxu0 0.0
    %1374 = vmatpush1.msra.mxu0 0.0
    %1375 = vmatprep.mubr.f32.mxu0 0.0
    %1376 = vmatmul.mubr.f32.gmra.mrb[0].mxu0 %v1309
    %v1377 = vpop.f32.mrb[0].mxu0
    %v1378 = vadd.f32 0.0, %v1377
    %v1379 = vpop.f32.mrb[0].mxu0
    %1380 = vdwg.mxu0
    %v1381 = vadd.f32 %v1300, %v1378
    %v1382 = vld [vmem:[%s962] sm:$0xff]
    %v1384 = vsel %vm92, %v1382, 0
    %1386 = vmatprep.subr.mxu0 0.0
    %1387 = vmatpush1.msra.mxu0 %v1058
    %1388 = vmatprep.subr.mxu0 0.0
    %1389 = vmatpush1.msra.mxu0 0.0
    %1390 = vmatprep.subr.mxu0 0.0
    %1391 = vmatpush1.msra.mxu0 0.0
    %1392 = vmatprep.subr.mxu0 0.0
    %1393 = vmatpush1.msra.mxu0 0.0
    %1394 = vmatprep.subr.mxu0 0.0
    %1395 = vmatpush1.msra.mxu0 0.0
    %1396 = vmatprep.subr.mxu0 0.0
    %1397 = vmatpush1.msra.mxu0 0.0
    %1398 = vmatprep.subr.mxu0 0.0
    %1399 = vmatpush1.msra.mxu0 0.0
    %1400 = vmatprep.subr.mxu0 0.0
    %1401 = vmatpush1.msra.mxu0 0.0
    %1402 = vmatprep.subr.mxu0 0.0
    %1403 = vmatpush1.msra.mxu0 0.0
    %1404 = vmatprep.subr.mxu0 0.0
    %1405 = vmatpush1.msra.mxu0 0.0
    %1406 = vmatprep.subr.mxu0 0.0
    %1407 = vmatpush1.msra.mxu0 0.0
    %1408 = vmatprep.subr.mxu0 0.0
    %1409 = vmatpush1.msra.mxu0 0.0
    %1410 = vmatprep.subr.mxu0 0.0
    %1411 = vmatpush1.msra.mxu0 0.0
    %1412 = vmatprep.subr.mxu0 0.0
    %1413 = vmatpush1.msra.mxu0 0.0
    %1414 = vmatprep.subr.mxu0 0.0
    %1415 = vmatpush1.msra.mxu0 0.0
    %1416 = vmatprep.subr.mxu0 0.0
    %1417 = vmatpush1.msra.mxu0 0.0
    %1418 = vmatprep.subr.mxu0 0.0
    %1419 = vmatpush1.msra.mxu0 0.0
    %1420 = vmatprep.subr.mxu0 0.0
    %1421 = vmatpush1.msra.mxu0 0.0
    %1422 = vmatprep.subr.mxu0 0.0
    %1423 = vmatpush1.msra.mxu0 0.0
    %1424 = vmatprep.subr.mxu0 0.0
    %1425 = vmatpush1.msra.mxu0 0.0
    %1426 = vmatprep.subr.mxu0 0.0
    %1427 = vmatpush1.msra.mxu0 0.0
    %1428 = vmatprep.subr.mxu0 0.0
    %1429 = vmatpush1.msra.mxu0 0.0
    %1430 = vmatprep.subr.mxu0 0.0
    %1431 = vmatpush1.msra.mxu0 0.0
    %1432 = vmatprep.subr.mxu0 0.0
    %1433 = vmatpush1.msra.mxu0 0.0
    %1434 = vmatprep.subr.mxu0 0.0
    %1435 = vmatpush1.msra.mxu0 0.0
    %1436 = vmatprep.subr.mxu0 0.0
    %1437 = vmatpush1.msra.mxu0 0.0
    %1438 = vmatprep.subr.mxu0 0.0
    %1439 = vmatpush1.msra.mxu0 0.0
    %1440 = vmatprep.subr.mxu0 0.0
    %1441 = vmatpush1.msra.mxu0 0.0
    %1442 = vmatprep.subr.mxu0 0.0
    %1443 = vmatpush1.msra.mxu0 0.0
    %1444 = vmatprep.subr.mxu0 0.0
    %1445 = vmatpush1.msra.mxu0 0.0
    %1446 = vmatprep.subr.mxu0 0.0
    %1447 = vmatpush1.msra.mxu0 0.0
    %1448 = vmatprep.subr.mxu0 0.0
    %1449 = vmatpush1.msra.mxu0 0.0
    %1450 = vmatprep.mubr.f32.mxu0 0.0
    %1451 = vmatmul.mubr.f32.gmra.mrb[0].mxu0 %v1384
    %v1452 = vpop.f32.mrb[0].mxu0
    %v1453 = vadd.f32 0.0, %v1452
    %v1454 = vpop.f32.mrb[0].mxu0
    %1455 = vdwg.mxu0
    %v1456 = vadd.f32 %v1381, %v1453
    %v1457 = vld [vmem:[%s6] sm:$0xff]
    %1459 = vset.pattern.permute.xlu0 0
    %1460 = vperm.xlu0 %1459, %v1457
    %v1461 = vpop.permute.xlu0 %1460
    %v1463 = vadd.f32 %v1456, %v1461
    %v1464 = vsel %vm1046, %v1463, 0.0
    %1465 = vadd.xlane.f32.xlu0 %v1464
    %v1466 = vpop.xlane.xlu0 %1465
    %v1467 = vadd.f32 %v1050, %v1466
    %v1468 = vmul.f32 %v1464, %v1464
    %1469 = vadd.xlane.f32.xlu0 %v1468
    %v1470 = vpop.xlane.xlu0 %1469
    %v1471 = vadd.f32 %v1054, %v1470
    %1472 = vst [vmem:[#allocation3 + $0x18] sm:$0xff] %v1464
    %v1473 = vrcp.pop 52.0
    %v1474 = vmul.f32 %v1467, %v1473
    %v1475 = vmul.f32 %v1471, %v1473
    %v1476 = vmul.f32 %v1474, %v1474
    %v1477 = vsub.f32 %v1475, %v1476
    %v1478 = vmax.f32 %v1477, 0.0
    %v1479 = vld [vmem:[%s7] sm:$0xff]
    %v1480 = vadd.f32 %v1478, 1e-05
    %v1481 = vrsqrt.pop %v1480
    %v1482 = vmul.f32 %v1479, %v1481
    %v1483 = vld [vmem:[%s8] sm:$0xff]
    %v1484 = vmul.f32 %v1474, %v1482
    %v1485 = vsub.f32 %v1483, %v1484
    %v1486 = vld [vmem:[#allocation3 + $0x8] sm:$0xff]
    %1488 = vset.pattern.permute.xlu0 0
    %1489 = vperm.xlu0 %1488, %v1482
    %v1490 = vpop.permute.xlu0 %1489
    %v1492 = vmul.f32 %v1486, %v1490
    %1494 = vset.pattern.permute.xlu0 0
    %1495 = vperm.xlu0 %1494, %v1485
    %v1496 = vpop.permute.xlu0 %1495
    %v1498 = vadd.f32 %v1492, %v1496
    %v1499 = vmax.f32 %v1498, 0.0
    %v1500 = vsel %vm1046, %v1499, 0.0
    %1501 = vst [vmem:[#allocation3 + $0x8] sm:$0xff] %v1500
    %v1502 = vld [vmem:[#allocation3 + $0x18] sm:$0xff]
    %v1503 = vmul.f32 %v1502, %v1490
    %v1504 = vadd.f32 %v1503, %v1496
    %v1505 = vmax.f32 %v1504, 0.0
    %v1506 = vsel %vm1046, %v1505, 0.0
    %1507 = vst [vmem:[#allocation3 + $0x18] sm:$0xff] %v1506
    %vm1508 = vcmp.lt.s32.totalorder %v76, 50
    %v1509 = vld [vmem:[%s9] sm:$0xff]
    %v1510 = vld [vmem:[#allocation3] sm:$0xff]
    %v1511 = vld [vmem:[#allocation3 + $0x8] sm:$0xff]
    %s1512 = scalar_lea.vmem %s9, 8
    %v1513 = vld [vmem:[%s1512] sm:$0xff]
    %1516 = vrot.lane.b32.xlu0 %v1510, 20
    %v1517 = vpop.permute.xlu0 %1516
    %1518 = vrot.lane.b32.xlu0 %v1511, 20
    %v1519 = vpop.permute.xlu0 %1518
    %vm1520 = vcmask 162816
    %v1521 = vsel %vm1520, %v1517, %v1519
    %v1524 = vsel %vm92, %v1513, 0
    %1526 = vmatprep.subr.mxu0 0.0
    %1527 = vmatpush1.msra.mxu0 %v1521
    %1528 = vmatprep.subr.mxu0 0.0
    %1529 = vmatpush1.msra.mxu0 0.0
    %1530 = vmatprep.subr.mxu0 0.0
    %1531 = vmatpush1.msra.mxu0 0.0
    %1532 = vmatprep.subr.mxu0 0.0
    %1533 = vmatpush1.msra.mxu0 0.0
    %1534 = vmatprep.subr.mxu0 0.0
    %1535 = vmatpush1.msra.mxu0 0.0
    %1536 = vmatprep.subr.mxu0 0.0
    %1537 = vmatpush1.msra.mxu0 0.0
    %1538 = vmatprep.subr.mxu0 0.0
    %1539 = vmatpush1.msra.mxu0 0.0
    %1540 = vmatprep.subr.mxu0 0.0
    %1541 = vmatpush1.msra.mxu0 0.0
    %1542 = vmatprep.subr.mxu0 0.0
    %1543 = vmatpush1.msra.mxu0 0.0
    %1544 = vmatprep.subr.mxu0 0.0
    %1545 = vmatpush1.msra.mxu0 0.0
    %1546 = vmatprep.subr.mxu0 0.0
    %1547 = vmatpush1.msra.mxu0 0.0
    %1548 = vmatprep.subr.mxu0 0.0
    %1549 = vmatpush1.msra.mxu0 0.0
    %1550 = vmatprep.subr.mxu0 0.0
    %1551 = vmatpush1.msra.mxu0 0.0
    %1552 = vmatprep.subr.mxu0 0.0
    %1553 = vmatpush1.msra.mxu0 0.0
    %1554 = vmatprep.subr.mxu0 0.0
    %1555 = vmatpush1.msra.mxu0 0.0
    %1556 = vmatprep.subr.mxu0 0.0
    %1557 = vmatpush1.msra.mxu0 0.0
    %1558 = vmatprep.subr.mxu0 0.0
    %1559 = vmatpush1.msra.mxu0 0.0
    %1560 = vmatprep.subr.mxu0 0.0
    %1561 = vmatpush1.msra.mxu0 0.0
    %1562 = vmatprep.subr.mxu0 0.0
    %1563 = vmatpush1.msra.mxu0 0.0
    %1564 = vmatprep.subr.mxu0 0.0
    %1565 = vmatpush1.msra.mxu0 0.0
    %1566 = vmatprep.subr.mxu0 0.0
    %1567 = vmatpush1.msra.mxu0 0.0
    %1568 = vmatprep.subr.mxu0 0.0
    %1569 = vmatpush1.msra.mxu0 0.0
    %1570 = vmatprep.subr.mxu0 0.0
    %1571 = vmatpush1.msra.mxu0 0.0
    %1572 = vmatprep.subr.mxu0 0.0
    %1573 = vmatpush1.msra.mxu0 0.0
    %1574 = vmatprep.subr.mxu0 0.0
    %1575 = vmatpush1.msra.mxu0 0.0
    %1576 = vmatprep.subr.mxu0 0.0
    %1577 = vmatpush1.msra.mxu0 0.0
    %1578 = vmatprep.subr.mxu0 0.0
    %1579 = vmatpush1.msra.mxu0 0.0
    %1580 = vmatprep.subr.mxu0 0.0
    %1581 = vmatpush1.msra.mxu0 0.0
    %1582 = vmatprep.subr.mxu0 0.0
    %1583 = vmatpush1.msra.mxu0 0.0
    %1584 = vmatprep.subr.mxu0 0.0
    %1585 = vmatpush1.msra.mxu0 0.0
    %1586 = vmatprep.subr.mxu0 0.0
    %1587 = vmatpush1.msra.mxu0 0.0
    %1588 = vmatprep.subr.mxu0 0.0
    %1589 = vmatpush1.msra.mxu0 0.0
    %1590 = vmatprep.mubr.f32.mxu0 0.0
    %1591 = vmatmul.mubr.f32.gmra.mrb[0].mxu0 %v1524
    %v1592 = vpop.f32.mrb[0].mxu0
    %v1593 = vadd.f32 0.0, %v1592
    %v1594 = vpop.f32.mrb[0].mxu0
    %1595 = vdwg.mxu0
    %1596 = vrot.lane.b32.xlu0 %v1510, 24
    %v1597 = vpop.permute.xlu0 %1596
    %1598 = vrot.lane.b32.xlu0 %v1511, 24
    %v1599 = vpop.permute.xlu0 %1598
    %vm1600 = vcmask 195584
    %v1601 = vsel %vm1600, %v1597, %v1599
    %v1604 = vsel %vm92, %v1509, 0
    %1606 = vmatprep.subr.mxu0 0.0
    %1607 = vmatpush1.msra.mxu0 %v1601
    %1608 = vmatprep.subr.mxu0 0.0
    %1609 = vmatpush1.msra.mxu0 0.0
    %1610 = vmatprep.subr.mxu0 0.0
    %1611 = vmatpush1.msra.mxu0 0.0
    %1612 = vmatprep.subr.mxu0 0.0
    %1613 = vmatpush1.msra.mxu0 0.0
    %1614 = vmatprep.subr.mxu0 0.0
    %1615 = vmatpush1.msra.mxu0 0.0
    %1616 = vmatprep.subr.mxu0 0.0
    %1617 = vmatpush1.msra.mxu0 0.0
    %1618 = vmatprep.subr.mxu0 0.0
    %1619 = vmatpush1.msra.mxu0 0.0
    %1620 = vmatprep.subr.mxu0 0.0
    %1621 = vmatpush1.msra.mxu0 0.0
    %1622 = vmatprep.subr.mxu0 0.0
    %1623 = vmatpush1.msra.mxu0 0.0
    %1624 = vmatprep.subr.mxu0 0.0
    %1625 = vmatpush1.msra.mxu0 0.0
    %1626 = vmatprep.subr.mxu0 0.0
    %1627 = vmatpush1.msra.mxu0 0.0
    %1628 = vmatprep.subr.mxu0 0.0
    %1629 = vmatpush1.msra.mxu0 0.0
    %1630 = vmatprep.subr.mxu0 0.0
    %1631 = vmatpush1.msra.mxu0 0.0
    %1632 = vmatprep.subr.mxu0 0.0
    %1633 = vmatpush1.msra.mxu0 0.0
    %1634 = vmatprep.subr.mxu0 0.0
    %1635 = vmatpush1.msra.mxu0 0.0
    %1636 = vmatprep.subr.mxu0 0.0
    %1637 = vmatpush1.msra.mxu0 0.0
    %1638 = vmatprep.subr.mxu0 0.0
    %1639 = vmatpush1.msra.mxu0 0.0
    %1640 = vmatprep.subr.mxu0 0.0
    %1641 = vmatpush1.msra.mxu0 0.0
    %1642 = vmatprep.subr.mxu0 0.0
    %1643 = vmatpush1.msra.mxu0 0.0
    %1644 = vmatprep.subr.mxu0 0.0
    %1645 = vmatpush1.msra.mxu0 0.0
    %1646 = vmatprep.subr.mxu0 0.0
    %1647 = vmatpush1.msra.mxu0 0.0
    %1648 = vmatprep.subr.mxu0 0.0
    %1649 = vmatpush1.msra.mxu0 0.0
    %1650 = vmatprep.subr.mxu0 0.0
    %1651 = vmatpush1.msra.mxu0 0.0
    %1652 = vmatprep.subr.mxu0 0.0
    %1653 = vmatpush1.msra.mxu0 0.0
    %1654 = vmatprep.subr.mxu0 0.0
    %1655 = vmatpush1.msra.mxu0 0.0
    %1656 = vmatprep.subr.mxu0 0.0
    %1657 = vmatpush1.msra.mxu0 0.0
    %1658 = vmatprep.subr.mxu0 0.0
    %1659 = vmatpush1.msra.mxu0 0.0
    %1660 = vmatprep.subr.mxu0 0.0
    %1661 = vmatpush1.msra.mxu0 0.0
    %1662 = vmatprep.subr.mxu0 0.0
    %1663 = vmatpush1.msra.mxu0 0.0
    %1664 = vmatprep.subr.mxu0 0.0
    %1665 = vmatpush1.msra.mxu0 0.0
    %1666 = vmatprep.subr.mxu0 0.0
    %1667 = vmatpush1.msra.mxu0 0.0
    %1668 = vmatprep.subr.mxu0 0.0
    %1669 = vmatpush1.msra.mxu0 0.0
    %1670 = vmatprep.mubr.f32.mxu0 0.0
    %1671 = vmatmul.mubr.f32.gmra.mrb[0].mxu0 %v1604
    %v1672 = vpop.f32.mrb[0].mxu0
    %v1673 = vadd.f32 %v1593, %v1672
    %v1674 = vpop.f32.mrb[0].mxu0
    %1675 = vdwg.mxu0
    %s1676 = scalar_lea.vmem %s9, 16
    %v1677 = vld [vmem:[%s1676] sm:$0xff]
    %1678 = vrot.lane.b32.xlu0 %v1510, 16
    %v1679 = vpop.permute.xlu0 %1678
    %1680 = vrot.lane.b32.xlu0 %v1511, 16
    %v1681 = vpop.permute.xlu0 %1680
    %vm1682 = vcmask 130048
    %v1683 = vsel %vm1682, %v1679, %v1681
    %v1686 = vsel %vm92, %v1677, 0
    %1688 = vmatprep.subr.mxu0 0.0
    %1689 = vmatpush1.msra.mxu0 %v1683
    %1690 = vmatprep.subr.mxu0 0.0
    %1691 = vmatpush1.msra.mxu0 0.0
    %1692 = vmatprep.subr.mxu0 0.0
    %1693 = vmatpush1.msra.mxu0 0.0
    %1694 = vmatprep.subr.mxu0 0.0
    %1695 = vmatpush1.msra.mxu0 0.0
    %1696 = vmatprep.subr.mxu0 0.0
    %1697 = vmatpush1.msra.mxu0 0.0
    %1698 = vmatprep.subr.mxu0 0.0
    %1699 = vmatpush1.msra.mxu0 0.0
    %1700 = vmatprep.subr.mxu0 0.0
    %1701 = vmatpush1.msra.mxu0 0.0
    %1702 = vmatprep.subr.mxu0 0.0
    %1703 = vmatpush1.msra.mxu0 0.0
    %1704 = vmatprep.subr.mxu0 0.0
    %1705 = vmatpush1.msra.mxu0 0.0
    %1706 = vmatprep.subr.mxu0 0.0
    %1707 = vmatpush1.msra.mxu0 0.0
    %1708 = vmatprep.subr.mxu0 0.0
    %1709 = vmatpush1.msra.mxu0 0.0
    %1710 = vmatprep.subr.mxu0 0.0
    %1711 = vmatpush1.msra.mxu0 0.0
    %1712 = vmatprep.subr.mxu0 0.0
    %1713 = vmatpush1.msra.mxu0 0.0
    %1714 = vmatprep.subr.mxu0 0.0
    %1715 = vmatpush1.msra.mxu0 0.0
    %1716 = vmatprep.subr.mxu0 0.0
    %1717 = vmatpush1.msra.mxu0 0.0
    %1718 = vmatprep.subr.mxu0 0.0
    %1719 = vmatpush1.msra.mxu0 0.0
    %1720 = vmatprep.subr.mxu0 0.0
    %1721 = vmatpush1.msra.mxu0 0.0
    %1722 = vmatprep.subr.mxu0 0.0
    %1723 = vmatpush1.msra.mxu0 0.0
    %1724 = vmatprep.subr.mxu0 0.0
    %1725 = vmatpush1.msra.mxu0 0.0
    %1726 = vmatprep.subr.mxu0 0.0
    %1727 = vmatpush1.msra.mxu0 0.0
    %1728 = vmatprep.subr.mxu0 0.0
    %1729 = vmatpush1.msra.mxu0 0.0
    %1730 = vmatprep.subr.mxu0 0.0
    %1731 = vmatpush1.msra.mxu0 0.0
    %1732 = vmatprep.subr.mxu0 0.0
    %1733 = vmatpush1.msra.mxu0 0.0
    %1734 = vmatprep.subr.mxu0 0.0
    %1735 = vmatpush1.msra.mxu0 0.0
    %1736 = vmatprep.subr.mxu0 0.0
    %1737 = vmatpush1.msra.mxu0 0.0
    %1738 = vmatprep.subr.mxu0 0.0
    %1739 = vmatpush1.msra.mxu0 0.0
    %1740 = vmatprep.subr.mxu0 0.0
    %1741 = vmatpush1.msra.mxu0 0.0
    %1742 = vmatprep.subr.mxu0 0.0
    %1743 = vmatpush1.msra.mxu0 0.0
    %1744 = vmatprep.subr.mxu0 0.0
    %1745 = vmatpush1.msra.mxu0 0.0
    %1746 = vmatprep.subr.mxu0 0.0
    %1747 = vmatpush1.msra.mxu0 0.0
    %1748 = vmatprep.subr.mxu0 0.0
    %1749 = vmatpush1.msra.mxu0 0.0
    %1750 = vmatprep.subr.mxu0 0.0
    %1751 = vmatpush1.msra.mxu0 0.0
    %1752 = vmatprep.mubr.f32.mxu0 0.0
    %1753 = vmatmul.mubr.f32.gmra.mrb[0].mxu0 %v1686
    %v1754 = vpop.f32.mrb[0].mxu0
    %v1755 = vadd.f32 0.0, %v1754
    %v1756 = vpop.f32.mrb[0].mxu0
    %1757 = vdwg.mxu0
    %v1758 = vadd.f32 %v1673, %v1755
    %s1759 = scalar_lea.vmem %s9, 24
    %v1760 = vld [vmem:[%s1759] sm:$0xff]
    %1761 = vrot.lane.b32.xlu0 %v1510, 12
    %v1762 = vpop.permute.xlu0 %1761
    %1763 = vrot.lane.b32.xlu0 %v1511, 12
    %v1764 = vpop.permute.xlu0 %1763
    %vm1765 = vcmask 97280
    %v1766 = vsel %vm1765, %v1762, %v1764
    %v1769 = vsel %vm92, %v1760, 0
    %1771 = vmatprep.subr.mxu0 0.0
    %1772 = vmatpush1.msra.mxu0 %v1766
    %1773 = vmatprep.subr.mxu0 0.0
    %1774 = vmatpush1.msra.mxu0 0.0
    %1775 = vmatprep.subr.mxu0 0.0
    %1776 = vmatpush1.msra.mxu0 0.0
    %1777 = vmatprep.subr.mxu0 0.0
    %1778 = vmatpush1.msra.mxu0 0.0
    %1779 = vmatprep.subr.mxu0 0.0
    %1780 = vmatpush1.msra.mxu0 0.0
    %1781 = vmatprep.subr.mxu0 0.0
    %1782 = vmatpush1.msra.mxu0 0.0
    %1783 = vmatprep.subr.mxu0 0.0
    %1784 = vmatpush1.msra.mxu0 0.0
    %1785 = vmatprep.subr.mxu0 0.0
    %1786 = vmatpush1.msra.mxu0 0.0
    %1787 = vmatprep.subr.mxu0 0.0
    %1788 = vmatpush1.msra.mxu0 0.0
    %1789 = vmatprep.subr.mxu0 0.0
    %1790 = vmatpush1.msra.mxu0 0.0
    %1791 = vmatprep.subr.mxu0 0.0
    %1792 = vmatpush1.msra.mxu0 0.0
    %1793 = vmatprep.subr.mxu0 0.0
    %1794 = vmatpush1.msra.mxu0 0.0
    %1795 = vmatprep.subr.mxu0 0.0
    %1796 = vmatpush1.msra.mxu0 0.0
    %1797 = vmatprep.subr.mxu0 0.0
    %1798 = vmatpush1.msra.mxu0 0.0
    %1799 = vmatprep.subr.mxu0 0.0
    %1800 = vmatpush1.msra.mxu0 0.0
    %1801 = vmatprep.subr.mxu0 0.0
    %1802 = vmatpush1.msra.mxu0 0.0
    %1803 = vmatprep.subr.mxu0 0.0
    %1804 = vmatpush1.msra.mxu0 0.0
    %1805 = vmatprep.subr.mxu0 0.0
    %1806 = vmatpush1.msra.mxu0 0.0
    %1807 = vmatprep.subr.mxu0 0.0
    %1808 = vmatpush1.msra.mxu0 0.0
    %1809 = vmatprep.subr.mxu0 0.0
    %1810 = vmatpush1.msra.mxu0 0.0
    %1811 = vmatprep.subr.mxu0 0.0
    %1812 = vmatpush1.msra.mxu0 0.0
    %1813 = vmatprep.subr.mxu0 0.0
    %1814 = vmatpush1.msra.mxu0 0.0
    %1815 = vmatprep.subr.mxu0 0.0
    %1816 = vmatpush1.msra.mxu0 0.0
    %1817 = vmatprep.subr.mxu0 0.0
    %1818 = vmatpush1.msra.mxu0 0.0
    %1819 = vmatprep.subr.mxu0 0.0
    %1820 = vmatpush1.msra.mxu0 0.0
    %1821 = vmatprep.subr.mxu0 0.0
    %1822 = vmatpush1.msra.mxu0 0.0
    %1823 = vmatprep.subr.mxu0 0.0
    %1824 = vmatpush1.msra.mxu0 0.0
    %1825 = vmatprep.subr.mxu0 0.0
    %1826 = vmatpush1.msra.mxu0 0.0
    %1827 = vmatprep.subr.mxu0 0.0
    %1828 = vmatpush1.msra.mxu0 0.0
    %1829 = vmatprep.subr.mxu0 0.0
    %1830 = vmatpush1.msra.mxu0 0.0
    %1831 = vmatprep.subr.mxu0 0.0
    %1832 = vmatpush1.msra.mxu0 0.0
    %1833 = vmatprep.subr.mxu0 0.0
    %1834 = vmatpush1.msra.mxu0 0.0
    %1835 = vmatprep.mubr.f32.mxu0 0.0
    %1836 = vmatmul.mubr.f32.gmra.mrb[0].mxu0 %v1769
    %v1837 = vpop.f32.mrb[0].mxu0
    %v1838 = vadd.f32 0.0, %v1837
    %v1839 = vpop.f32.mrb[0].mxu0
    %1840 = vdwg.mxu0
    %v1841 = vadd.f32 %v1758, %v1838
    %s1842 = scalar_lea.vmem %s9, 32
    %v1843 = vld [vmem:[%s1842] sm:$0xff]
    %1844 = vrot.lane.b32.xlu0 %v1510, 8
    %v1845 = vpop.permute.xlu0 %1844
    %1846 = vrot.lane.b32.xlu0 %v1511, 8
    %v1847 = vpop.permute.xlu0 %1846
    %v1848 = vsel %vm92, %v1845, %v1847
    %v1851 = vsel %vm92, %v1843, 0
    %1853 = vmatprep.subr.mxu0 0.0
    %1854 = vmatpush1.msra.mxu0 %v1848
    %1855 = vmatprep.subr.mxu0 0.0
    %1856 = vmatpush1.msra.mxu0 0.0
    %1857 = vmatprep.subr.mxu0 0.0
    %1858 = vmatpush1.msra.mxu0 0.0
    %1859 = vmatprep.subr.mxu0 0.0
    %1860 = vmatpush1.msra.mxu0 0.0
    %1861 = vmatprep.subr.mxu0 0.0
    %1862 = vmatpush1.msra.mxu0 0.0
    %1863 = vmatprep.subr.mxu0 0.0
    %1864 = vmatpush1.msra.mxu0 0.0
    %1865 = vmatprep.subr.mxu0 0.0
    %1866 = vmatpush1.msra.mxu0 0.0
    %1867 = vmatprep.subr.mxu0 0.0
    %1868 = vmatpush1.msra.mxu0 0.0
    %1869 = vmatprep.subr.mxu0 0.0
    %1870 = vmatpush1.msra.mxu0 0.0
    %1871 = vmatprep.subr.mxu0 0.0
    %1872 = vmatpush1.msra.mxu0 0.0
    %1873 = vmatprep.subr.mxu0 0.0
    %1874 = vmatpush1.msra.mxu0 0.0
    %1875 = vmatprep.subr.mxu0 0.0
    %1876 = vmatpush1.msra.mxu0 0.0
    %1877 = vmatprep.subr.mxu0 0.0
    %1878 = vmatpush1.msra.mxu0 0.0
    %1879 = vmatprep.subr.mxu0 0.0
    %1880 = vmatpush1.msra.mxu0 0.0
    %1881 = vmatprep.subr.mxu0 0.0
    %1882 = vmatpush1.msra.mxu0 0.0
    %1883 = vmatprep.subr.mxu0 0.0
    %1884 = vmatpush1.msra.mxu0 0.0
    %1885 = vmatprep.subr.mxu0 0.0
    %1886 = vmatpush1.msra.mxu0 0.0
    %1887 = vmatprep.subr.mxu0 0.0
    %1888 = vmatpush1.msra.mxu0 0.0
    %1889 = vmatprep.subr.mxu0 0.0
    %1890 = vmatpush1.msra.mxu0 0.0
    %1891 = vmatprep.subr.mxu0 0.0
    %1892 = vmatpush1.msra.mxu0 0.0
    %1893 = vmatprep.subr.mxu0 0.0
    %1894 = vmatpush1.msra.mxu0 0.0
    %1895 = vmatprep.subr.mxu0 0.0
    %1896 = vmatpush1.msra.mxu0 0.0
    %1897 = vmatprep.subr.mxu0 0.0
    %1898 = vmatpush1.msra.mxu0 0.0
    %1899 = vmatprep.subr.mxu0 0.0
    %1900 = vmatpush1.msra.mxu0 0.0
    %1901 = vmatprep.subr.mxu0 0.0
    %1902 = vmatpush1.msra.mxu0 0.0
    %1903 = vmatprep.subr.mxu0 0.0
    %1904 = vmatpush1.msra.mxu0 0.0
    %1905 = vmatprep.subr.mxu0 0.0
    %1906 = vmatpush1.msra.mxu0 0.0
    %1907 = vmatprep.subr.mxu0 0.0
    %1908 = vmatpush1.msra.mxu0 0.0
    %1909 = vmatprep.subr.mxu0 0.0
    %1910 = vmatpush1.msra.mxu0 0.0
    %1911 = vmatprep.subr.mxu0 0.0
    %1912 = vmatpush1.msra.mxu0 0.0
    %1913 = vmatprep.subr.mxu0 0.0
    %1914 = vmatpush1.msra.mxu0 0.0
    %1915 = vmatprep.subr.mxu0 0.0
    %1916 = vmatpush1.msra.mxu0 0.0
    %1917 = vmatprep.mubr.f32.mxu0 0.0
    %1918 = vmatmul.mubr.f32.gmra.mrb[0].mxu0 %v1851
    %v1919 = vpop.f32.mrb[0].mxu0
    %v1920 = vadd.f32 0.0, %v1919
    %v1921 = vpop.f32.mrb[0].mxu0
    %1922 = vdwg.mxu0
    %v1923 = vadd.f32 %v1841, %v1920
    %s1924 = scalar_lea.vmem %s9, 40
    %v1925 = vld [vmem:[%s1924] sm:$0xff]
    %1926 = vrot.lane.b32.xlu0 %v1510, 4
    %v1927 = vpop.permute.xlu0 %1926
    %1928 = vrot.lane.b32.xlu0 %v1511, 4
    %v1929 = vpop.permute.xlu0 %1928
    %v1930 = vsel %vm803, %v1927, %v1929
    %v1933 = vsel %vm92, %v1925, 0
    %1935 = vmatprep.subr.mxu0 0.0
    %1936 = vmatpush1.msra.mxu0 %v1930
    %1937 = vmatprep.subr.mxu0 0.0
    %1938 = vmatpush1.msra.mxu0 0.0
    %1939 = vmatprep.subr.mxu0 0.0
    %1940 = vmatpush1.msra.mxu0 0.0
    %1941 = vmatprep.subr.mxu0 0.0
    %1942 = vmatpush1.msra.mxu0 0.0
    %1943 = vmatprep.subr.mxu0 0.0
    %1944 = vmatpush1.msra.mxu0 0.0
    %1945 = vmatprep.subr.mxu0 0.0
    %1946 = vmatpush1.msra.mxu0 0.0
    %1947 = vmatprep.subr.mxu0 0.0
    %1948 = vmatpush1.msra.mxu0 0.0
    %1949 = vmatprep.subr.mxu0 0.0
    %1950 = vmatpush1.msra.mxu0 0.0
    %1951 = vmatprep.subr.mxu0 0.0
    %1952 = vmatpush1.msra.mxu0 0.0
    %1953 = vmatprep.subr.mxu0 0.0
    %1954 = vmatpush1.msra.mxu0 0.0
    %1955 = vmatprep.subr.mxu0 0.0
    %1956 = vmatpush1.msra.mxu0 0.0
    %1957 = vmatprep.subr.mxu0 0.0
    %1958 = vmatpush1.msra.mxu0 0.0
    %1959 = vmatprep.subr.mxu0 0.0
    %1960 = vmatpush1.msra.mxu0 0.0
    %1961 = vmatprep.subr.mxu0 0.0
    %1962 = vmatpush1.msra.mxu0 0.0
    %1963 = vmatprep.subr.mxu0 0.0
    %1964 = vmatpush1.msra.mxu0 0.0
    %1965 = vmatprep.subr.mxu0 0.0
    %1966 = vmatpush1.msra.mxu0 0.0
    %1967 = vmatprep.subr.mxu0 0.0
    %1968 = vmatpush1.msra.mxu0 0.0
    %1969 = vmatprep.subr.mxu0 0.0
    %1970 = vmatpush1.msra.mxu0 0.0
    %1971 = vmatprep.subr.mxu0 0.0
    %1972 = vmatpush1.msra.mxu0 0.0
    %1973 = vmatprep.subr.mxu0 0.0
    %1974 = vmatpush1.msra.mxu0 0.0
    %1975 = vmatprep.subr.mxu0 0.0
    %1976 = vmatpush1.msra.mxu0 0.0
    %1977 = vmatprep.subr.mxu0 0.0
    %1978 = vmatpush1.msra.mxu0 0.0
    %1979 = vmatprep.subr.mxu0 0.0
    %1980 = vmatpush1.msra.mxu0 0.0
    %1981 = vmatprep.subr.mxu0 0.0
    %1982 = vmatpush1.msra.mxu0 0.0
    %1983 = vmatprep.subr.mxu0 0.0
    %1984 = vmatpush1.msra.mxu0 0.0
    %1985 = vmatprep.subr.mxu0 0.0
    %1986 = vmatpush1.msra.mxu0 0.0
    %1987 = vmatprep.subr.mxu0 0.0
    %1988 = vmatpush1.msra.mxu0 0.0
    %1989 = vmatprep.subr.mxu0 0.0
    %1990 = vmatpush1.msra.mxu0 0.0
    %1991 = vmatprep.subr.mxu0 0.0
    %1992 = vmatpush1.msra.mxu0 0.0
    %1993 = vmatprep.subr.mxu0 0.0
    %1994 = vmatpush1.msra.mxu0 0.0
    %1995 = vmatprep.subr.mxu0 0.0
    %1996 = vmatpush1.msra.mxu0 0.0
    %1997 = vmatprep.subr.mxu0 0.0
    %1998 = vmatpush1.msra.mxu0 0.0
    %1999 = vmatprep.mubr.f32.mxu0 0.0
    %2000 = vmatmul.mubr.f32.gmra.mrb[0].mxu0 %v1933
    %v2001 = vpop.f32.mrb[0].mxu0
    %v2002 = vadd.f32 0.0, %v2001
    %v2003 = vpop.f32.mrb[0].mxu0
    %2004 = vdwg.mxu0
    %v2005 = vadd.f32 %v1923, %v2002
    %s2006 = scalar_lea.vmem %s9, 48
    %v2007 = vld [vmem:[%s2006] sm:$0xff]
    %v2009 = vsel %vm92, %v2007, 0
    %2011 = vmatprep.subr.mxu0 0.0
    %2012 = vmatpush1.msra.mxu0 %v1511
    %2013 = vmatprep.subr.mxu0 0.0
    %2014 = vmatpush1.msra.mxu0 0.0
    %2015 = vmatprep.subr.mxu0 0.0
    %2016 = vmatpush1.msra.mxu0 0.0
    %2017 = vmatprep.subr.mxu0 0.0
    %2018 = vmatpush1.msra.mxu0 0.0
    %2019 = vmatprep.subr.mxu0 0.0
    %2020 = vmatpush1.msra.mxu0 0.0
    %2021 = vmatprep.subr.mxu0 0.0
    %2022 = vmatpush1.msra.mxu0 0.0
    %2023 = vmatprep.subr.mxu0 0.0
    %2024 = vmatpush1.msra.mxu0 0.0
    %2025 = vmatprep.subr.mxu0 0.0
    %2026 = vmatpush1.msra.mxu0 0.0
    %2027 = vmatprep.subr.mxu0 0.0
    %2028 = vmatpush1.msra.mxu0 0.0
    %2029 = vmatprep.subr.mxu0 0.0
    %2030 = vmatpush1.msra.mxu0 0.0
    %2031 = vmatprep.subr.mxu0 0.0
    %2032 = vmatpush1.msra.mxu0 0.0
    %2033 = vmatprep.subr.mxu0 0.0
    %2034 = vmatpush1.msra.mxu0 0.0
    %2035 = vmatprep.subr.mxu0 0.0
    %2036 = vmatpush1.msra.mxu0 0.0
    %2037 = vmatprep.subr.mxu0 0.0
    %2038 = vmatpush1.msra.mxu0 0.0
    %2039 = vmatprep.subr.mxu0 0.0
    %2040 = vmatpush1.msra.mxu0 0.0
    %2041 = vmatprep.subr.mxu0 0.0
    %2042 = vmatpush1.msra.mxu0 0.0
    %2043 = vmatprep.subr.mxu0 0.0
    %2044 = vmatpush1.msra.mxu0 0.0
    %2045 = vmatprep.subr.mxu0 0.0
    %2046 = vmatpush1.msra.mxu0 0.0
    %2047 = vmatprep.subr.mxu0 0.0
    %2048 = vmatpush1.msra.mxu0 0.0
    %2049 = vmatprep.subr.mxu0 0.0
    %2050 = vmatpush1.msra.mxu0 0.0
    %2051 = vmatprep.subr.mxu0 0.0
    %2052 = vmatpush1.msra.mxu0 0.0
    %2053 = vmatprep.subr.mxu0 0.0
    %2054 = vmatpush1.msra.mxu0 0.0
    %2055 = vmatprep.subr.mxu0 0.0
    %2056 = vmatpush1.msra.mxu0 0.0
    %2057 = vmatprep.subr.mxu0 0.0
    %2058 = vmatpush1.msra.mxu0 0.0
    %2059 = vmatprep.subr.mxu0 0.0
    %2060 = vmatpush1.msra.mxu0 0.0
    %2061 = vmatprep.subr.mxu0 0.0
    %2062 = vmatpush1.msra.mxu0 0.0
    %2063 = vmatprep.subr.mxu0 0.0
    %2064 = vmatpush1.msra.mxu0 0.0
    %2065 = vmatprep.subr.mxu0 0.0
    %2066 = vmatpush1.msra.mxu0 0.0
    %2067 = vmatprep.subr.mxu0 0.0
    %2068 = vmatpush1.msra.mxu0 0.0
    %2069 = vmatprep.subr.mxu0 0.0
    %2070 = vmatpush1.msra.mxu0 0.0
    %2071 = vmatprep.subr.mxu0 0.0
    %2072 = vmatpush1.msra.mxu0 0.0
    %2073 = vmatprep.subr.mxu0 0.0
    %2074 = vmatpush1.msra.mxu0 0.0
    %2075 = vmatprep.mubr.f32.mxu0 0.0
    %2076 = vmatmul.mubr.f32.gmra.mrb[0].mxu0 %v2009
    %v2077 = vpop.f32.mrb[0].mxu0
    %v2078 = vadd.f32 0.0, %v2077
    %v2079 = vpop.f32.mrb[0].mxu0
    %2080 = vdwg.mxu0
    %v2081 = vadd.f32 %v2005, %v2078
    %v2082 = vld [vmem:[%s10] sm:$0xff]
    %2084 = vset.pattern.permute.xlu0 0
    %2085 = vperm.xlu0 %2084, %v2082
    %v2086 = vpop.permute.xlu0 %2085
    %v2088 = vadd.f32 %v2081, %v2086
    %v2089 = vsel %vm1508, 1, 0
    %vm2090 = vcmp.eq.s32.totalorder %v2089, 1
    %v2091 = vsel %vm2090, %v2088, 0.0
    %2092 = vadd.xlane.f32.xlu0 %v2091
    %v2093 = vpop.xlane.xlu0 %2092
    %v2094 = vadd.f32 %v2093, 0.0
    %v2095 = vmul.f32 %v2091, %v2091
    %2096 = vadd.xlane.f32.xlu0 %v2095
    %v2097 = vpop.xlane.xlu0 %2096
    %v2098 = vadd.f32 %v2097, 0.0
    %2099 = vst [vmem:[#allocation9] sm:$0xff] %v2091
    %v2100 = vld [vmem:[%s9] sm:$0xff]
    %v2101 = vld [vmem:[#allocation3 + $0x10] sm:$0xff]
    %v2102 = vld [vmem:[#allocation3 + $0x18] sm:$0xff]
    %v2103 = vld [vmem:[%s1512] sm:$0xff]
    %2106 = vrot.lane.b32.xlu0 %v2101, 20
    %v2107 = vpop.permute.xlu0 %2106
    %2108 = vrot.lane.b32.xlu0 %v2102, 20
    %v2109 = vpop.permute.xlu0 %2108
    %v2110 = vsel %vm1520, %v2107, %v2109
    %v2113 = vsel %vm92, %v2103, 0
    %2115 = vmatprep.subr.mxu0 0.0
    %2116 = vmatpush1.msra.mxu0 %v2110
    %2117 = vmatprep.subr.mxu0 0.0
    %2118 = vmatpush1.msra.mxu0 0.0
    %2119 = vmatprep.subr.mxu0 0.0
    %2120 = vmatpush1.msra.mxu0 0.0
    %2121 = vmatprep.subr.mxu0 0.0
    %2122 = vmatpush1.msra.mxu0 0.0
    %2123 = vmatprep.subr.mxu0 0.0
    %2124 = vmatpush1.msra.mxu0 0.0
    %2125 = vmatprep.subr.mxu0 0.0
    %2126 = vmatpush1.msra.mxu0 0.0
    %2127 = vmatprep.subr.mxu0 0.0
    %2128 = vmatpush1.msra.mxu0 0.0
    %2129 = vmatprep.subr.mxu0 0.0
    %2130 = vmatpush1.msra.mxu0 0.0
    %2131 = vmatprep.subr.mxu0 0.0
    %2132 = vmatpush1.msra.mxu0 0.0
    %2133 = vmatprep.subr.mxu0 0.0
    %2134 = vmatpush1.msra.mxu0 0.0
    %2135 = vmatprep.subr.mxu0 0.0
    %2136 = vmatpush1.msra.mxu0 0.0
    %2137 = vmatprep.subr.mxu0 0.0
    %2138 = vmatpush1.msra.mxu0 0.0
    %2139 = vmatprep.subr.mxu0 0.0
    %2140 = vmatpush1.msra.mxu0 0.0
    %2141 = vmatprep.subr.mxu0 0.0
    %2142 = vmatpush1.msra.mxu0 0.0
    %2143 = vmatprep.subr.mxu0 0.0
    %2144 = vmatpush1.msra.mxu0 0.0
    %2145 = vmatprep.subr.mxu0 0.0
    %2146 = vmatpush1.msra.mxu0 0.0
    %2147 = vmatprep.subr.mxu0 0.0
    %2148 = vmatpush1.msra.mxu0 0.0
    %2149 = vmatprep.subr.mxu0 0.0
    %2150 = vmatpush1.msra.mxu0 0.0
    %2151 = vmatprep.subr.mxu0 0.0
    %2152 = vmatpush1.msra.mxu0 0.0
    %2153 = vmatprep.subr.mxu0 0.0
    %2154 = vmatpush1.msra.mxu0 0.0
    %2155 = vmatprep.subr.mxu0 0.0
    %2156 = vmatpush1.msra.mxu0 0.0
    %2157 = vmatprep.subr.mxu0 0.0
    %2158 = vmatpush1.msra.mxu0 0.0
    %2159 = vmatprep.subr.mxu0 0.0
    %2160 = vmatpush1.msra.mxu0 0.0
    %2161 = vmatprep.subr.mxu0 0.0
    %2162 = vmatpush1.msra.mxu0 0.0
    %2163 = vmatprep.subr.mxu0 0.0
    %2164 = vmatpush1.msra.mxu0 0.0
    %2165 = vmatprep.subr.mxu0 0.0
    %2166 = vmatpush1.msra.mxu0 0.0
    %2167 = vmatprep.subr.mxu0 0.0
    %2168 = vmatpush1.msra.mxu0 0.0
    %2169 = vmatprep.subr.mxu0 0.0
    %2170 = vmatpush1.msra.mxu0 0.0
    %2171 = vmatprep.subr.mxu0 0.0
    %2172 = vmatpush1.msra.mxu0 0.0
    %2173 = vmatprep.subr.mxu0 0.0
    %2174 = vmatpush1.msra.mxu0 0.0
    %2175 = vmatprep.subr.mxu0 0.0
    %2176 = vmatpush1.msra.mxu0 0.0
    %2177 = vmatprep.subr.mxu0 0.0
    %2178 = vmatpush1.msra.mxu0 0.0
    %2179 = vmatprep.mubr.f32.mxu0 0.0
    %2180 = vmatmul.mubr.f32.gmra.mrb[0].mxu0 %v2113
    %v2181 = vpop.f32.mrb[0].mxu0
    %v2182 = vadd.f32 0.0, %v2181
    %v2183 = vpop.f32.mrb[0].mxu0
    %2184 = vdwg.mxu0
    %2185 = vrot.lane.b32.xlu0 %v2101, 24
    %v2186 = vpop.permute.xlu0 %2185
    %2187 = vrot.lane.b32.xlu0 %v2102, 24
    %v2188 = vpop.permute.xlu0 %2187
    %v2189 = vsel %vm1600, %v2186, %v2188
    %v2192 = vsel %vm92, %v2100, 0
    %2194 = vmatprep.subr.mxu0 0.0
    %2195 = vmatpush1.msra.mxu0 %v2189
    %2196 = vmatprep.subr.mxu0 0.0
    %2197 = vmatpush1.msra.mxu0 0.0
    %2198 = vmatprep.subr.mxu0 0.0
    %2199 = vmatpush1.msra.mxu0 0.0
    %2200 = vmatprep.subr.mxu0 0.0
    %2201 = vmatpush1.msra.mxu0 0.0
    %2202 = vmatprep.subr.mxu0 0.0
    %2203 = vmatpush1.msra.mxu0 0.0
    %2204 = vmatprep.subr.mxu0 0.0
    %2205 = vmatpush1.msra.mxu0 0.0
    %2206 = vmatprep.subr.mxu0 0.0
    %2207 = vmatpush1.msra.mxu0 0.0
    %2208 = vmatprep.subr.mxu0 0.0
    %2209 = vmatpush1.msra.mxu0 0.0
    %2210 = vmatprep.subr.mxu0 0.0
    %2211 = vmatpush1.msra.mxu0 0.0
    %2212 = vmatprep.subr.mxu0 0.0
    %2213 = vmatpush1.msra.mxu0 0.0
    %2214 = vmatprep.subr.mxu0 0.0
    %2215 = vmatpush1.msra.mxu0 0.0
    %2216 = vmatprep.subr.mxu0 0.0
    %2217 = vmatpush1.msra.mxu0 0.0
    %2218 = vmatprep.subr.mxu0 0.0
    %2219 = vmatpush1.msra.mxu0 0.0
    %2220 = vmatprep.subr.mxu0 0.0
    %2221 = vmatpush1.msra.mxu0 0.0
    %2222 = vmatprep.subr.mxu0 0.0
    %2223 = vmatpush1.msra.mxu0 0.0
    %2224 = vmatprep.subr.mxu0 0.0
    %2225 = vmatpush1.msra.mxu0 0.0
    %2226 = vmatprep.subr.mxu0 0.0
    %2227 = vmatpush1.msra.mxu0 0.0
    %2228 = vmatprep.subr.mxu0 0.0
    %2229 = vmatpush1.msra.mxu0 0.0
    %2230 = vmatprep.subr.mxu0 0.0
    %2231 = vmatpush1.msra.mxu0 0.0
    %2232 = vmatprep.subr.mxu0 0.0
    %2233 = vmatpush1.msra.mxu0 0.0
    %2234 = vmatprep.subr.mxu0 0.0
    %2235 = vmatpush1.msra.mxu0 0.0
    %2236 = vmatprep.subr.mxu0 0.0
    %2237 = vmatpush1.msra.mxu0 0.0
    %2238 = vmatprep.subr.mxu0 0.0
    %2239 = vmatpush1.msra.mxu0 0.0
    %2240 = vmatprep.subr.mxu0 0.0
    %2241 = vmatpush1.msra.mxu0 0.0
    %2242 = vmatprep.subr.mxu0 0.0
    %2243 = vmatpush1.msra.mxu0 0.0
    %2244 = vmatprep.subr.mxu0 0.0
    %2245 = vmatpush1.msra.mxu0 0.0
    %2246 = vmatprep.subr.mxu0 0.0
    %2247 = vmatpush1.msra.mxu0 0.0
    %2248 = vmatprep.subr.mxu0 0.0
    %2249 = vmatpush1.msra.mxu0 0.0
    %2250 = vmatprep.subr.mxu0 0.0
    %2251 = vmatpush1.msra.mxu0 0.0
    %2252 = vmatprep.subr.mxu0 0.0
    %2253 = vmatpush1.msra.mxu0 0.0
    %2254 = vmatprep.subr.mxu0 0.0
    %2255 = vmatpush1.msra.mxu0 0.0
    %2256 = vmatprep.subr.mxu0 0.0
    %2257 = vmatpush1.msra.mxu0 0.0
    %2258 = vmatprep.mubr.f32.mxu0 0.0
    %2259 = vmatmul.mubr.f32.gmra.mrb[0].mxu0 %v2192
    %v2260 = vpop.f32.mrb[0].mxu0
    %v2261 = vadd.f32 %v2182, %v2260
    %v2262 = vpop.f32.mrb[0].mxu0
    %2263 = vdwg.mxu0
    %v2264 = vld [vmem:[%s1676] sm:$0xff]
    %2265 = vrot.lane.b32.xlu0 %v2101, 16
    %v2266 = vpop.permute.xlu0 %2265
    %2267 = vrot.lane.b32.xlu0 %v2102, 16
    %v2268 = vpop.permute.xlu0 %2267
    %v2269 = vsel %vm1682, %v2266, %v2268
    %v2272 = vsel %vm92, %v2264, 0
    %2274 = vmatprep.subr.mxu0 0.0
    %2275 = vmatpush1.msra.mxu0 %v2269
    %2276 = vmatprep.subr.mxu0 0.0
    %2277 = vmatpush1.msra.mxu0 0.0
    %2278 = vmatprep.subr.mxu0 0.0
    %2279 = vmatpush1.msra.mxu0 0.0
    %2280 = vmatprep.subr.mxu0 0.0
    %2281 = vmatpush1.msra.mxu0 0.0
    %2282 = vmatprep.subr.mxu0 0.0
    %2283 = vmatpush1.msra.mxu0 0.0
    %2284 = vmatprep.subr.mxu0 0.0
    %2285 = vmatpush1.msra.mxu0 0.0
    %2286 = vmatprep.subr.mxu0 0.0
    %2287 = vmatpush1.msra.mxu0 0.0
    %2288 = vmatprep.subr.mxu0 0.0
    %2289 = vmatpush1.msra.mxu0 0.0
    %2290 = vmatprep.subr.mxu0 0.0
    %2291 = vmatpush1.msra.mxu0 0.0
    %2292 = vmatprep.subr.mxu0 0.0
    %2293 = vmatpush1.msra.mxu0 0.0
    %2294 = vmatprep.subr.mxu0 0.0
    %2295 = vmatpush1.msra.mxu0 0.0
    %2296 = vmatprep.subr.mxu0 0.0
    %2297 = vmatpush1.msra.mxu0 0.0
    %2298 = vmatprep.subr.mxu0 0.0
    %2299 = vmatpush1.msra.mxu0 0.0
    %2300 = vmatprep.subr.mxu0 0.0
    %2301 = vmatpush1.msra.mxu0 0.0
    %2302 = vmatprep.subr.mxu0 0.0
    %2303 = vmatpush1.msra.mxu0 0.0
    %2304 = vmatprep.subr.mxu0 0.0
    %2305 = vmatpush1.msra.mxu0 0.0
    %2306 = vmatprep.subr.mxu0 0.0
    %2307 = vmatpush1.msra.mxu0 0.0
    %2308 = vmatprep.subr.mxu0 0.0
    %2309 = vmatpush1.msra.mxu0 0.0
    %2310 = vmatprep.subr.mxu0 0.0
    %2311 = vmatpush1.msra.mxu0 0.0
    %2312 = vmatprep.subr.mxu0 0.0
    %2313 = vmatpush1.msra.mxu0 0.0
    %2314 = vmatprep.subr.mxu0 0.0
    %2315 = vmatpush1.msra.mxu0 0.0
    %2316 = vmatprep.subr.mxu0 0.0
    %2317 = vmatpush1.msra.mxu0 0.0
    %2318 = vmatprep.subr.mxu0 0.0
    %2319 = vmatpush1.msra.mxu0 0.0
    %2320 = vmatprep.subr.mxu0 0.0
    %2321 = vmatpush1.msra.mxu0 0.0
    %2322 = vmatprep.subr.mxu0 0.0
    %2323 = vmatpush1.msra.mxu0 0.0
    %2324 = vmatprep.subr.mxu0 0.0
    %2325 = vmatpush1.msra.mxu0 0.0
    %2326 = vmatprep.subr.mxu0 0.0
    %2327 = vmatpush1.msra.mxu0 0.0
    %2328 = vmatprep.subr.mxu0 0.0
    %2329 = vmatpush1.msra.mxu0 0.0
    %2330 = vmatprep.subr.mxu0 0.0
    %2331 = vmatpush1.msra.mxu0 0.0
    %2332 = vmatprep.subr.mxu0 0.0
    %2333 = vmatpush1.msra.mxu0 0.0
    %2334 = vmatprep.subr.mxu0 0.0
    %2335 = vmatpush1.msra.mxu0 0.0
    %2336 = vmatprep.subr.mxu0 0.0
    %2337 = vmatpush1.msra.mxu0 0.0
    %2338 = vmatprep.mubr.f32.mxu0 0.0
    %2339 = vmatmul.mubr.f32.gmra.mrb[0].mxu0 %v2272
    %v2340 = vpop.f32.mrb[0].mxu0
    %v2341 = vadd.f32 0.0, %v2340
    %v2342 = vpop.f32.mrb[0].mxu0
    %2343 = vdwg.mxu0
    %v2344 = vadd.f32 %v2261, %v2341
    %v2345 = vld [vmem:[%s1759] sm:$0xff]
    %2346 = vrot.lane.b32.xlu0 %v2101, 12
    %v2347 = vpop.permute.xlu0 %2346
    %2348 = vrot.lane.b32.xlu0 %v2102, 12
    %v2349 = vpop.permute.xlu0 %2348
    %v2350 = vsel %vm1765, %v2347, %v2349
    %v2353 = vsel %vm92, %v2345, 0
    %2355 = vmatprep.subr.mxu0 0.0
    %2356 = vmatpush1.msra.mxu0 %v2350
    %2357 = vmatprep.subr.mxu0 0.0
    %2358 = vmatpush1.msra.mxu0 0.0
    %2359 = vmatprep.subr.mxu0 0.0
    %2360 = vmatpush1.msra.mxu0 0.0
    %2361 = vmatprep.subr.mxu0 0.0
    %2362 = vmatpush1.msra.mxu0 0.0
    %2363 = vmatprep.subr.mxu0 0.0
    %2364 = vmatpush1.msra.mxu0 0.0
    %2365 = vmatprep.subr.mxu0 0.0
    %2366 = vmatpush1.msra.mxu0 0.0
    %2367 = vmatprep.subr.mxu0 0.0
    %2368 = vmatpush1.msra.mxu0 0.0
    %2369 = vmatprep.subr.mxu0 0.0
    %2370 = vmatpush1.msra.mxu0 0.0
    %2371 = vmatprep.subr.mxu0 0.0
    %2372 = vmatpush1.msra.mxu0 0.0
    %2373 = vmatprep.subr.mxu0 0.0
    %2374 = vmatpush1.msra.mxu0 0.0
    %2375 = vmatprep.subr.mxu0 0.0
    %2376 = vmatpush1.msra.mxu0 0.0
    %2377 = vmatprep.subr.mxu0 0.0
    %2378 = vmatpush1.msra.mxu0 0.0
    %2379 = vmatprep.subr.mxu0 0.0
    %2380 = vmatpush1.msra.mxu0 0.0
    %2381 = vmatprep.subr.mxu0 0.0
    %2382 = vmatpush1.msra.mxu0 0.0
    %2383 = vmatprep.subr.mxu0 0.0
    %2384 = vmatpush1.msra.mxu0 0.0
    %2385 = vmatprep.subr.mxu0 0.0
    %2386 = vmatpush1.msra.mxu0 0.0
    %2387 = vmatprep.subr.mxu0 0.0
    %2388 = vmatpush1.msra.mxu0 0.0
    %2389 = vmatprep.subr.mxu0 0.0
    %2390 = vmatpush1.msra.mxu0 0.0
    %2391 = vmatprep.subr.mxu0 0.0
    %2392 = vmatpush1.msra.mxu0 0.0
    %2393 = vmatprep.subr.mxu0 0.0
    %2394 = vmatpush1.msra.mxu0 0.0
    %2395 = vmatprep.subr.mxu0 0.0
    %2396 = vmatpush1.msra.mxu0 0.0
    %2397 = vmatprep.subr.mxu0 0.0
    %2398 = vmatpush1.msra.mxu0 0.0
    %2399 = vmatprep.subr.mxu0 0.0
    %2400 = vmatpush1.msra.mxu0 0.0
    %2401 = vmatprep.subr.mxu0 0.0
    %2402 = vmatpush1.msra.mxu0 0.0
    %2403 = vmatprep.subr.mxu0 0.0
    %2404 = vmatpush1.msra.mxu0 0.0
    %2405 = vmatprep.subr.mxu0 0.0
    %2406 = vmatpush1.msra.mxu0 0.0
    %2407 = vmatprep.subr.mxu0 0.0
    %2408 = vmatpush1.msra.mxu0 0.0
    %2409 = vmatprep.subr.mxu0 0.0
    %2410 = vmatpush1.msra.mxu0 0.0
    %2411 = vmatprep.subr.mxu0 0.0
    %2412 = vmatpush1.msra.mxu0 0.0
    %2413 = vmatprep.subr.mxu0 0.0
    %2414 = vmatpush1.msra.mxu0 0.0
    %2415 = vmatprep.subr.mxu0 0.0
    %2416 = vmatpush1.msra.mxu0 0.0
    %2417 = vmatprep.subr.mxu0 0.0
    %2418 = vmatpush1.msra.mxu0 0.0
    %2419 = vmatprep.mubr.f32.mxu0 0.0
    %2420 = vmatmul.mubr.f32.gmra.mrb[0].mxu0 %v2353
    %v2421 = vpop.f32.mrb[0].mxu0
    %v2422 = vadd.f32 0.0, %v2421
    %v2423 = vpop.f32.mrb[0].mxu0
    %2424 = vdwg.mxu0
    %v2425 = vadd.f32 %v2344, %v2422
    %v2426 = vld [vmem:[%s1842] sm:$0xff]
    %2427 = vrot.lane.b32.xlu0 %v2101, 8
    %v2428 = vpop.permute.xlu0 %2427
    %2429 = vrot.lane.b32.xlu0 %v2102, 8
    %v2430 = vpop.permute.xlu0 %2429
    %v2431 = vsel %vm92, %v2428, %v2430
    %v2434 = vsel %vm92, %v2426, 0
    %2436 = vmatprep.subr.mxu0 0.0
    %2437 = vmatpush1.msra.mxu0 %v2431
    %2438 = vmatprep.subr.mxu0 0.0
    %2439 = vmatpush1.msra.mxu0 0.0
    %2440 = vmatprep.subr.mxu0 0.0
    %2441 = vmatpush1.msra.mxu0 0.0
    %2442 = vmatprep.subr.mxu0 0.0
    %2443 = vmatpush1.msra.mxu0 0.0
    %2444 = vmatprep.subr.mxu0 0.0
    %2445 = vmatpush1.msra.mxu0 0.0
    %2446 = vmatprep.subr.mxu0 0.0
    %2447 = vmatpush1.msra.mxu0 0.0
    %2448 = vmatprep.subr.mxu0 0.0
    %2449 = vmatpush1.msra.mxu0 0.0
    %2450 = vmatprep.subr.mxu0 0.0
    %2451 = vmatpush1.msra.mxu0 0.0
    %2452 = vmatprep.subr.mxu0 0.0
    %2453 = vmatpush1.msra.mxu0 0.0
    %2454 = vmatprep.subr.mxu0 0.0
    %2455 = vmatpush1.msra.mxu0 0.0
    %2456 = vmatprep.subr.mxu0 0.0
    %2457 = vmatpush1.msra.mxu0 0.0
    %2458 = vmatprep.subr.mxu0 0.0
    %2459 = vmatpush1.msra.mxu0 0.0
    %2460 = vmatprep.subr.mxu0 0.0
    %2461 = vmatpush1.msra.mxu0 0.0
    %2462 = vmatprep.subr.mxu0 0.0
    %2463 = vmatpush1.msra.mxu0 0.0
    %2464 = vmatprep.subr.mxu0 0.0
    %2465 = vmatpush1.msra.mxu0 0.0
    %2466 = vmatprep.subr.mxu0 0.0
    %2467 = vmatpush1.msra.mxu0 0.0
    %2468 = vmatprep.subr.mxu0 0.0
    %2469 = vmatpush1.msra.mxu0 0.0
    %2470 = vmatprep.subr.mxu0 0.0
    %2471 = vmatpush1.msra.mxu0 0.0
    %2472 = vmatprep.subr.mxu0 0.0
    %2473 = vmatpush1.msra.mxu0 0.0
    %2474 = vmatprep.subr.mxu0 0.0
    %2475 = vmatpush1.msra.mxu0 0.0
    %2476 = vmatprep.subr.mxu0 0.0
    %2477 = vmatpush1.msra.mxu0 0.0
    %2478 = vmatprep.subr.mxu0 0.0
    %2479 = vmatpush1.msra.mxu0 0.0
    %2480 = vmatprep.subr.mxu0 0.0
    %2481 = vmatpush1.msra.mxu0 0.0
    %2482 = vmatprep.subr.mxu0 0.0
    %2483 = vmatpush1.msra.mxu0 0.0
    %2484 = vmatprep.subr.mxu0 0.0
    %2485 = vmatpush1.msra.mxu0 0.0
    %2486 = vmatprep.subr.mxu0 0.0
    %2487 = vmatpush1.msra.mxu0 0.0
    %2488 = vmatprep.subr.mxu0 0.0
    %2489 = vmatpush1.msra.mxu0 0.0
    %2490 = vmatprep.subr.mxu0 0.0
    %2491 = vmatpush1.msra.mxu0 0.0
    %2492 = vmatprep.subr.mxu0 0.0
    %2493 = vmatpush1.msra.mxu0 0.0
    %2494 = vmatprep.subr.mxu0 0.0
    %2495 = vmatpush1.msra.mxu0 0.0
    %2496 = vmatprep.subr.mxu0 0.0
    %2497 = vmatpush1.msra.mxu0 0.0
    %2498 = vmatprep.subr.mxu0 0.0
    %2499 = vmatpush1.msra.mxu0 0.0
    %2500 = vmatprep.mubr.f32.mxu0 0.0
    %2501 = vmatmul.mubr.f32.gmra.mrb[0].mxu0 %v2434
    %v2502 = vpop.f32.mrb[0].mxu0
    %v2503 = vadd.f32 0.0, %v2502
    %v2504 = vpop.f32.mrb[0].mxu0
    %2505 = vdwg.mxu0
    %v2506 = vadd.f32 %v2425, %v2503
    %v2507 = vld [vmem:[%s1924] sm:$0xff]
    %2508 = vrot.lane.b32.xlu0 %v2101, 4
    %v2509 = vpop.permute.xlu0 %2508
    %2510 = vrot.lane.b32.xlu0 %v2102, 4
    %v2511 = vpop.permute.xlu0 %2510
    %v2512 = vsel %vm803, %v2509, %v2511
    %v2515 = vsel %vm92, %v2507, 0
    %2517 = vmatprep.subr.mxu0 0.0
    %2518 = vmatpush1.msra.mxu0 %v2512
    %2519 = vmatprep.subr.mxu0 0.0
    %2520 = vmatpush1.msra.mxu0 0.0
    %2521 = vmatprep.subr.mxu0 0.0
    %2522 = vmatpush1.msra.mxu0 0.0
    %2523 = vmatprep.subr.mxu0 0.0
    %2524 = vmatpush1.msra.mxu0 0.0
    %2525 = vmatprep.subr.mxu0 0.0
    %2526 = vmatpush1.msra.mxu0 0.0
    %2527 = vmatprep.subr.mxu0 0.0
    %2528 = vmatpush1.msra.mxu0 0.0
    %2529 = vmatprep.subr.mxu0 0.0
    %2530 = vmatpush1.msra.mxu0 0.0
    %2531 = vmatprep.subr.mxu0 0.0
    %2532 = vmatpush1.msra.mxu0 0.0
    %2533 = vmatprep.subr.mxu0 0.0
    %2534 = vmatpush1.msra.mxu0 0.0
    %2535 = vmatprep.subr.mxu0 0.0
    %2536 = vmatpush1.msra.mxu0 0.0
    %2537 = vmatprep.subr.mxu0 0.0
    %2538 = vmatpush1.msra.mxu0 0.0
    %2539 = vmatprep.subr.mxu0 0.0
    %2540 = vmatpush1.msra.mxu0 0.0
    %2541 = vmatprep.subr.mxu0 0.0
    %2542 = vmatpush1.msra.mxu0 0.0
    %2543 = vmatprep.subr.mxu0 0.0
    %2544 = vmatpush1.msra.mxu0 0.0
    %2545 = vmatprep.subr.mxu0 0.0
    %2546 = vmatpush1.msra.mxu0 0.0
    %2547 = vmatprep.subr.mxu0 0.0
    %2548 = vmatpush1.msra.mxu0 0.0
    %2549 = vmatprep.subr.mxu0 0.0
    %2550 = vmatpush1.msra.mxu0 0.0
    %2551 = vmatprep.subr.mxu0 0.0
    %2552 = vmatpush1.msra.mxu0 0.0
    %2553 = vmatprep.subr.mxu0 0.0
    %2554 = vmatpush1.msra.mxu0 0.0
    %2555 = vmatprep.subr.mxu0 0.0
    %2556 = vmatpush1.msra.mxu0 0.0
    %2557 = vmatprep.subr.mxu0 0.0
    %2558 = vmatpush1.msra.mxu0 0.0
    %2559 = vmatprep.subr.mxu0 0.0
    %2560 = vmatpush1.msra.mxu0 0.0
    %2561 = vmatprep.subr.mxu0 0.0
    %2562 = vmatpush1.msra.mxu0 0.0
    %2563 = vmatprep.subr.mxu0 0.0
    %2564 = vmatpush1.msra.mxu0 0.0
    %2565 = vmatprep.subr.mxu0 0.0
    %2566 = vmatpush1.msra.mxu0 0.0
    %2567 = vmatprep.subr.mxu0 0.0
    %2568 = vmatpush1.msra.mxu0 0.0
    %2569 = vmatprep.subr.mxu0 0.0
    %2570 = vmatpush1.msra.mxu0 0.0
    %2571 = vmatprep.subr.mxu0 0.0
    %2572 = vmatpush1.msra.mxu0 0.0
    %2573 = vmatprep.subr.mxu0 0.0
    %2574 = vmatpush1.msra.mxu0 0.0
    %2575 = vmatprep.subr.mxu0 0.0
    %2576 = vmatpush1.msra.mxu0 0.0
    %2577 = vmatprep.subr.mxu0 0.0
    %2578 = vmatpush1.msra.mxu0 0.0
    %2579 = vmatprep.subr.mxu0 0.0
    %2580 = vmatpush1.msra.mxu0 0.0
    %2581 = vmatprep.mubr.f32.mxu0 0.0
    %2582 = vmatmul.mubr.f32.gmra.mrb[0].mxu0 %v2515
    %v2583 = vpop.f32.mrb[0].mxu0
    %v2584 = vadd.f32 0.0, %v2583
    %v2585 = vpop.f32.mrb[0].mxu0
    %2586 = vdwg.mxu0
    %v2587 = vadd.f32 %v2506, %v2584
    %v2588 = vld [vmem:[%s2006] sm:$0xff]
    %v2590 = vsel %vm92, %v2588, 0
    %2592 = vmatprep.subr.mxu0 0.0
    %2593 = vmatpush1.msra.mxu0 %v2102
    %2594 = vmatprep.subr.mxu0 0.0
    %2595 = vmatpush1.msra.mxu0 0.0
    %2596 = vmatprep.subr.mxu0 0.0
    %2597 = vmatpush1.msra.mxu0 0.0
    %2598 = vmatprep.subr.mxu0 0.0
    %2599 = vmatpush1.msra.mxu0 0.0
    %2600 = vmatprep.subr.mxu0 0.0
    %2601 = vmatpush1.msra.mxu0 0.0
    %2602 = vmatprep.subr.mxu0 0.0
    %2603 = vmatpush1.msra.mxu0 0.0
    %2604 = vmatprep.subr.mxu0 0.0
    %2605 = vmatpush1.msra.mxu0 0.0
    %2606 = vmatprep.subr.mxu0 0.0
    %2607 = vmatpush1.msra.mxu0 0.0
    %2608 = vmatprep.subr.mxu0 0.0
    %2609 = vmatpush1.msra.mxu0 0.0
    %2610 = vmatprep.subr.mxu0 0.0
    %2611 = vmatpush1.msra.mxu0 0.0
    %2612 = vmatprep.subr.mxu0 0.0
    %2613 = vmatpush1.msra.mxu0 0.0
    %2614 = vmatprep.subr.mxu0 0.0
    %2615 = vmatpush1.msra.mxu0 0.0
    %2616 = vmatprep.subr.mxu0 0.0
    %2617 = vmatpush1.msra.mxu0 0.0
    %2618 = vmatprep.subr.mxu0 0.0
    %2619 = vmatpush1.msra.mxu0 0.0
    %2620 = vmatprep.subr.mxu0 0.0
    %2621 = vmatpush1.msra.mxu0 0.0
    %2622 = vmatprep.subr.mxu0 0.0
    %2623 = vmatpush1.msra.mxu0 0.0
    %2624 = vmatprep.subr.mxu0 0.0
    %2625 = vmatpush1.msra.mxu0 0.0
    %2626 = vmatprep.subr.mxu0 0.0
    %2627 = vmatpush1.msra.mxu0 0.0
    %2628 = vmatprep.subr.mxu0 0.0
    %2629 = vmatpush1.msra.mxu0 0.0
    %2630 = vmatprep.subr.mxu0 0.0
    %2631 = vmatpush1.msra.mxu0 0.0
    %2632 = vmatprep.subr.mxu0 0.0
    %2633 = vmatpush1.msra.mxu0 0.0
    %2634 = vmatprep.subr.mxu0 0.0
    %2635 = vmatpush1.msra.mxu0 0.0
    %2636 = vmatprep.subr.mxu0 0.0
    %2637 = vmatpush1.msra.mxu0 0.0
    %2638 = vmatprep.subr.mxu0 0.0
    %2639 = vmatpush1.msra.mxu0 0.0
    %2640 = vmatprep.subr.mxu0 0.0
    %2641 = vmatpush1.msra.mxu0 0.0
    %2642 = vmatprep.subr.mxu0 0.0
    %2643 = vmatpush1.msra.mxu0 0.0
    %2644 = vmatprep.subr.mxu0 0.0
    %2645 = vmatpush1.msra.mxu0 0.0
    %2646 = vmatprep.subr.mxu0 0.0
    %2647 = vmatpush1.msra.mxu0 0.0
    %2648 = vmatprep.subr.mxu0 0.0
    %2649 = vmatpush1.msra.mxu0 0.0
    %2650 = vmatprep.subr.mxu0 0.0
    %2651 = vmatpush1.msra.mxu0 0.0
    %2652 = vmatprep.subr.mxu0 0.0
    %2653 = vmatpush1.msra.mxu0 0.0
    %2654 = vmatprep.subr.mxu0 0.0
    %2655 = vmatpush1.msra.mxu0 0.0
    %2656 = vmatprep.mubr.f32.mxu0 0.0
    %2657 = vmatmul.mubr.f32.gmra.mrb[0].mxu0 %v2590
    %v2658 = vpop.f32.mrb[0].mxu0
    %v2659 = vadd.f32 0.0, %v2658
    %v2660 = vpop.f32.mrb[0].mxu0
    %2661 = vdwg.mxu0
    %v2662 = vadd.f32 %v2587, %v2659
    %v2663 = vld [vmem:[%s10] sm:$0xff]
    %2665 = vset.pattern.permute.xlu0 0
    %2666 = vperm.xlu0 %2665, %v2663
    %v2667 = vpop.permute.xlu0 %2666
    %v2669 = vadd.f32 %v2662, %v2667
    %v2670 = vsel %vm2090, %v2669, 0.0
    %2671 = vadd.xlane.f32.xlu0 %v2670
    %v2672 = vpop.xlane.xlu0 %2671
    %v2673 = vadd.f32 %v2094, %v2672
    %v2674 = vmul.f32 %v2670, %v2670
    %2675 = vadd.xlane.f32.xlu0 %v2674
    %v2676 = vpop.xlane.xlu0 %2675
    %v2677 = vadd.f32 %v2098, %v2676
    %s2678 = scalar_lea.vmem [#allocation9], 8
    %2679 = vst [vmem:[%s2678] sm:$0xff] %v2670
    %v2680 = vrcp.pop 100.0
    %v2681 = vmul.f32 %v2673, %v2680
    %v2682 = vmul.f32 %v2677, %v2680
    %v2683 = vmul.f32 %v2681, %v2681
    %v2684 = vsub.f32 %v2682, %v2683
    %v2685 = vmax.f32 %v2684, 0.0
    %v2686 = vld [vmem:[%s11] sm:$0xff]
    %v2687 = vadd.f32 %v2685, 1e-05
    %v2688 = vrsqrt.pop %v2687
    %v2689 = vmul.f32 %v2686, %v2688
    %v2690 = vld [vmem:[%s12] sm:$0xff]
    %v2691 = vmul.f32 %v2681, %v2689
    %v2692 = vsub.f32 %v2690, %v2691
    %v2693 = vld [vmem:[#allocation9] sm:$0xff]
    %2695 = vset.pattern.permute.xlu0 0
    %2696 = vperm.xlu0 %2695, %v2689
    %v2697 = vpop.permute.xlu0 %2696
    %v2699 = vmul.f32 %v2693, %v2697
    %2701 = vset.pattern.permute.xlu0 0
    %2702 = vperm.xlu0 %2701, %v2692
    %v2703 = vpop.permute.xlu0 %2702
    %v2705 = vadd.f32 %v2699, %v2703
    %v2706 = vmax.f32 %v2705, 0.0
    %v2707 = vsel %vm2090, %v2706, 0.0
    %2708 = vst [vmem:[#allocation9] sm:$0xff] %v2707
    %v2709 = vld [vmem:[%s2678] sm:$0xff]
    %v2710 = vmul.f32 %v2709, %v2697
    %v2711 = vadd.f32 %v2710, %v2703
    %v2712 = vmax.f32 %v2711, 0.0
    %v2713 = vsel %vm2090, %v2712, 0.0
    %2714 = vst [vmem:[%s2678] sm:$0xff] %v2713
    // Predicated region
    $region62: #{tpu_custom_call.1} parent=1 // pred_check
      _
    $region63: #{tpu_custom_call.1} parent=1 // pred_check_branch
      %2716 = sbr.rel (0) target = $region65
    $region64: #{tpu_custom_call.1} parent=1 // pred_region
      %s2718 = ssub.s32 256, 256
      %2719 = vsyncadd [#allocation6], %s2718
      %s2720 = sshll.u32 [#allocation9], 4
      %s2721 = int_to_ptr.vmem [resolvable:$true] %s2720
      %2726 = dma.vmem_to_hbm [thread:$0]  %s2721, 256, %s13, [#allocation6], 128, 128, 8
    $region65: #{tpu_custom_call.1} parent=1 // pred_fallthru
      _
    // Predicated region
    $region66: #{tpu_custom_call.1} parent=1 // pred_check
      _
    $region67: #{tpu_custom_call.1} parent=1 // pred_check_branch
      %2728 = sbr.rel (0) target = $region69
    $region68: #{tpu_custom_call.1} parent=1 // pred_region
      %2729 = dma.done [#allocation6], 256
    $region69: #{tpu_custom_call.1} parent=1 // pred_fallthru
      _
    %2730 = vsyncpa [#allocation5], 1
    %2731 = vsyncpa [#allocation8], 1
    %2732 = vsyncpa [#allocation6], 1

</llo_original>
